<compile_context>
chip_gen: v6e
topology: v6e:2x2x1
jax: 0.10.0
libtpu: 0.0.40
codegen_flags: <defaults>
</compile_context>

<pallas_src>
import functools
import math

import jax
import jax.numpy as jnp
from jax.experimental import pallas as pl
from jax.experimental.pallas import tpu as pltpu

VMEM_LIMIT = 32 * 1024 * 1024  # fits v5e/v6e/v7x scoped-VMEM budgets
_NEG_BIG = -1e30               # finite "-inf" for the online-softmax running max


def _round_up(x, m):
    return ((x + m - 1) // m) * m


def _feature_tile(n):
    # lane-dense (multiple-of-128) output tiles when possible, else full extent
    for t in (512, 256, 128):
        if n % t == 0:
            return t
    return n


def _row_tile(m, pref=256):
    return min(pref, _round_up(m, 8))


def _heads_per_block(bh, cap=8):
    for h in range(min(cap, bh), 0, -1):
        if bh % h == 0:
            return h
    return 1


# ----------------------------------------------------------------------------
# Pallas kernels
# ----------------------------------------------------------------------------
def _linear_kernel(x_ref, w_ref, b_ref, o_ref, *, act):
    # y = act(x @ w + b), bf16 MXU matmul with f32 accumulation
    x = x_ref[...].astype(jnp.bfloat16)
    w = w_ref[...].astype(jnp.bfloat16)
    y = jnp.dot(x, w, preferred_element_type=jnp.float32) + b_ref[...]
    if act == "relu":
        y = jnp.maximum(y, 0.0)
    elif act == "gelu":
        y = 0.5 * y * (1.0 + jax.lax.erf(y * (1.0 / math.sqrt(2.0))))
    o_ref[...] = y.astype(o_ref.dtype)


def _linear_res_ln_kernel(x_ref, w_ref, b_ref, r_ref, g_ref, bln_ref, o_ref, *, eps):
    # o = LayerNorm(residual + (x @ w + b))  -- fused proj + add + LN
    x = x_ref[...].astype(jnp.bfloat16)
    w = w_ref[...].astype(jnp.bfloat16)
    y = jnp.dot(x, w, preferred_element_type=jnp.float32) + b_ref[...]
    y = y + r_ref[...]
    mu = jnp.mean(y, axis=-1, keepdims=True)
    yc = y - mu
    var = jnp.mean(yc * yc, axis=-1, keepdims=True)
    o_ref[...] = (yc * jax.lax.rsqrt(var + eps)) * g_ref[...] + bln_ref[...]


def _flash_attn_kernel(q_ref, k_ref, v_ref, o_ref, m_ref, l_ref, acc_ref, *, scale):
    # online-softmax attention over Sk tiles; several heads per grid step
    kk = pl.program_id(2)

    @pl.when(kk == 0)
    def _():
        m_ref[...] = jnp.full(m_ref.shape, _NEG_BIG, m_ref.dtype)
        l_ref[...] = jnp.zeros(l_ref.shape, l_ref.dtype)
        acc_ref[...] = jnp.zeros(acc_ref.shape, acc_ref.dtype)

    q = q_ref[...].astype(jnp.bfloat16)
    k = k_ref[...].astype(jnp.bfloat16)
    v = v_ref[...].astype(jnp.bfloat16)

    s = jnp.einsum("hqd,hkd->hqk", q, k,
                   preferred_element_type=jnp.float32) * scale   # (Hb, tq, tk)

    m_prev = m_ref[...]
    m_new = jnp.maximum(m_prev, jnp.max(s, axis=-1, keepdims=True))
    alpha = jnp.exp(m_prev - m_new)
    p = jnp.exp(s - m_new)

    l_ref[...] = alpha * l_ref[...] + jnp.sum(p, axis=-1, keepdims=True)
    acc_ref[...] = alpha * acc_ref[...] + jnp.einsum(
        "hqk,hkd->hqd", p.astype(jnp.bfloat16), v,
        preferred_element_type=jnp.float32)
    m_ref[...] = m_new

    @pl.when(kk == pl.num_programs(2) - 1)
    def _():
        inv_l = pl.reciprocal(l_ref[...], approx=True)
        o_ref[...] = (acc_ref[...] * inv_l).astype(o_ref.dtype)


# ----------------------------------------------------------------------------
# Pallas wrappers
# ----------------------------------------------------------------------------
def linear(x2d, p, act="none"):
    """x2d: (M, K); p = {'w': (K, N), 'b': (N,)} -> (M, N)."""
    M, K = x2d.shape
    N = p["w"].shape[1]
    tm = _row_tile(M)
    Mp = _round_up(M, tm)
    if Mp != M:
        x2d = jnp.pad(x2d, ((0, Mp - M), (0, 0)))
    tn = _feature_tile(N)

    out = pl.pallas_call(
        functools.partial(_linear_kernel, act=act),
        out_shape=jax.ShapeDtypeStruct((Mp, N), jnp.float32),
        grid=(Mp // tm, N // tn),
        in_specs=[
            pl.BlockSpec((tm, K), lambda i, j: (i, 0)),
            pl.BlockSpec((K, tn), lambda i, j: (0, j)),
            pl.BlockSpec((1, tn), lambda i, j: (0, j)),
        ],
        out_specs=pl.BlockSpec((tm, tn), lambda i, j: (i, j)),
        compiler_params=pltpu.CompilerParams(
            dimension_semantics=("parallel", "parallel"),
            vmem_limit_bytes=VMEM_LIMIT),
    )(x2d, p["w"], p["b"].reshape(1, N))
    return out[:M] if Mp != M else out


def linear_res_ln(x2d, p, residual, gamma, beta, eps=1e-5):
    """LayerNorm(residual + x2d @ w + b); x2d: (M, K), residual: (M, E)."""
    M, K = x2d.shape
    E = p["w"].shape[1]
    tm = _row_tile(M)
    Mp = _round_up(M, tm)
    if Mp != M:
        x2d = jnp.pad(x2d, ((0, Mp - M), (0, 0)))
        residual = jnp.pad(residual, ((0, Mp - M), (0, 0)))

    out = pl.pallas_call(
        functools.partial(_linear_res_ln_kernel, eps=eps),
        out_shape=jax.ShapeDtypeStruct((Mp, E), jnp.float32),
        grid=(Mp // tm,),
        in_specs=[
            pl.BlockSpec((tm, K), lambda i: (i, 0)),
            pl.BlockSpec((K, E), lambda i: (0, 0)),
            pl.BlockSpec((1, E), lambda i: (0, 0)),
            pl.BlockSpec((tm, E), lambda i: (i, 0)),
            pl.BlockSpec((1, E), lambda i: (0, 0)),
            pl.BlockSpec((1, E), lambda i: (0, 0)),
        ],
        out_specs=pl.BlockSpec((tm, E), lambda i: (i, 0)),
        compiler_params=pltpu.CompilerParams(
            dimension_semantics=("parallel",),
            vmem_limit_bytes=VMEM_LIMIT),
    )(x2d, p["w"], p["b"].reshape(1, E), residual,
      gamma.reshape(1, E), beta.reshape(1, E))
    return out[:M] if Mp != M else out


def flash_attention(q, k, v):
    """q/k/v: (BH, S, Dh) -> (BH, S, Dh) with online softmax."""
    BH, Sq, Dh = q.shape
    Sk = k.shape[1]
    scale = 1.0 / math.sqrt(Dh)
    Hb = _heads_per_block(BH)
    tq = 128 if Sq % 128 == 0 else Sq
    tk = 128 if Sk % 128 == 0 else Sk

    return pl.pallas_call(
        functools.partial(_flash_attn_kernel, scale=scale),
        out_shape=jax.ShapeDtypeStruct((BH, Sq, Dh), jnp.float32),
        grid=(BH // Hb, Sq // tq, Sk // tk),
        in_specs=[
            pl.BlockSpec((Hb, tq, Dh), lambda h, qi, ki: (h, qi, 0)),
            pl.BlockSpec((Hb, tk, Dh), lambda h, qi, ki: (h, ki, 0)),
            pl.BlockSpec((Hb, tk, Dh), lambda h, qi, ki: (h, ki, 0)),
        ],
        out_specs=pl.BlockSpec((Hb, tq, Dh), lambda h, qi, ki: (h, qi, 0)),
        scratch_shapes=[
            pltpu.VMEM((Hb, tq, 1), jnp.float32),   # running max
            pltpu.VMEM((Hb, tq, 1), jnp.float32),   # running denom
            pltpu.VMEM((Hb, tq, Dh), jnp.float32),  # accumulator
        ],
        compiler_params=pltpu.CompilerParams(
            dimension_semantics=("parallel", "parallel", "arbitrary"),
            vmem_limit_bytes=VMEM_LIMIT),
    )(q, k, v)


# ----------------------------------------------------------------------------
# TransformerEncoderLayer (post-norm, ReLU, eval mode) and PatchMixer
# ----------------------------------------------------------------------------
def encoder_layer(x2d, p, num_heads, B, S):
    E = x2d.shape[1]
    Dh = E // num_heads

    # fused QKV projection: one (E, 3E) matmul
    qkv = linear(x2d, p["qkv"])                                   # (B*S, 3E)
    # TODO(synk): head split/merge stays as XLA reshape/transpose glue; a
    # per-head BlockSpec gather would need sub-128 lane blocks (rejected by
    # the (8,128) tiling rule at these head dims).
    qkv = qkv.reshape(B, S, 3, num_heads, Dh).transpose(2, 0, 3, 1, 4)
    q = qkv[0].reshape(B * num_heads, S, Dh)
    k = qkv[1].reshape(B * num_heads, S, Dh)
    v = qkv[2].reshape(B * num_heads, S, Dh)

    attn = flash_attention(q, k, v)
    attn = attn.reshape(B, num_heads, S, Dh).transpose(0, 2, 1, 3).reshape(B * S, E)

    # fused: out_proj + residual + LayerNorm1
    h = linear_res_ln(attn, p["out_proj"], x2d, p["ln1_g"], p["ln1_b"])
    # feed-forward: Linear -> ReLU, then fused Linear2 + residual + LayerNorm2
    f = linear(h, p["ff1"], act="relu")
    h = linear_res_ln(f, p["ff2"], h, p["ln2_g"], p["ln2_b"])
    return h


def patch_mixer_forward(params, x, *, num_heads):
    """x: (B, N_tokens, embed_dim) -> same shape."""
    B, S, E = x.shape
    h = x.reshape(B * S, E).astype(jnp.float32)
    for lp in params["layers"]:
        h = encoder_layer(h, lp, num_heads, B, S)
    return h.reshape(B, S, E)


# ----------------------------------------------------------------------------
# Parameter init (deterministic, synthetic; matches nn.TransformerEncoderLayer
# defaults: dim_feedforward=2048, LayerNorm eps=1e-5)
# ----------------------------------------------------------------------------
def init_params(embed_dim, num_heads, num_layers=2, dim_feedforward=2048, seed=42):
    keys = iter(jax.random.split(jax.random.PRNGKey(seed), 16 * max(num_layers, 1)))

    def lin(fi, fo):
        bd = 1.0 / math.sqrt(fi)
        return {
            "w": jax.random.uniform(next(keys), (fi, fo), jnp.float32, -bd, bd),
            "b": jax.random.uniform(next(keys), (fo,), jnp.float32, -bd, bd),
        }

    def layer():
        return {
            "qkv": lin(embed_dim, 3 * embed_dim),        # packed in_proj
            "out_proj": lin(embed_dim, embed_dim),
            "ff1": lin(embed_dim, dim_feedforward),
            "ff2": lin(dim_feedforward, embed_dim),
            "ln1_g": jnp.ones((embed_dim,), jnp.float32),
            "ln1_b": jnp.zeros((embed_dim,), jnp.float32),
            "ln2_g": jnp.ones((embed_dim,), jnp.float32),
            "ln2_b": jnp.zeros((embed_dim,), jnp.float32),
        }

    return {"layers": [layer() for _ in range(num_layers)]}


# ----------------------------------------------------------------------------
if __name__ == "__main__":
    embed_dim, num_heads, num_layers = 32, 4, 2   # demo config (lane dims are
    B, S = 2, 8                                   # pathologically small; prod
                                                  # shapes should be /128)
    params = init_params(embed_dim, num_heads, num_layers)
    x = jax.random.normal(jax.random.PRNGKey(0), (B, S, embed_dim), jnp.float32)

    fwd = jax.jit(functools.partial(patch_mixer_forward, num_heads=num_heads))
    out = fwd(params, x)
    jax.block_until_ready(out)
    assert out.shape == (B, S, embed_dim) and out.dtype == jnp.float32
    assert bool(jnp.all(jnp.isfinite(out)))
    print("KERNEL_OK")
</pallas_src>

<mosaic_0001>
module attributes {stable_mosaic.version = 11 : i64} {
  func.func @_linear_kernel(%arg0: i32, %arg1: i32, %arg2: memref<16x32xf32, #tpu.memory_space<vmem>>, %arg3: memref<32x96xf32, #tpu.memory_space<vmem>>, %arg4: memref<1x96xf32, #tpu.memory_space<vmem>>, %arg5: memref<16x96xf32, #tpu.memory_space<vmem>>) attributes {dimension_semantics = [#tpu.dimension_semantics<parallel>, #tpu.dimension_semantics<parallel>], iteration_bounds = array<i64: 1, 1>, scalar_prefetch = 0 : i64, scratch_operands = 0 : i64, tpu.core_type = #tpu.core_type<tc>, window_params = [{transform_indices = @transform_0, window_bounds = array<i64: 16, 32>}, {transform_indices = @transform_1, window_bounds = array<i64: 32, 96>}, {transform_indices = @transform_2, window_bounds = array<i64: 1, 96>}, {transform_indices = @transform_3, window_bounds = array<i64: 16, 96>}]} {
    %c0 = arith.constant 0 : index
    %c0_0 = arith.constant 0 : index
    %0 = vector.load %arg2[%c0, %c0_0] : memref<16x32xf32, #tpu.memory_space<vmem>>, vector<16x32xf32>
    %1 = arith.truncf %0 : vector<16x32xf32> to vector<16x32xbf16>
    %c0_1 = arith.constant 0 : index
    %c0_2 = arith.constant 0 : index
    %2 = vector.load %arg3[%c0_1, %c0_2] : memref<32x96xf32, #tpu.memory_space<vmem>>, vector<32x96xf32>
    %3 = arith.truncf %2 : vector<32x96xf32> to vector<32x96xbf16>
    %cst = arith.constant dense<0.000000e+00> : vector<16x96xf32>
    %4 = tpu.matmul %1, %3, %cst {dimension_numbers = #tpu.dot_dimension_numbers<[1], [0], [0], [1], [0, 0, 1, 1], [], []>} : vector<16x32xbf16>, vector<32x96xbf16>, vector<16x96xf32> -> vector<16x96xf32>
    %c0_3 = arith.constant 0 : index
    %c0_4 = arith.constant 0 : index
    %5 = vector.load %arg4[%c0_3, %c0_4] : memref<1x96xf32, #tpu.memory_space<vmem>>, vector<1x96xf32>
    %6 = vector.broadcast %5 : vector<1x96xf32> to vector<16x96xf32>
    %7 = arith.addf %4, %6 : vector<16x96xf32>
    %c0_5 = arith.constant 0 : index
    %c0_6 = arith.constant 0 : index
    %8 = vector.load %arg5[%c0_5, %c0_6] : memref<16x96xf32, #tpu.memory_space<vmem>>, vector<16x96xf32>
    tpu.vector_store %arg5[%c0_5, %c0_6], %7 {strides = array<i32>} : memref<16x96xf32, #tpu.memory_space<vmem>>, vector<16x96xf32>,
    return
  }
  func.func @transform_0(%arg0: i32, %arg1: i32) -> (i32, i32) {
    %c0_i32 = arith.constant 0 : i32
    %c0_i32_0 = arith.constant 0 : i32
    return %arg0, %c0_i32 : i32, i32
  }
  func.func @transform_1(%arg0: i32, %arg1: i32) -> (i32, i32) {
    %c0_i32 = arith.constant 0 : i32
    %c0_i32_0 = arith.constant 0 : i32
    return %c0_i32, %arg1 : i32, i32
  }
  func.func @transform_2(%arg0: i32, %arg1: i32) -> (i32, i32) {
    %c0_i32 = arith.constant 0 : i32
    %c0_i32_0 = arith.constant 0 : i32
    return %c0_i32, %arg1 : i32, i32
  }
  func.func @transform_3(%arg0: i32, %arg1: i32) -> (i32, i32) {
    %c0_i32 = arith.constant 0 : i32
    return %arg0, %arg1 : i32, i32
  }
}

module attributes {stable_mosaic.version = 11 : i64} {
  func.func @_linear_kernel(%arg0: i32, %arg1: i32, %arg2: memref<16x32xf32, #tpu.memory_space<vmem>>, %arg3: memref<32x512xf32, #tpu.memory_space<vmem>>, %arg4: memref<1x512xf32, #tpu.memory_space<vmem>>, %arg5: memref<16x512xf32, #tpu.memory_space<vmem>>) attributes {dimension_semantics = [#tpu.dimension_semantics<parallel>, #tpu.dimension_semantics<parallel>], iteration_bounds = array<i64: 1, 4>, scalar_prefetch = 0 : i64, scratch_operands = 0 : i64, tpu.core_type = #tpu.core_type<tc>, window_params = [{transform_indices = @transform_0, window_bounds = array<i64: 16, 32>}, {transform_indices = @transform_1, window_bounds = array<i64: 32, 512>}, {transform_indices = @transform_2, window_bounds = array<i64: 1, 512>}, {transform_indices = @transform_3, window_bounds = array<i64: 16, 512>}]} {
    %c0 = arith.constant 0 : index
    %c0_0 = arith.constant 0 : index
    %0 = vector.load %arg2[%c0, %c0_0] : memref<16x32xf32, #tpu.memory_space<vmem>>, vector<16x32xf32>
    %1 = arith.truncf %0 : vector<16x32xf32> to vector<16x32xbf16>
    %c0_1 = arith.constant 0 : index
    %c0_2 = arith.constant 0 : index
    %2 = vector.load %arg3[%c0_1, %c0_2] : memref<32x512xf32, #tpu.memory_space<vmem>>, vector<32x512xf32>
    %3 = arith.truncf %2 : vector<32x512xf32> to vector<32x512xbf16>
    %cst = arith.constant dense<0.000000e+00> : vector<16x512xf32>
    %4 = tpu.matmul %1, %3, %cst {dimension_numbers = #tpu.dot_dimension_numbers<[1], [0], [0], [1], [0, 0, 1, 1], [], []>} : vector<16x32xbf16>, vector<32x512xbf16>, vector<16x512xf32> -> vector<16x512xf32>
    %c0_3 = arith.constant 0 : index
    %c0_4 = arith.constant 0 : index
    %5 = vector.load %arg4[%c0_3, %c0_4] : memref<1x512xf32, #tpu.memory_space<vmem>>, vector<1x512xf32>
    %6 = vector.broadcast %5 : vector<1x512xf32> to vector<16x512xf32>
    %7 = arith.addf %4, %6 : vector<16x512xf32>
    %cst_5 = arith.constant 0.000000e+00 : f32
    %8 = vector.broadcast %cst_5 : f32 to vector<16x512xf32>
    %9 = arith.maximumf %7, %8 : vector<16x512xf32>
    %c0_6 = arith.constant 0 : index
    %c0_7 = arith.constant 0 : index
    %10 = vector.load %arg5[%c0_6, %c0_7] : memref<16x512xf32, #tpu.memory_space<vmem>>, vector<16x512xf32>
    tpu.vector_store %arg5[%c0_6, %c0_7], %9 {strides = array<i32>} : memref<16x512xf32, #tpu.memory_space<vmem>>, vector<16x512xf32>,
    return
  }
  func.func @transform_0(%arg0: i32, %arg1: i32) -> (i32, i32) {
    %c0_i32 = arith.constant 0 : i32
    %c0_i32_0 = arith.constant 0 : i32
    return %arg0, %c0_i32 : i32, i32
  }
  func.func @transform_1(%arg0: i32, %arg1: i32) -> (i32, i32) {
    %c0_i32 = arith.constant 0 : i32
    %c0_i32_0 = arith.constant 0 : i32
    return %c0_i32, %arg1 : i32, i32
  }
  func.func @transform_2(%arg0: i32, %arg1: i32) -> (i32, i32) {
    %c0_i32 = arith.constant 0 : i32
    %c0_i32_0 = arith.constant 0 : i32
    return %c0_i32, %arg1 : i32, i32
  }
  func.func @transform_3(%arg0: i32, %arg1: i32) -> (i32, i32) {
    %c0_i32 = arith.constant 0 : i32
    return %arg0, %arg1 : i32, i32
  }
}

module attributes {stable_mosaic.version = 11 : i64} {
  func.func @_flash_attn_kernel(%arg0: i32, %arg1: i32, %arg2: i32, %arg3: memref<8x8x8xf32, #tpu.memory_space<vmem>>, %arg4: memref<8x8x8xf32, #tpu.memory_space<vmem>>, %arg5: memref<8x8x8xf32, #tpu.memory_space<vmem>>, %arg6: memref<8x8x8xf32, #tpu.memory_space<vmem>>, %arg7: memref<8x8x1xf32, #tpu.memory_space<vmem>>, %arg8: memref<8x8x1xf32, #tpu.memory_space<vmem>>, %arg9: memref<8x8x8xf32, #tpu.memory_space<vmem>>) attributes {dimension_semantics = [#tpu.dimension_semantics<parallel>, #tpu.dimension_semantics<parallel>, #tpu.dimension_semantics<arbitrary>], iteration_bounds = array<i64: 1, 1, 1>, scalar_prefetch = 0 : i64, scratch_operands = 3 : i64, tpu.core_type = #tpu.core_type<tc>, window_params = [{transform_indices = @transform_0, window_bounds = array<i64: 8, 8, 8>}, {transform_indices = @transform_1, window_bounds = array<i64: 8, 8, 8>}, {transform_indices = @transform_2, window_bounds = array<i64: 8, 8, 8>}, {transform_indices = @transform_3, window_bounds = array<i64: 8, 8, 8>}]} {
    %c0_i32 = arith.constant 0 : i32
    %0 = arith.cmpi eq, %arg2, %c0_i32 : i32
    %1 = arith.extui %0 : i1 to i32
    %c0_i32_0 = arith.constant 0 : i32
    %2 = arith.cmpi ne, %1, %c0_i32_0 : i32
    scf.if %2 {
      %cst_33 = arith.constant -1.000000e+30 : f32
      %38 = vector.broadcast %cst_33 : f32 to vector<8x8x1xf32>
      %c0_34 = arith.constant 0 : index
      %c0_35 = arith.constant 0 : index
      %c0_36 = arith.constant 0 : index
      %39 = vector.load %arg7[%c0_34, %c0_35, %c0_36] : memref<8x8x1xf32, #tpu.memory_space<vmem>>, vector<8x8x1xf32>
      tpu.vector_store %arg7[%c0_34, %c0_35, %c0_36], %38 {strides = array<i32>} : memref<8x8x1xf32, #tpu.memory_space<vmem>>, vector<8x8x1xf32>,
      %cst_37 = arith.constant 0.000000e+00 : f32
      %40 = vector.broadcast %cst_37 : f32 to vector<8x8x1xf32>
      %c0_38 = arith.constant 0 : index
      %c0_39 = arith.constant 0 : index
      %c0_40 = arith.constant 0 : index
      %41 = vector.load %arg8[%c0_38, %c0_39, %c0_40] : memref<8x8x1xf32, #tpu.memory_space<vmem>>, vector<8x8x1xf32>
      tpu.vector_store %arg8[%c0_38, %c0_39, %c0_40], %40 {strides = array<i32>} : memref<8x8x1xf32, #tpu.memory_space<vmem>>, vector<8x8x1xf32>,
      %cst_41 = arith.constant 0.000000e+00 : f32
      %42 = vector.broadcast %cst_41 : f32 to vector<8x8x8xf32>
      %c0_42 = arith.constant 0 : index
      %c0_43 = arith.constant 0 : index
      %c0_44 = arith.constant 0 : index
      %43 = vector.load %arg9[%c0_42, %c0_43, %c0_44] : memref<8x8x8xf32, #tpu.memory_space<vmem>>, vector<8x8x8xf32>
      tpu.vector_store %arg9[%c0_42, %c0_43, %c0_44], %42 {strides = array<i32>} : memref<8x8x8xf32, #tpu.memory_space<vmem>>, vector<8x8x8xf32>,
    } else {
    }
    %c0 = arith.constant 0 : index
    %c0_1 = arith.constant 0 : index
    %c0_2 = arith.constant 0 : index
    %3 = vector.load %arg3[%c0, %c0_1, %c0_2] : memref<8x8x8xf32, #tpu.memory_space<vmem>>, vector<8x8x8xf32>
    %4 = arith.truncf %3 : vector<8x8x8xf32> to vector<8x8x8xbf16>
    %c0_3 = arith.constant 0 : index
    %c0_4 = arith.constant 0 : index
    %c0_5 = arith.constant 0 : index
    %5 = vector.load %arg4[%c0_3, %c0_4, %c0_5] : memref<8x8x8xf32, #tpu.memory_space<vmem>>, vector<8x8x8xf32>
    %6 = arith.truncf %5 : vector<8x8x8xf32> to vector<8x8x8xbf16>
    %c0_6 = arith.constant 0 : index
    %c0_7 = arith.constant 0 : index
    %c0_8 = arith.constant 0 : index
    %7 = vector.load %arg5[%c0_6, %c0_7, %c0_8] : memref<8x8x8xf32, #tpu.memory_space<vmem>>, vector<8x8x8xf32>
    %8 = arith.truncf %7 : vector<8x8x8xf32> to vector<8x8x8xbf16>
    "tpu.trace_start"() <{level = 10 : i32, message = "hqd,hkd->hqk"}> : () -> ()
    %cst = arith.constant dense<0.000000e+00> : vector<8x8x8xf32>
    %9 = tpu.matmul %4, %6, %cst {dimension_numbers = #tpu.dot_dimension_numbers<[2], [2], [1], [1], [0, 0, 0, 1, 1, 1], [0], [0]>} : vector<8x8x8xbf16>, vector<8x8x8xbf16>, vector<8x8x8xf32> -> vector<8x8x8xf32>
    "tpu.trace_stop"() : () -> ()
    %cst_9 = arith.constant 0.353553385 : f32
    %10 = vector.broadcast %cst_9 : f32 to vector<8x8x8xf32>
    %11 = arith.mulf %9, %10 : vector<8x8x8xf32>
    %c0_10 = arith.constant 0 : index
    %c0_11 = arith.constant 0 : index
    %c0_12 = arith.constant 0 : index
    %12 = vector.load %arg7[%c0_10, %c0_11, %c0_12] : memref<8x8x1xf32, #tpu.memory_space<vmem>>, vector<8x8x1xf32>
    %cst_13 = arith.constant dense<0xFF800000> : vector<8x8xf32>
    %13 = vector.multi_reduction <maximumf>, %11, %cst_13 [2] : vector<8x8x8xf32> to vector<8x8xf32>
    %14 = vector.shape_cast %13 : vector<8x8xf32> to vector<8x8x1xf32>
    %15 = arith.maximumf %12, %14 : vector<8x8x1xf32>
    %16 = arith.subf %12, %15 : vector<8x8x1xf32>
    %17 = math.exp %16 : vector<8x8x1xf32>
    %18 = vector.broadcast %15 : vector<8x8x1xf32> to vector<8x8x8xf32>
    %19 = arith.subf %11, %18 : vector<8x8x8xf32>
    %20 = math.exp %19 : vector<8x8x8xf32>
    %c0_14 = arith.constant 0 : index
    %c0_15 = arith.constant 0 : index
    %c0_16 = arith.constant 0 : index
    %21 = vector.load %arg8[%c0_14, %c0_15, %c0_16] : memref<8x8x1xf32, #tpu.memory_space<vmem>>, vector<8x8x1xf32>
    %22 = arith.mulf %17, %21 : vector<8x8x1xf32>
    %cst_17 = arith.constant dense<0.000000e+00> : vector<8x8xf32>
    %23 = vector.multi_reduction <add>, %20, %cst_17 [2] : vector<8x8x8xf32> to vector<8x8xf32>
    %24 = vector.shape_cast %23 : vector<8x8xf32> to vector<8x8x1xf32>
    %25 = arith.addf %22, %24 : vector<8x8x1xf32>
    %c0_18 = arith.constant 0 : index
    %c0_19 = arith.constant 0 : index
    %c0_20 = arith.constant 0 : index
    %26 = vector.load %arg8[%c0_18, %c0_19, %c0_20] : memref<8x8x1xf32, #tpu.memory_space<vmem>>, vector<8x8x1xf32>
    tpu.vector_store %arg8[%c0_18, %c0_19, %c0_20], %25 {strides = array<i32>} : memref<8x8x1xf32, #tpu.memory_space<vmem>>, vector<8x8x1xf32>,
    %c0_21 = arith.constant 0 : index
    %c0_22 = arith.constant 0 : index
    %c0_23 = arith.constant 0 : index
    %27 = vector.load %arg9[%c0_21, %c0_22, %c0_23] : memref<8x8x8xf32, #tpu.memory_space<vmem>>, vector<8x8x8xf32>
    %28 = vector.broadcast %17 : vector<8x8x1xf32> to vector<8x8x8xf32>
    %29 = arith.mulf %28, %27 : vector<8x8x8xf32>
    %30 = arith.truncf %20 : vector<8x8x8xf32> to vector<8x8x8xbf16>
    "tpu.trace_start"() <{level = 10 : i32, message = "hqk,hkd->hqd"}> : () -> ()
    %cst_24 = arith.constant dense<0.000000e+00> : vector<8x8x8xf32>
    %31 = tpu.matmul %30, %8, %cst_24 {dimension_numbers = #tpu.dot_dimension_numbers<[2], [1], [1], [2], [0, 0, 0, 1, 1, 2], [0], [0]>} : vector<8x8x8xbf16>, vector<8x8x8xbf16>, vector<8x8x8xf32> -> vector<8x8x8xf32>
    "tpu.trace_stop"() : () -> ()
    %32 = arith.addf %29, %31 : vector<8x8x8xf32>
    %c0_25 = arith.constant 0 : index
    %c0_26 = arith.constant 0 : index
    %c0_27 = arith.constant 0 : index
    %33 = vector.load %arg9[%c0_25, %c0_26, %c0_27] : memref<8x8x8xf32, #tpu.memory_space<vmem>>, vector<8x8x8xf32>
    tpu.vector_store %arg9[%c0_25, %c0_26, %c0_27], %32 {strides = array<i32>} : memref<8x8x8xf32, #tpu.memory_space<vmem>>, vector<8x8x8xf32>,
    %c0_28 = arith.constant 0 : index
    %c0_29 = arith.constant 0 : index
    %c0_30 = arith.constant 0 : index
    %34 = vector.load %arg7[%c0_28, %c0_29, %c0_30] : memref<8x8x1xf32, #tpu.memory_space<vmem>>, vector<8x8x1xf32>
    tpu.vector_store %arg7[%c0_28, %c0_29, %c0_30], %15 {strides = array<i32>} : memref<8x8x1xf32, #tpu.memory_space<vmem>>, vector<8x8x1xf32>,
    %c0_i32_31 = arith.constant 0 : i32
    %35 = arith.cmpi eq, %arg2, %c0_i32_31 : i32
    %36 = arith.extui %35 : i1 to i32
    %c0_i32_32 = arith.constant 0 : i32
    %37 = arith.cmpi ne, %36, %c0_i32_32 : i32
    scf.if %37 {
      %c0_33 = arith.constant 0 : index
      %c0_34 = arith.constant 0 : index
      %c0_35 = arith.constant 0 : index
      %38 = vector.load %arg8[%c0_33, %c0_34, %c0_35] : memref<8x8x1xf32, #tpu.memory_space<vmem>>, vector<8x8x1xf32>
      %39 = tpu.reciprocal %38 {approx = true} : vector<8x8x1xf32> -> vector<8x8x1xf32>
      %c0_36 = arith.constant 0 : index
      %c0_37 = arith.constant 0 : index
      %c0_38 = arith.constant 0 : index
      %40 = vector.load %arg9[%c0_36, %c0_37, %c0_38] : memref<8x8x8xf32, #tpu.memory_space<vmem>>, vector<8x8x8xf32>
      %41 = vector.broadcast %39 : vector<8x8x1xf32> to vector<8x8x8xf32>
      %42 = arith.mulf %40, %41 : vector<8x8x8xf32>
      %c0_39 = arith.constant 0 : index
      %c0_40 = arith.constant 0 : index
      %c0_41 = arith.constant 0 : index
      %43 = vector.load %arg6[%c0_39, %c0_40, %c0_41] : memref<8x8x8xf32, #tpu.memory_space<vmem>>, vector<8x8x8xf32>
      tpu.vector_store %arg6[%c0_39, %c0_40, %c0_41], %42 {strides = array<i32>} : memref<8x8x8xf32, #tpu.memory_space<vmem>>, vector<8x8x8xf32>,
    } else {
    }
    return
  }
  func.func @transform_0(%arg0: i32, %arg1: i32, %arg2: i32) -> (i32, i32, i32) {
    %c0_i32 = arith.constant 0 : i32
    %c0_i32_0 = arith.constant 0 : i32
    return %arg0, %arg1, %c0_i32 : i32, i32, i32
  }
  func.func @transform_1(%arg0: i32, %arg1: i32, %arg2: i32) -> (i32, i32, i32) {
    %c0_i32 = arith.constant 0 : i32
    %c0_i32_0 = arith.constant 0 : i32
    return %arg0, %arg2, %c0_i32 : i32, i32, i32
  }
  func.func @transform_2(%arg0: i32, %arg1: i32, %arg2: i32) -> (i32, i32, i32) {
    %c0_i32 = arith.constant 0 : i32
    %c0_i32_0 = arith.constant 0 : i32
    return %arg0, %arg2, %c0_i32 : i32, i32, i32
  }
  func.func @transform_3(%arg0: i32, %arg1: i32, %arg2: i32) -> (i32, i32, i32) {
    %c0_i32 = arith.constant 0 : i32
    %c0_i32_0 = arith.constant 0 : i32
    return %arg0, %arg1, %c0_i32 : i32, i32, i32
  }
}

module attributes {stable_mosaic.version = 11 : i64} {
  func.func @_linear_res_ln_kernel(%arg0: i32, %arg1: memref<16x32xf32, #tpu.memory_space<vmem>>, %arg2: memref<32x32xf32, #tpu.memory_space<vmem>>, %arg3: memref<1x32xf32, #tpu.memory_space<vmem>>, %arg4: memref<16x32xf32, #tpu.memory_space<vmem>>, %arg5: memref<1x32xf32, #tpu.memory_space<vmem>>, %arg6: memref<1x32xf32, #tpu.memory_space<vmem>>, %arg7: memref<16x32xf32, #tpu.memory_space<vmem>>) attributes {dimension_semantics = [#tpu.dimension_semantics<parallel>], iteration_bounds = array<i64: 1>, scalar_prefetch = 0 : i64, scratch_operands = 0 : i64, tpu.core_type = #tpu.core_type<tc>, window_params = [{transform_indices = @transform_0, window_bounds = array<i64: 16, 32>}, {pipeline_mode = #tpu.pipeline_mode<synchronous>, transform_indices = @transform_1, window_bounds = array<i64: 32, 32>}, {pipeline_mode = #tpu.pipeline_mode<synchronous>, transform_indices = @transform_2, window_bounds = array<i64: 1, 32>}, {transform_indices = @transform_3, window_bounds = array<i64: 16, 32>}, {pipeline_mode = #tpu.pipeline_mode<synchronous>, transform_indices = @transform_4, window_bounds = array<i64: 1, 32>}, {pipeline_mode = #tpu.pipeline_mode<synchronous>, transform_indices = @transform_5, window_bounds = array<i64: 1, 32>}, {transform_indices = @transform_6, window_bounds = array<i64: 16, 32>}]} {
    %c0 = arith.constant 0 : index
    %c0_0 = arith.constant 0 : index
    %0 = vector.load %arg1[%c0, %c0_0] : memref<16x32xf32, #tpu.memory_space<vmem>>, vector<16x32xf32>
    %1 = arith.truncf %0 : vector<16x32xf32> to vector<16x32xbf16>
    %c0_1 = arith.constant 0 : index
    %c0_2 = arith.constant 0 : index
    %2 = vector.load %arg2[%c0_1, %c0_2] : memref<32x32xf32, #tpu.memory_space<vmem>>, vector<32x32xf32>
    %3 = arith.truncf %2 : vector<32x32xf32> to vector<32x32xbf16>
    %cst = arith.constant dense<0.000000e+00> : vector<16x32xf32>
    %4 = tpu.matmul %1, %3, %cst {dimension_numbers = #tpu.dot_dimension_numbers<[1], [0], [0], [1], [0, 0, 1, 1], [], []>} : vector<16x32xbf16>, vector<32x32xbf16>, vector<16x32xf32> -> vector<16x32xf32>
    %c0_3 = arith.constant 0 : index
    %c0_4 = arith.constant 0 : index
    %5 = vector.load %arg3[%c0_3, %c0_4] : memref<1x32xf32, #tpu.memory_space<vmem>>, vector<1x32xf32>
    %6 = vector.broadcast %5 : vector<1x32xf32> to vector<16x32xf32>
    %7 = arith.addf %4, %6 : vector<16x32xf32>
    %c0_5 = arith.constant 0 : index
    %c0_6 = arith.constant 0 : index
    %8 = vector.load %arg4[%c0_5, %c0_6] : memref<16x32xf32, #tpu.memory_space<vmem>>, vector<16x32xf32>
    %9 = arith.addf %7, %8 : vector<16x32xf32>
    %cst_7 = arith.constant dense<0.000000e+00> : vector<16xf32>
    %10 = vector.multi_reduction <add>, %9, %cst_7 [1] : vector<16x32xf32> to vector<16xf32>
    %11 = vector.shape_cast %10 : vector<16xf32> to vector<16x1xf32>
    %cst_8 = arith.constant 3.200000e+01 : f32
    %12 = vector.broadcast %cst_8 : f32 to vector<16x1xf32>
    %13 = arith.divf %11, %12 : vector<16x1xf32>
    %14 = vector.broadcast %13 : vector<16x1xf32> to vector<16x32xf32>
    %15 = arith.subf %9, %14 : vector<16x32xf32>
    %16 = arith.mulf %15, %15 : vector<16x32xf32>
    %cst_9 = arith.constant dense<0.000000e+00> : vector<16xf32>
    %17 = vector.multi_reduction <add>, %16, %cst_9 [1] : vector<16x32xf32> to vector<16xf32>
    %18 = vector.shape_cast %17 : vector<16xf32> to vector<16x1xf32>
    %cst_10 = arith.constant 3.200000e+01 : f32
    %19 = vector.broadcast %cst_10 : f32 to vector<16x1xf32>
    %20 = arith.divf %18, %19 : vector<16x1xf32>
    %cst_11 = arith.constant 9.99999974E-6 : f32
    %21 = vector.broadcast %cst_11 : f32 to vector<16x1xf32>
    %22 = arith.addf %20, %21 : vector<16x1xf32>
    %23 = math.rsqrt %22 : vector<16x1xf32>
    %24 = vector.broadcast %23 : vector<16x1xf32> to vector<16x32xf32>
    %25 = arith.mulf %15, %24 : vector<16x32xf32>
    %c0_12 = arith.constant 0 : index
    %c0_13 = arith.constant 0 : index
    %26 = vector.load %arg5[%c0_12, %c0_13] : memref<1x32xf32, #tpu.memory_space<vmem>>, vector<1x32xf32>
    %27 = vector.broadcast %26 : vector<1x32xf32> to vector<16x32xf32>
    %28 = arith.mulf %25, %27 : vector<16x32xf32>
    %c0_14 = arith.constant 0 : index
    %c0_15 = arith.constant 0 : index
    %29 = vector.load %arg6[%c0_14, %c0_15] : memref<1x32xf32, #tpu.memory_space<vmem>>, vector<1x32xf32>
    %30 = vector.broadcast %29 : vector<1x32xf32> to vector<16x32xf32>
    %31 = arith.addf %28, %30 : vector<16x32xf32>
    %c0_16 = arith.constant 0 : index
    %c0_17 = arith.constant 0 : index
    %32 = vector.load %arg7[%c0_16, %c0_17] : memref<16x32xf32, #tpu.memory_space<vmem>>, vector<16x32xf32>
    tpu.vector_store %arg7[%c0_16, %c0_17], %31 {strides = array<i32>} : memref<16x32xf32, #tpu.memory_space<vmem>>, vector<16x32xf32>,
    return
  }
  func.func @transform_0(%arg0: i32) -> (i32, i32) {
    %c0_i32 = arith.constant 0 : i32
    %c0_i32_0 = arith.constant 0 : i32
    return %arg0, %c0_i32 : i32, i32
  }
  func.func @transform_1(%arg0: i32) -> (i32, i32) {
    %c0_i32 = arith.constant 0 : i32
    %c0_i32_0 = arith.constant 0 : i32
    %c0_i32_1 = arith.constant 0 : i32
    return %c0_i32, %c0_i32_0 : i32, i32
  }
  func.func @transform_2(%arg0: i32) -> (i32, i32) {
    %c0_i32 = arith.constant 0 : i32
    %c0_i32_0 = arith.constant 0 : i32
    %c0_i32_1 = arith.constant 0 : i32
    return %c0_i32, %c0_i32_0 : i32, i32
  }
  func.func @transform_3(%arg0: i32) -> (i32, i32) {
    %c0_i32 = arith.constant 0 : i32
    %c0_i32_0 = arith.constant 0 : i32
    return %arg0, %c0_i32 : i32, i32
  }
  func.func @transform_4(%arg0: i32) -> (i32, i32) {
    %c0_i32 = arith.constant 0 : i32
    %c0_i32_0 = arith.constant 0 : i32
    %c0_i32_1 = arith.constant 0 : i32
    return %c0_i32, %c0_i32_0 : i32, i32
  }
  func.func @transform_5(%arg0: i32) -> (i32, i32) {
    %c0_i32 = arith.constant 0 : i32
    %c0_i32_0 = arith.constant 0 : i32
    %c0_i32_1 = arith.constant 0 : i32
    return %c0_i32, %c0_i32_0 : i32, i32
  }
  func.func @transform_6(%arg0: i32) -> (i32, i32) {
    %c0_i32 = arith.constant 0 : i32
    %c0_i32_0 = arith.constant 0 : i32
    return %arg0, %c0_i32 : i32, i32
  }
}

module attributes {stable_mosaic.version = 11 : i64} {
  func.func @_linear_res_ln_kernel(%arg0: i32, %arg1: memref<16x2048xf32, #tpu.memory_space<vmem>>, %arg2: memref<2048x32xf32, #tpu.memory_space<vmem>>, %arg3: memref<1x32xf32, #tpu.memory_space<vmem>>, %arg4: memref<16x32xf32, #tpu.memory_space<vmem>>, %arg5: memref<1x32xf32, #tpu.memory_space<vmem>>, %arg6: memref<1x32xf32, #tpu.memory_space<vmem>>, %arg7: memref<16x32xf32, #tpu.memory_space<vmem>>) attributes {dimension_semantics = [#tpu.dimension_semantics<parallel>], iteration_bounds = array<i64: 1>, scalar_prefetch = 0 : i64, scratch_operands = 0 : i64, tpu.core_type = #tpu.core_type<tc>, window_params = [{transform_indices = @transform_0, window_bounds = array<i64: 16, 2048>}, {pipeline_mode = #tpu.pipeline_mode<synchronous>, transform_indices = @transform_1, window_bounds = array<i64: 2048, 32>}, {pipeline_mode = #tpu.pipeline_mode<synchronous>, transform_indices = @transform_2, window_bounds = array<i64: 1, 32>}, {transform_indices = @transform_3, window_bounds = array<i64: 16, 32>}, {pipeline_mode = #tpu.pipeline_mode<synchronous>, transform_indices = @transform_4, window_bounds = array<i64: 1, 32>}, {pipeline_mode = #tpu.pipeline_mode<synchronous>, transform_indices = @transform_5, window_bounds = array<i64: 1, 32>}, {transform_indices = @transform_6, window_bounds = array<i64: 16, 32>}]} {
    %c0 = arith.constant 0 : index
    %c0_0 = arith.constant 0 : index
    %0 = vector.load %arg1[%c0, %c0_0] : memref<16x2048xf32, #tpu.memory_space<vmem>>, vector<16x2048xf32>
    %1 = arith.truncf %0 : vector<16x2048xf32> to vector<16x2048xbf16>
    %c0_1 = arith.constant 0 : index
    %c0_2 = arith.constant 0 : index
    %2 = vector.load %arg2[%c0_1, %c0_2] : memref<2048x32xf32, #tpu.memory_space<vmem>>, vector<2048x32xf32>
    %3 = arith.truncf %2 : vector<2048x32xf32> to vector<2048x32xbf16>
    %cst = arith.constant dense<0.000000e+00> : vector<16x32xf32>
    %4 = tpu.matmul %1, %3, %cst {dimension_numbers = #tpu.dot_dimension_numbers<[1], [0], [0], [1], [0, 0, 1, 1], [], []>} : vector<16x2048xbf16>, vector<2048x32xbf16>, vector<16x32xf32> -> vector<16x32xf32>
    %c0_3 = arith.constant 0 : index
    %c0_4 = arith.constant 0 : index
    %5 = vector.load %arg3[%c0_3, %c0_4] : memref<1x32xf32, #tpu.memory_space<vmem>>, vector<1x32xf32>
    %6 = vector.broadcast %5 : vector<1x32xf32> to vector<16x32xf32>
    %7 = arith.addf %4, %6 : vector<16x32xf32>
    %c0_5 = arith.constant 0 : index
    %c0_6 = arith.constant 0 : index
    %8 = vector.load %arg4[%c0_5, %c0_6] : memref<16x32xf32, #tpu.memory_space<vmem>>, vector<16x32xf32>
    %9 = arith.addf %7, %8 : vector<16x32xf32>
    %cst_7 = arith.constant dense<0.000000e+00> : vector<16xf32>
    %10 = vector.multi_reduction <add>, %9, %cst_7 [1] : vector<16x32xf32> to vector<16xf32>
    %11 = vector.shape_cast %10 : vector<16xf32> to vector<16x1xf32>
    %cst_8 = arith.constant 3.200000e+01 : f32
    %12 = vector.broadcast %cst_8 : f32 to vector<16x1xf32>
    %13 = arith.divf %11, %12 : vector<16x1xf32>
    %14 = vector.broadcast %13 : vector<16x1xf32> to vector<16x32xf32>
    %15 = arith.subf %9, %14 : vector<16x32xf32>
    %16 = arith.mulf %15, %15 : vector<16x32xf32>
    %cst_9 = arith.constant dense<0.000000e+00> : vector<16xf32>
    %17 = vector.multi_reduction <add>, %16, %cst_9 [1] : vector<16x32xf32> to vector<16xf32>
    %18 = vector.shape_cast %17 : vector<16xf32> to vector<16x1xf32>
    %cst_10 = arith.constant 3.200000e+01 : f32
    %19 = vector.broadcast %cst_10 : f32 to vector<16x1xf32>
    %20 = arith.divf %18, %19 : vector<16x1xf32>
    %cst_11 = arith.constant 9.99999974E-6 : f32
    %21 = vector.broadcast %cst_11 : f32 to vector<16x1xf32>
    %22 = arith.addf %20, %21 : vector<16x1xf32>
    %23 = math.rsqrt %22 : vector<16x1xf32>
    %24 = vector.broadcast %23 : vector<16x1xf32> to vector<16x32xf32>
    %25 = arith.mulf %15, %24 : vector<16x32xf32>
    %c0_12 = arith.constant 0 : index
    %c0_13 = arith.constant 0 : index
    %26 = vector.load %arg5[%c0_12, %c0_13] : memref<1x32xf32, #tpu.memory_space<vmem>>, vector<1x32xf32>
    %27 = vector.broadcast %26 : vector<1x32xf32> to vector<16x32xf32>
    %28 = arith.mulf %25, %27 : vector<16x32xf32>
    %c0_14 = arith.constant 0 : index
    %c0_15 = arith.constant 0 : index
    %29 = vector.load %arg6[%c0_14, %c0_15] : memref<1x32xf32, #tpu.memory_space<vmem>>, vector<1x32xf32>
    %30 = vector.broadcast %29 : vector<1x32xf32> to vector<16x32xf32>
    %31 = arith.addf %28, %30 : vector<16x32xf32>
    %c0_16 = arith.constant 0 : index
    %c0_17 = arith.constant 0 : index
    %32 = vector.load %arg7[%c0_16, %c0_17] : memref<16x32xf32, #tpu.memory_space<vmem>>, vector<16x32xf32>
    tpu.vector_store %arg7[%c0_16, %c0_17], %31 {strides = array<i32>} : memref<16x32xf32, #tpu.memory_space<vmem>>, vector<16x32xf32>,
    return
  }
  func.func @transform_0(%arg0: i32) -> (i32, i32) {
    %c0_i32 = arith.constant 0 : i32
    %c0_i32_0 = arith.constant 0 : i32
    return %arg0, %c0_i32 : i32, i32
  }
  func.func @transform_1(%arg0: i32) -> (i32, i32) {
    %c0_i32 = arith.constant 0 : i32
    %c0_i32_0 = arith.constant 0 : i32
    %c0_i32_1 = arith.constant 0 : i32
    return %c0_i32, %c0_i32_0 : i32, i32
  }
  func.func @transform_2(%arg0: i32) -> (i32, i32) {
    %c0_i32 = arith.constant 0 : i32
    %c0_i32_0 = arith.constant 0 : i32
    %c0_i32_1 = arith.constant 0 : i32
    return %c0_i32, %c0_i32_0 : i32, i32
  }
  func.func @transform_3(%arg0: i32) -> (i32, i32) {
    %c0_i32 = arith.constant 0 : i32
    %c0_i32_0 = arith.constant 0 : i32
    return %arg0, %c0_i32 : i32, i32
  }
  func.func @transform_4(%arg0: i32) -> (i32, i32) {
    %c0_i32 = arith.constant 0 : i32
    %c0_i32_0 = arith.constant 0 : i32
    %c0_i32_1 = arith.constant 0 : i32
    return %c0_i32, %c0_i32_0 : i32, i32
  }
  func.func @transform_5(%arg0: i32) -> (i32, i32) {
    %c0_i32 = arith.constant 0 : i32
    %c0_i32_0 = arith.constant 0 : i32
    %c0_i32_1 = arith.constant 0 : i32
    return %c0_i32, %c0_i32_0 : i32, i32
  }
  func.func @transform_6(%arg0: i32) -> (i32, i32) {
    %c0_i32 = arith.constant 0 : i32
    %c0_i32_0 = arith.constant 0 : i32
    return %arg0, %c0_i32 : i32, i32
  }
}

module attributes {stable_mosaic.version = 11 : i64} {
  func.func @_linear_res_ln_kernel(%arg0: i32, %arg1: memref<16x2048xf32, #tpu.memory_space<vmem>>, %arg2: memref<2048x32xf32, #tpu.memory_space<vmem>>, %arg3: memref<1x32xf32, #tpu.memory_space<vmem>>, %arg4: memref<16x32xf32, #tpu.memory_space<vmem>>, %arg5: memref<1x32xf32, #tpu.memory_space<vmem>>, %arg6: memref<1x32xf32, #tpu.memory_space<vmem>>, %arg7: memref<16x32xf32, #tpu.memory_space<vmem>>) attributes {dimension_semantics = [#tpu.dimension_semantics<parallel>], iteration_bounds = array<i64: 1>, scalar_prefetch = 0 : i64, scratch_operands = 0 : i64, tpu.core_type = #tpu.core_type<tc>, window_params = [{transform_indices = @transform_0, window_bounds = array<i64: 16, 2048>}, {pipeline_mode = #tpu.pipeline_mode<synchronous>, transform_indices = @transform_1, window_bounds = array<i64: 2048, 32>}, {pipeline_mode = #tpu.pipeline_mode<synchronous>, transform_indices = @transform_2, window_bounds = array<i64: 1, 32>}, {transform_indices = @transform_3, window_bounds = array<i64: 16, 32>}, {pipeline_mode = #tpu.pipeline_mode<synchronous>, transform_indices = @transform_4, window_bounds = array<i64: 1, 32>}, {pipeline_mode = #tpu.pipeline_mode<synchronous>, transform_indices = @transform_5, window_bounds = array<i64: 1, 32>}, {transform_indices = @transform_6, window_bounds = array<i64: 16, 32>}]} {
    %c0 = arith.constant 0 : index
    %c0_0 = arith.constant 0 : index
    %0 = vector.load %arg1[%c0, %c0_0] : memref<16x2048xf32, #tpu.memory_space<vmem>>, vector<16x2048xf32>
    %1 = arith.truncf %0 : vector<16x2048xf32> to vector<16x2048xbf16>
    %c0_1 = arith.constant 0 : index
    %c0_2 = arith.constant 0 : index
    %2 = vector.load %arg2[%c0_1, %c0_2] : memref<2048x32xf32, #tpu.memory_space<vmem>>, vector<2048x32xf32>
    %3 = arith.truncf %2 : vector<2048x32xf32> to vector<2048x32xbf16>
    %cst = arith.constant dense<0.000000e+00> : vector<16x32xf32>
    %4 = tpu.matmul %1, %3, %cst {dimension_numbers = #tpu.dot_dimension_numbers<[1], [0], [0], [1], [0, 0, 1, 1], [], []>} : vector<16x2048xbf16>, vector<2048x32xbf16>, vector<16x32xf32> -> vector<16x32xf32>
    %c0_3 = arith.constant 0 : index
    %c0_4 = arith.constant 0 : index
    %5 = vector.load %arg3[%c0_3, %c0_4] : memref<1x32xf32, #tpu.memory_space<vmem>>, vector<1x32xf32>
    %6 = vector.broadcast %5 : vector<1x32xf32> to vector<16x32xf32>
    %7 = arith.addf %4, %6 : vector<16x32xf32>
    %c0_5 = arith.constant 0 : index
    %c0_6 = arith.constant 0 : index
    %8 = vector.load %arg4[%c0_5, %c0_6] : memref<16x32xf32, #tpu.memory_space<vmem>>, vector<16x32xf32>
    %9 = arith.addf %7, %8 : vector<16x32xf32>
    %cst_7 = arith.constant dense<0.000000e+00> : vector<16xf32>
    %10 = vector.multi_reduction <add>, %9, %cst_7 [1] : vector<16x32xf32> to vector<16xf32>
    %11 = vector.shape_cast %10 : vector<16xf32> to vector<16x1xf32>
    %cst_8 = arith.constant 3.200000e+01 : f32
    %12 = vector.broadcast %cst_8 : f32 to vector<16x1xf32>
    %13 = arith.divf %11, %12 : vector<16x1xf32>
    %14 = vector.broadcast %13 : vector<16x1xf32> to vector<16x32xf32>
    %15 = arith.subf %9, %14 : vector<16x32xf32>
    %16 = arith.mulf %15, %15 : vector<16x32xf32>
    %cst_9 = arith.constant dense<0.000000e+00> : vector<16xf32>
    %17 = vector.multi_reduction <add>, %16, %cst_9 [1] : vector<16x32xf32> to vector<16xf32>
    %18 = vector.shape_cast %17 : vector<16xf32> to vector<16x1xf32>
    %cst_10 = arith.constant 3.200000e+01 : f32
    %19 = vector.broadcast %cst_10 : f32 to vector<16x1xf32>
    %20 = arith.divf %18, %19 : vector<16x1xf32>
    %cst_11 = arith.constant 9.99999974E-6 : f32
    %21 = vector.broadcast %cst_11 : f32 to vector<16x1xf32>
    %22 = arith.addf %20, %21 : vector<16x1xf32>
    %23 = math.rsqrt %22 : vector<16x1xf32>
    %24 = vector.broadcast %23 : vector<16x1xf32> to vector<16x32xf32>
    %25 = arith.mulf %15, %24 : vector<16x32xf32>
    %c0_12 = arith.constant 0 : index
    %c0_13 = arith.constant 0 : index
    %26 = vector.load %arg5[%c0_12, %c0_13] : memref<1x32xf32, #tpu.memory_space<vmem>>, vector<1x32xf32>
    %27 = vector.broadcast %26 : vector<1x32xf32> to vector<16x32xf32>
    %28 = arith.mulf %25, %27 : vector<16x32xf32>
    %c0_14 = arith.constant 0 : index
    %c0_15 = arith.constant 0 : index
    %29 = vector.load %arg6[%c0_14, %c0_15] : memref<1x32xf32, #tpu.memory_space<vmem>>, vector<1x32xf32>
    %30 = vector.broadcast %29 : vector<1x32xf32> to vector<16x32xf32>
    %31 = arith.addf %28, %30 : vector<16x32xf32>
    %c0_16 = arith.constant 0 : index
    %c0_17 = arith.constant 0 : index
    %32 = vector.load %arg7[%c0_16, %c0_17] : memref<16x32xf32, #tpu.memory_space<vmem>>, vector<16x32xf32>
    tpu.vector_store %arg7[%c0_16, %c0_17], %31 {strides = array<i32>} : memref<16x32xf32, #tpu.memory_space<vmem>>, vector<16x32xf32>,
    return
  }
  func.func @transform_0(%arg0: i32) -> (i32, i32) {
    %c0_i32 = arith.constant 0 : i32
    %c0_i32_0 = arith.constant 0 : i32
    return %arg0, %c0_i32 : i32, i32
  }
  func.func @transform_1(%arg0: i32) -> (i32, i32) {
    %c0_i32 = arith.constant 0 : i32
    %c0_i32_0 = arith.constant 0 : i32
    %c0_i32_1 = arith.constant 0 : i32
    return %c0_i32, %c0_i32_0 : i32, i32
  }
  func.func @transform_2(%arg0: i32) -> (i32, i32) {
    %c0_i32 = arith.constant 0 : i32
    %c0_i32_0 = arith.constant 0 : i32
    %c0_i32_1 = arith.constant 0 : i32
    return %c0_i32, %c0_i32_0 : i32, i32
  }
  func.func @transform_3(%arg0: i32) -> (i32, i32) {
    %c0_i32 = arith.constant 0 : i32
    %c0_i32_0 = arith.constant 0 : i32
    return %arg0, %c0_i32 : i32, i32
  }
  func.func @transform_4(%arg0: i32) -> (i32, i32) {
    %c0_i32 = arith.constant 0 : i32
    %c0_i32_0 = arith.constant 0 : i32
    %c0_i32_1 = arith.constant 0 : i32
    return %c0_i32, %c0_i32_0 : i32, i32
  }
  func.func @transform_5(%arg0: i32) -> (i32, i32) {
    %c0_i32 = arith.constant 0 : i32
    %c0_i32_0 = arith.constant 0 : i32
    %c0_i32_1 = arith.constant 0 : i32
    return %c0_i32, %c0_i32_0 : i32, i32
  }
  func.func @transform_6(%arg0: i32) -> (i32, i32) {
    %c0_i32 = arith.constant 0 : i32
    %c0_i32_0 = arith.constant 0 : i32
    return %arg0, %c0_i32 : i32, i32
  }
}

</mosaic_0001>

<llo_original>
// kernel: patch_mixer_forward.13
$region0: #{patch_mixer_forward.13}
  #allocation0 [shape = 'u32[]', space=smem, size = 0x4, offset = 0x4, fixed_abs, tag = 'smem constant byte address 0x4 - core index']
  #allocation1 [shape = 'u32[144,128]{1,0:T(1,128)}', space=vmem, size = 0x12000, scoped, tag = 'internal scratch']
  %s0 = inlined_call_operand.vmem [shape: f32[16,32], index: 0, kind: input, shape index: {}]
  %s1 = inlined_call_operand.vmem [shape: f32[32,2048], index: 1, kind: input, shape index: {}]
  %s2 = inlined_call_operand.vmem [shape: f32[1,2048], index: 2, kind: input, shape index: {}]
  %s3 = inlined_call_operand.vmem [shape: f32[16,2048], index: 3, kind: output, shape index: {}]
  %s4 = sld [smem:[#allocation0]]
  $region87: #{patch_mixer_forward.13} parent=0
    _
  %s6 = ssub.s32 1, %s4
  %s7 = scalar_select 0, %s6, %s4
  $region1: #{patch_mixer_forward.13} parent=0
    #allocation2 [shape = 'u8[131072]{0}', space=vmem, size = 0x20000, scoped, tag = 'input window, operand 1']
    #allocation3 [shape = 'u8[65536]{0}', space=vmem, size = 0x10000, scoped, tag = 'output window, operand 0']
    loop: start=0, step=1, limit=6
    $region2: #{patch_mixer_forward.13} parent=1 // loop_pre_header
      _
    $region3: #{patch_mixer_forward.13} parent=1 // loop_header
      %s9 = sphi 0, %s13
      %p10 = scmp.ge.s32.totalorder %s9, 6
      %s16 = sphi 0, %s28
      %s17 = sphi 0, %s24
      %s18 = sphi 0, %s16
      %s19 = sphi 0, %s17
      %s20 = sphi 0, %s18
      %s21 = sphi 0, %s19
      %s31 = sphi 0, %s33
      %s34 = sphi 0, %s31
      %s35 = sphi 0, %s34
      %s51 = sphi 0, %s35
      %s57 = sphi 0, %s59
      %s60 = sphi 0, %s57
      %s61 = sphi 0, %s60
      %s77 = sphi 0, %s61
      %s83 = sphi 0, %s85
      %s86 = sphi 0, %s83
      %s87 = sphi 0, %s86
      %s103 = sphi 0, %s87
      %s111 = sphi 0, %s113
      %s114 = sphi 0, %s111
      %s115 = sphi 0, %s114
      %s131 = sphi 0, %s115
    $region4: #{patch_mixer_forward.13} parent=1 // loop_header_branch
      %12 = sbr.rel (%p10) target = $region8
    $region5: #{patch_mixer_forward.13} parent=1 // loop_body
      %s14 = ssub.s32 %s9, 1
      %s15 = ssub.s32 %s9, 2
      %s22 = sadd.s32 1, %s17
      %p23 = scmp.ge.s32.totalorder %s22, 4
      %s24 = scalar_select %p23, 0, %s22
      %s25 = sadd.s32 1, %s16
      %s26 = scalar_select %p23, %s25, %s16
      %p27 = scmp.ge.s32.totalorder %s26, 1
      %s28 = scalar_select %p27, 0, %s26
      %s29 = ssub.s32 %s16, %s28
      %p30 = scmp.eq.s32.totalorder %s29, 0
      %s32 = sadd.s32 %s31, 1
      %s33 = scalar_select %p30, %s31, %s32
      %p36 = pneg %p30
      %p37 = scmp.eq.s32.totalorder %s9, 3
      %p38 = por %p36, %p37
      %p39 = scmp.ne.s32.totalorder %s31, %s34
      %p40 = scmp.eq.s32.totalorder %s9, 0
      %p41 = por %p39, %p40
      %p42 = scmp.ne.s32.totalorder %s31, %s34
      %p43 = scmp.eq.s32.totalorder %s14, 3
      %p44 = por %p42, %p43
      %p45 = scmp.ne.s32.totalorder %s34, %s35
      %p46 = scmp.eq.s32.totalorder %s14, 0
      %p47 = por %p45, %p46
      %p48 = scmp.ne.s32.totalorder %s34, %s35
      %p49 = scmp.eq.s32.totalorder %s15, 3
      %p50 = por %p48, %p49
      %p52 = scmp.ne.s32.totalorder %s35, %s51
      %p53 = scmp.eq.s32.totalorder %s15, 0
      %p54 = por %p52, %p53
      %s55 = ssub.s32 %s17, %s24
      %p56 = scmp.eq.s32.totalorder %s55, 0
      %s58 = sadd.s32 %s57, 1
      %s59 = scalar_select %p56, %s57, %s58
      %p62 = pneg %p56
      %p63 = scmp.eq.s32.totalorder %s9, 3
      %p64 = por %p62, %p63
      %p65 = scmp.ne.s32.totalorder %s57, %s60
      %p66 = scmp.eq.s32.totalorder %s9, 0
      %p67 = por %p65, %p66
      %p68 = scmp.ne.s32.totalorder %s57, %s60
      %p69 = scmp.eq.s32.totalorder %s14, 3
      %p70 = por %p68, %p69
      %p71 = scmp.ne.s32.totalorder %s60, %s61
      %p72 = scmp.eq.s32.totalorder %s14, 0
      %p73 = por %p71, %p72
      %p74 = scmp.ne.s32.totalorder %s60, %s61
      %p75 = scmp.eq.s32.totalorder %s15, 3
      %p76 = por %p74, %p75
      %p78 = scmp.ne.s32.totalorder %s61, %s77
      %p79 = scmp.eq.s32.totalorder %s15, 0
      %p80 = por %p78, %p79
      %s81 = ssub.s32 %s17, %s24
      %p82 = scmp.eq.s32.totalorder %s81, 0
      %s84 = sadd.s32 %s83, 1
      %s85 = scalar_select %p82, %s83, %s84
      %p88 = pneg %p82
      %p89 = scmp.eq.s32.totalorder %s9, 3
      %p90 = por %p88, %p89
      %p91 = scmp.ne.s32.totalorder %s83, %s86
      %p92 = scmp.eq.s32.totalorder %s9, 0
      %p93 = por %p91, %p92
      %p94 = scmp.ne.s32.totalorder %s83, %s86
      %p95 = scmp.eq.s32.totalorder %s14, 3
      %p96 = por %p94, %p95
      %p97 = scmp.ne.s32.totalorder %s86, %s87
      %p98 = scmp.eq.s32.totalorder %s14, 0
      %p99 = por %p97, %p98
      %p100 = scmp.ne.s32.totalorder %s86, %s87
      %p101 = scmp.eq.s32.totalorder %s15, 3
      %p102 = por %p100, %p101
      %p104 = scmp.ne.s32.totalorder %s87, %s103
      %p105 = scmp.eq.s32.totalorder %s15, 0
      %p106 = por %p104, %p105
      %s107 = ssub.s32 %s16, %s28
      %s108 = ssub.s32 %s17, %s24
      %s109 = sor.u32 %s107, %s108
      %p110 = scmp.eq.s32.totalorder %s109, 0
      %s112 = sadd.s32 %s111, 1
      %s113 = scalar_select %p110, %s111, %s112
      %p116 = pneg %p110
      %p117 = scmp.eq.s32.totalorder %s9, 3
      %p118 = por %p116, %p117
      %p119 = scmp.ne.s32.totalorder %s111, %s114
      %p120 = scmp.eq.s32.totalorder %s9, 0
      %p121 = por %p119, %p120
      %p122 = scmp.ne.s32.totalorder %s111, %s114
      %p123 = scmp.eq.s32.totalorder %s14, 3
      %p124 = por %p122, %p123
      %p125 = scmp.ne.s32.totalorder %s114, %s115
      %p126 = scmp.eq.s32.totalorder %s14, 0
      %p127 = por %p125, %p126
      %p128 = scmp.ne.s32.totalorder %s114, %s115
      %p129 = scmp.eq.s32.totalorder %s15, 3
      %p130 = por %p128, %p129
      %p132 = scmp.ne.s32.totalorder %s115, %s131
      %p133 = scmp.eq.s32.totalorder %s15, 0
      %p134 = por %p132, %p133
      %p135 = scmp.le.s32.totalorder 1, %s9
      %p136 = scmp.lt.s32.totalorder %s9, 5
      %p137 = pnand %p135, %p136
      %p138 = pneg %p137
      // Predicated region
      $region9: #{patch_mixer_forward.13} parent=5 // pred_check
        _
      $region10: #{patch_mixer_forward.13} parent=5 // pred_check_branch
        %140 = sbr.rel (%p137) target = $region12
      $region11: #{patch_mixer_forward.13} parent=5 // pred_region
        %s141 = ssub.s32 %s9, 1
        // Predicated region
        $region13: #{patch_mixer_forward.13} parent=11 // pred_check
          %p142 = pneg %p47
        $region14: #{patch_mixer_forward.13} parent=11 // pred_check_branch
          %144 = sbr.rel (%p142) target = $region16
        $region15: #{patch_mixer_forward.13} parent=11 // pred_region
          %s145 = smul.u32 2, %s18
          %p146 = scmp.lt.s32.totalorder %s145, 1
          %s147 = scalar_select %p146, %s145, 1
          %s148 = smul.addr %s147, 8
          %s149 = scalar_lea.vmem %s0, %s148
          %s150 = smul.u32 2, %s18
        $region16: #{patch_mixer_forward.13} parent=11 // pred_fallthru
          _
      $region12: #{patch_mixer_forward.13} parent=5 // pred_fallthru
        _
      %p151 = scmp.lt.s32.totalorder %s9, 4
      // Predicated region
      $region17: #{patch_mixer_forward.13} parent=5 // pred_check
        %p152 = pneg %p151
      $region18: #{patch_mixer_forward.13} parent=5 // pred_check_branch
        %154 = sbr.rel (%p152) target = $region20
      $region19: #{patch_mixer_forward.13} parent=5 // pred_region
        // Predicated region
        $region21: #{patch_mixer_forward.13} parent=19 // pred_check
          %p155 = pneg %p67
        $region22: #{patch_mixer_forward.13} parent=19 // pred_check_branch
          %157 = sbr.rel (%p155) target = $region24
        $region23: #{patch_mixer_forward.13} parent=19 // pred_region
          %s158 = sand.u32 %s57, 1
          %s159 = sand.u32 %s57, 1
          %s160 = smul.addr %s159, 128
          %s161 = scalar_lea.vmem [#allocation2], %s160
          %s162 = smul.u32 4, %s17
          %s163 = smul.addr %s162, 8
          %s164 = scalar_lea.vmem %s1, %s163
          // Predicated region
          $region25: #{patch_mixer_forward.13} parent=23 // pred_check
            _
          $region26: #{patch_mixer_forward.13} parent=23 // pred_check_branch
            %166 = sbr.rel (0) target = $region28
          $region27: #{patch_mixer_forward.13} parent=23 // pred_region
            // Predicated region
            $region29: #{patch_mixer_forward.13} parent=27 // pred_check
              _
            $region30: #{patch_mixer_forward.13} parent=27 // pred_check_branch
              %168 = sbr.rel (0) target = $region32
            $region31: #{patch_mixer_forward.13} parent=27 // pred_region
              loop: start=0, step=1, limit=1
              $region33: #{patch_mixer_forward.13} parent=31 // loop_pre_header
                _
              $region34: #{patch_mixer_forward.13} parent=31 // loop_header
                %s170 = sphi 0, %s174
                %p171 = scmp.ge.s32.totalorder %s170, 1
                %s175 = sphi %s164, %s164
                %s176 = sphi %s161, %s161
              $region35: #{patch_mixer_forward.13} parent=31 // loop_header_branch
                %173 = sbr.rel (%p171) target = $region39
              $region36: #{patch_mixer_forward.13} parent=31 // loop_body
                %v177 = vld [vmem:[%s175] sm:$0xff]
                %178 = vst [vmem:[%s176] sm:$0xff] %v177
                %v179 = vld [vmem:[%s175 + $0x8] sm:$0xff]
                %180 = vst [vmem:[%s176 + $0x8] sm:$0xff] %v179
                %v181 = vld [vmem:[%s175 + $0x10] sm:$0xff]
                %182 = vst [vmem:[%s176 + $0x10] sm:$0xff] %v181
                %v183 = vld [vmem:[%s175 + $0x18] sm:$0xff]
                %184 = vst [vmem:[%s176 + $0x18] sm:$0xff] %v183
                %v185 = vld [vmem:[%s175 + $0x80] sm:$0xff]
                %186 = vst [vmem:[%s176 + $0x20] sm:$0xff] %v185
                %v187 = vld [vmem:[%s175 + $0x88] sm:$0xff]
                %188 = vst [vmem:[%s176 + $0x28] sm:$0xff] %v187
                %v189 = vld [vmem:[%s175 + $0x90] sm:$0xff]
                %190 = vst [vmem:[%s176 + $0x30] sm:$0xff] %v189
                %v191 = vld [vmem:[%s175 + $0x98] sm:$0xff]
                %192 = vst [vmem:[%s176 + $0x38] sm:$0xff] %v191
                %v193 = vld [vmem:[%s175 + $0x100] sm:$0xff]
                %194 = vst [vmem:[%s176 + $0x40] sm:$0xff] %v193
                %v195 = vld [vmem:[%s175 + $0x108] sm:$0xff]
                %196 = vst [vmem:[%s176 + $0x48] sm:$0xff] %v195
                %v197 = vld [vmem:[%s175 + $0x110] sm:$0xff]
                %198 = vst [vmem:[%s176 + $0x50] sm:$0xff] %v197
                %v199 = vld [vmem:[%s175 + $0x118] sm:$0xff]
                %200 = vst [vmem:[%s176 + $0x58] sm:$0xff] %v199
                %v201 = vld [vmem:[%s175 + $0x180] sm:$0xff]
                %202 = vst [vmem:[%s176 + $0x60] sm:$0xff] %v201
                %v203 = vld [vmem:[%s175 + $0x188] sm:$0xff]
                %204 = vst [vmem:[%s176 + $0x68] sm:$0xff] %v203
                %v205 = vld [vmem:[%s175 + $0x190] sm:$0xff]
                %206 = vst [vmem:[%s176 + $0x70] sm:$0xff] %v205
                %v207 = vld [vmem:[%s175 + $0x198] sm:$0xff]
                %208 = vst [vmem:[%s176 + $0x78] sm:$0xff] %v207
              $region37: #{patch_mixer_forward.13} parent=31 // loop_footer
                %s174 = sadd.s32 1, %s170
              $region38: #{patch_mixer_forward.13} parent=31 // loop_footer_branch
                %169 = sbr.rel target = $region34
              $region39: #{patch_mixer_forward.13} parent=31 // loop_exit
                _
            $region32: #{patch_mixer_forward.13} parent=27 // pred_fallthru
              _
            // Predicated region
            $region40: #{patch_mixer_forward.13} parent=27 // pred_check
              _
            $region41: #{patch_mixer_forward.13} parent=27 // pred_check_branch
              %210 = sbr.rel target = $region43
            $region42: #{patch_mixer_forward.13} parent=27 // pred_region
              _
            $region43: #{patch_mixer_forward.13} parent=27 // pred_fallthru
              _
          $region28: #{patch_mixer_forward.13} parent=23 // pred_fallthru
            _
          %211 = vnop
        $region24: #{patch_mixer_forward.13} parent=19 // pred_fallthru
          _
        // Predicated region
        $region44: #{patch_mixer_forward.13} parent=19 // pred_check
          %p212 = pneg %p93
        $region45: #{patch_mixer_forward.13} parent=19 // pred_check_branch
          %214 = sbr.rel (%p212) target = $region47
        $region46: #{patch_mixer_forward.13} parent=19 // pred_region
          %s215 = smul.u32 4, %s17
          %p216 = scmp.lt.s32.totalorder %s215, 15
          %s217 = scalar_select %p216, %s215, 15
          %s218 = scalar_lea.vmem %s2, %s217
          %s219 = smul.u32 4, %s17
        $region47: #{patch_mixer_forward.13} parent=19 // pred_fallthru
          _
      $region20: #{patch_mixer_forward.13} parent=5 // pred_fallthru
        _
      %p220 = scmp.le.s32.totalorder 1, %s9
      %p221 = scmp.lt.s32.totalorder %s9, 5
      %p222 = pnand %p220, %p221
      %p223 = pneg %p222
      // Predicated region
      $region48: #{patch_mixer_forward.13} parent=5 // pred_check
        _
      $region49: #{patch_mixer_forward.13} parent=5 // pred_check_branch
        %225 = sbr.rel (%p222) target = $region51
      $region50: #{patch_mixer_forward.13} parent=5 // pred_region
        %s226 = ssub.s32 %s9, 1
        %s227 = sand.u32 %s60, 1
        %s228 = sand.u32 %s60, 1
        %s229 = smul.addr %s228, 128
        %s230 = scalar_lea.vmem [#allocation2], %s229
        // Predicated region
        $region52: #{patch_mixer_forward.13} parent=50 // pred_check
          %p231 = pneg %p73
        $region53: #{patch_mixer_forward.13} parent=50 // pred_check_branch
          %233 = sbr.rel (%p231) target = $region55
        $region54: #{patch_mixer_forward.13} parent=50 // pred_region
          _
        $region55: #{patch_mixer_forward.13} parent=50 // pred_fallthru
          _
        %s234 = smul.u32 2, %s18
        %p235 = scmp.lt.s32.totalorder %s234, 1
        %s236 = scalar_select %p235, %s234, 1
        %s237 = smul.addr %s236, 8
        %s238 = scalar_lea.vmem %s0, %s237
        %p239 = pneg %p47
        %p240 = pneg %p44
        %s241 = sand.u32 %s60, 1
        %s242 = sand.u32 %s60, 1
        %s243 = smul.addr %s242, 128
        %s244 = scalar_lea.vmem [#allocation2], %s243
        %p245 = pneg %p73
        %p246 = pneg %p70
        %s247 = smul.u32 4, %s19
        %p248 = scmp.lt.s32.totalorder %s247, 15
        %s249 = scalar_select %p248, %s247, 15
        %s250 = scalar_lea.vmem %s2, %s249
        %p251 = pneg %p99
        %p252 = pneg %p96
        %p253 = pneg %p127
        %p254 = pneg %p124
        %s255 = sand.u32 %s114, 1
        %s256 = sand.u32 %s114, 1
        %s257 = smul.addr %s256, 64
        %s258 = scalar_lea.vmem [#allocation3], %s257
        %s259 = smul.u32 2, %s18
        %p260 = scmp.lt.s32.totalorder %s259, 1
        %s261 = scalar_select %p260, %s259, 1
        %s262 = smul.addr %s261, 8
        %s263 = scalar_lea.vmem %s0, %s262
        %s264 = smul.u32 2, %s18
        %s265 = smul.u32 4, %s19
        %s266 = smul.u32 4, %s19
        %p267 = scmp.lt.s32.totalorder %s266, 15
        %s268 = scalar_select %p267, %s266, 15
        %s269 = scalar_lea.vmem %s2, %s268
        %s270 = smul.u32 4, %s19
        %s271 = smul.u32 2, %s18
        %s272 = smul.u32 4, %s19
        %v274 = vld [vmem:[%s263] sm:$0xff]
        %v275 = vld [vmem:[%s263 + $0x8] sm:$0xff]
        %v276 = vpack.c.bf16 %v275, %v274
        %v277 = vld [vmem:[%s230] sm:$0xff]
        %v278 = vld [vmem:[%s230 + $0x8] sm:$0xff]
        %v279 = vld [vmem:[%s230 + $0x10] sm:$0xff]
        %v280 = vld [vmem:[%s230 + $0x18] sm:$0xff]
        %v281 = vld [vmem:[%s230 + $0x20] sm:$0xff]
        %v282 = vld [vmem:[%s230 + $0x28] sm:$0xff]
        %v283 = vld [vmem:[%s230 + $0x30] sm:$0xff]
        %v284 = vld [vmem:[%s230 + $0x38] sm:$0xff]
        %v285 = vld [vmem:[%s230 + $0x40] sm:$0xff]
        %v286 = vld [vmem:[%s230 + $0x48] sm:$0xff]
        %v287 = vld [vmem:[%s230 + $0x50] sm:$0xff]
        %v288 = vld [vmem:[%s230 + $0x58] sm:$0xff]
        %v289 = vld [vmem:[%s230 + $0x60] sm:$0xff]
        %v290 = vld [vmem:[%s230 + $0x68] sm:$0xff]
        %v291 = vld [vmem:[%s230 + $0x70] sm:$0xff]
        %v292 = vld [vmem:[%s230 + $0x78] sm:$0xff]
        %v293 = vpack.c.bf16 %v281, %v277
        %v294 = vpack.c.bf16 %v282, %v278
        %v295 = vpack.c.bf16 %v283, %v279
        %v296 = vpack.c.bf16 %v284, %v280
        %v297 = vpack.c.bf16 %v289, %v285
        %v298 = vpack.c.bf16 %v290, %v286
        %v299 = vpack.c.bf16 %v291, %v287
        %v300 = vpack.c.bf16 %v292, %v288
        %v301 = vld [vmem:[%s269] sm:$0xf]
        %v303 = vlaneseq
        %v304 = vshrl.u32 %v303, 7
        %v305 = vsub.s32 0, %v304
        %v306 = vrot.slane %v301, %v305
        %v307 = vlaneseq
        %v308 = vshrl.u32 %v307, 7
        %v309 = vsub.s32 1, %v308
        %v310 = vrot.slane %v301, %v309
        %v311 = vlaneseq
        %v312 = vshrl.u32 %v311, 7
        %v313 = vsub.s32 2, %v312
        %v314 = vrot.slane %v301, %v313
        %v315 = vlaneseq
        %v316 = vshrl.u32 %v315, 7
        %v317 = vsub.s32 3, %v316
        %v318 = vrot.slane %v301, %v317
        %vm323 = vcmask 261120
        %v325 = vsel %vm323, %v276, 0
        %327 = vmatprep.subr.bf16.mxu0 0
        %328 = vmatpush1.bf16.msra.mxu0 0
        %329 = vmatprep.subr.bf16.mxu0 0
        %330 = vmatpush1.bf16.msra.mxu0 0
        %331 = vmatprep.subr.bf16.mxu0 0
        %332 = vmatpush1.bf16.msra.mxu0 0
        %333 = vmatprep.subr.bf16.mxu0 0
        %334 = vmatpush1.bf16.msra.mxu0 0
        %335 = vmatprep.subr.bf16.mxu0 0
        %336 = vmatpush1.bf16.msra.mxu0 0
        %337 = vmatprep.subr.bf16.mxu0 0
        %338 = vmatpush1.bf16.msra.mxu0 0
        %339 = vmatprep.subr.bf16.mxu0 %v298
        %340 = vmatpush1.bf16.msra.mxu0 %v297
        %341 = vmatprep.subr.bf16.mxu0 %v294
        %342 = vmatpush1.bf16.msra.mxu0 %v293
        %343 = vmatprep.subr.bf16.mxu0 0
        %344 = vmatpush2.bf16.msra.mxu0 0
        %345 = vmatprep.subr.bf16.mxu0 0
        %346 = vmatpush2.bf16.msra.mxu0 0
        %347 = vmatprep.subr.bf16.mxu0 0
        %348 = vmatpush2.bf16.msra.mxu0 0
        %349 = vmatprep.subr.bf16.mxu0 0
        %350 = vmatpush2.bf16.msra.mxu0 0
        %351 = vmatprep.subr.bf16.mxu0 0
        %352 = vmatpush2.bf16.msra.mxu0 0
        %353 = vmatprep.subr.bf16.mxu0 0
        %354 = vmatpush2.bf16.msra.mxu0 0
        %355 = vmatprep.subr.bf16.mxu0 0
        %356 = vmatpush2.bf16.msra.mxu0 0
        %357 = vmatprep.subr.bf16.mxu0 0
        %358 = vmatpush2.bf16.msra.mxu0 0
        %359 = vmatprep.mubr.bf16.mxu0 0
        %360 = vmatmul.mubr.bf16.gmra.mxu0 %v325
        %v361 = vpop.f32.mrf.mxu0
        %v362 = vadd.f32 %v306, %v361
        %v363 = vpop.f32.mrf.mxu0
        %v364 = vadd.f32 %v310, %v363
        %v365 = vpop.f32.mrf.mxu0
        %v366 = vadd.f32 %v306, %v365
        %v367 = vpop.f32.mrf.mxu0
        %v368 = vadd.f32 %v310, %v367
        %369 = vdwg.mxu0
        %370 = vmatprep.subr.bf16.mxu0 0
        %371 = vmatpush1.bf16.msra.mxu0 0
        %372 = vmatprep.subr.bf16.mxu0 0
        %373 = vmatpush1.bf16.msra.mxu0 0
        %374 = vmatprep.subr.bf16.mxu0 0
        %375 = vmatpush1.bf16.msra.mxu0 0
        %376 = vmatprep.subr.bf16.mxu0 0
        %377 = vmatpush1.bf16.msra.mxu0 0
        %378 = vmatprep.subr.bf16.mxu0 0
        %379 = vmatpush1.bf16.msra.mxu0 0
        %380 = vmatprep.subr.bf16.mxu0 0
        %381 = vmatpush1.bf16.msra.mxu0 0
        %382 = vmatprep.subr.bf16.mxu0 %v300
        %383 = vmatpush1.bf16.msra.mxu0 %v299
        %384 = vmatprep.subr.bf16.mxu0 %v296
        %385 = vmatpush1.bf16.msra.mxu0 %v295
        %386 = vmatprep.subr.bf16.mxu0 0
        %387 = vmatpush2.bf16.msra.mxu0 0
        %388 = vmatprep.subr.bf16.mxu0 0
        %389 = vmatpush2.bf16.msra.mxu0 0
        %390 = vmatprep.subr.bf16.mxu0 0
        %391 = vmatpush2.bf16.msra.mxu0 0
        %392 = vmatprep.subr.bf16.mxu0 0
        %393 = vmatpush2.bf16.msra.mxu0 0
        %394 = vmatprep.subr.bf16.mxu0 0
        %395 = vmatpush2.bf16.msra.mxu0 0
        %396 = vmatprep.subr.bf16.mxu0 0
        %397 = vmatpush2.bf16.msra.mxu0 0
        %398 = vmatprep.subr.bf16.mxu0 0
        %399 = vmatpush2.bf16.msra.mxu0 0
        %400 = vmatprep.subr.bf16.mxu0 0
        %401 = vmatpush2.bf16.msra.mxu0 0
        %402 = vmatprep.mubr.bf16.mxu0 0
        %403 = vmatmul.mubr.bf16.gmra.mxu0 %v325
        %v404 = vpop.f32.mrf.mxu0
        %v405 = vadd.f32 %v314, %v404
        %v406 = vpop.f32.mrf.mxu0
        %v407 = vadd.f32 %v318, %v406
        %v408 = vpop.f32.mrf.mxu0
        %v409 = vadd.f32 %v314, %v408
        %v410 = vpop.f32.mrf.mxu0
        %v411 = vadd.f32 %v318, %v410
        %412 = vdwg.mxu0
        %v413 = vmax.f32 %v362, 0.0
        %v414 = vmax.f32 %v364, 0.0
        %v415 = vmax.f32 %v405, 0.0
        %v416 = vmax.f32 %v407, 0.0
        %v417 = vmax.f32 %v366, 0.0
        %v418 = vmax.f32 %v368, 0.0
        %v419 = vmax.f32 %v409, 0.0
        %v420 = vmax.f32 %v411, 0.0
        %421 = vst [vmem:[%s258] sm:$0xff] %v413
        %422 = vst [vmem:[%s258 + $0x8] sm:$0xff] %v414
        %423 = vst [vmem:[%s258 + $0x10] sm:$0xff] %v415
        %424 = vst [vmem:[%s258 + $0x18] sm:$0xff] %v416
        %425 = vst [vmem:[%s258 + $0x20] sm:$0xff] %v417
        %426 = vst [vmem:[%s258 + $0x28] sm:$0xff] %v418
        %427 = vst [vmem:[%s258 + $0x30] sm:$0xff] %v419
        %428 = vst [vmem:[%s258 + $0x38] sm:$0xff] %v420
        %s429 = sand.u32 %s114, 1
        %s430 = sand.u32 %s114, 1
        %s431 = smul.addr %s430, 64
        %s432 = scalar_lea.vmem [#allocation3], %s431
        // Predicated region
        $region56: #{patch_mixer_forward.13} parent=50 // pred_check
          %p433 = pneg %p124
        $region57: #{patch_mixer_forward.13} parent=50 // pred_check_branch
          %435 = sbr.rel (%p433) target = $region59
        $region58: #{patch_mixer_forward.13} parent=50 // pred_region
          %s436 = smul.u32 2, %s18
          %s437 = smul.u32 4, %s19
          %s438 = smul.addr %s436, 16
          %s439 = sadd.s32 %s437, %s438
          %s440 = smul.addr %s439, 8
          %s441 = scalar_lea.vmem %s3, %s440
          // Predicated region
          $region60: #{patch_mixer_forward.13} parent=58 // pred_check
            _
          $region61: #{patch_mixer_forward.13} parent=58 // pred_check_branch
            %443 = sbr.rel (0) target = $region63
          $region62: #{patch_mixer_forward.13} parent=58 // pred_region
            // Predicated region
            $region64: #{patch_mixer_forward.13} parent=62 // pred_check
              _
            $region65: #{patch_mixer_forward.13} parent=62 // pred_check_branch
              %445 = sbr.rel (0) target = $region67
            $region66: #{patch_mixer_forward.13} parent=62 // pred_region
              loop: start=0, step=1, limit=1
              $region68: #{patch_mixer_forward.13} parent=66 // loop_pre_header
                _
              $region69: #{patch_mixer_forward.13} parent=66 // loop_header
                %s447 = sphi 0, %s451
                %p448 = scmp.ge.s32.totalorder %s447, 1
                %s452 = sphi %s432, %s432
                %s453 = sphi %s441, %s441
              $region70: #{patch_mixer_forward.13} parent=66 // loop_header_branch
                %450 = sbr.rel (%p448) target = $region74
              $region71: #{patch_mixer_forward.13} parent=66 // loop_body
                %v454 = vld [vmem:[%s452] sm:$0xff]
                %455 = vst [vmem:[%s453] sm:$0xff] %v454
                %v456 = vld [vmem:[%s452 + $0x8] sm:$0xff]
                %457 = vst [vmem:[%s453 + $0x8] sm:$0xff] %v456
                %v458 = vld [vmem:[%s452 + $0x10] sm:$0xff]
                %459 = vst [vmem:[%s453 + $0x10] sm:$0xff] %v458
                %v460 = vld [vmem:[%s452 + $0x18] sm:$0xff]
                %461 = vst [vmem:[%s453 + $0x18] sm:$0xff] %v460
                %v462 = vld [vmem:[%s452 + $0x20] sm:$0xff]
                %463 = vst [vmem:[%s453 + $0x80] sm:$0xff] %v462
                %v464 = vld [vmem:[%s452 + $0x28] sm:$0xff]
                %465 = vst [vmem:[%s453 + $0x88] sm:$0xff] %v464
                %v466 = vld [vmem:[%s452 + $0x30] sm:$0xff]
                %467 = vst [vmem:[%s453 + $0x90] sm:$0xff] %v466
                %v468 = vld [vmem:[%s452 + $0x38] sm:$0xff]
                %469 = vst [vmem:[%s453 + $0x98] sm:$0xff] %v468
              $region72: #{patch_mixer_forward.13} parent=66 // loop_footer
                %s451 = sadd.s32 1, %s447
              $region73: #{patch_mixer_forward.13} parent=66 // loop_footer_branch
                %446 = sbr.rel target = $region69
              $region74: #{patch_mixer_forward.13} parent=66 // loop_exit
                _
            $region67: #{patch_mixer_forward.13} parent=62 // pred_fallthru
              _
            // Predicated region
            $region75: #{patch_mixer_forward.13} parent=62 // pred_check
              _
            $region76: #{patch_mixer_forward.13} parent=62 // pred_check_branch
              %471 = sbr.rel target = $region78
            $region77: #{patch_mixer_forward.13} parent=62 // pred_region
              _
            $region78: #{patch_mixer_forward.13} parent=62 // pred_fallthru
              _
          $region63: #{patch_mixer_forward.13} parent=58 // pred_fallthru
            _
          %472 = vnop
        $region59: #{patch_mixer_forward.13} parent=50 // pred_fallthru
          _
      $region51: #{patch_mixer_forward.13} parent=5 // pred_fallthru
        _
      %p473 = scmp.le.s32.totalorder 2, %s9
      // Predicated region
      $region79: #{patch_mixer_forward.13} parent=5 // pred_check
        %p474 = pneg %p473
      $region80: #{patch_mixer_forward.13} parent=5 // pred_check_branch
        %476 = sbr.rel (%p474) target = $region82
      $region81: #{patch_mixer_forward.13} parent=5 // pred_region
        %s477 = ssub.s32 %s9, 2
        // Predicated region
        $region83: #{patch_mixer_forward.13} parent=81 // pred_check
          %p478 = pneg %p130
        $region84: #{patch_mixer_forward.13} parent=81 // pred_check_branch
          %480 = sbr.rel (%p478) target = $region86
        $region85: #{patch_mixer_forward.13} parent=81 // pred_region
          %s481 = sand.u32 %s115, 1
          %s482 = sand.u32 %s115, 1
          %s483 = smul.addr %s482, 64
          %s484 = scalar_lea.vmem [#allocation3], %s483
        $region86: #{patch_mixer_forward.13} parent=81 // pred_fallthru
          _
      $region82: #{patch_mixer_forward.13} parent=5 // pred_fallthru
        _
    $region6: #{patch_mixer_forward.13} parent=1 // loop_footer
      %s13 = sadd.s32 1, %s9
    $region7: #{patch_mixer_forward.13} parent=1 // loop_footer_branch
      %8 = sbr.rel target = $region3
    $region8: #{patch_mixer_forward.13} parent=1 // loop_exit
      _

// kernel: patch_mixer_forward.10
$region0: #{patch_mixer_forward.10}
  #allocation0 [shape = 'u32[]', space=smem, size = 0x4, offset = 0x4, fixed_abs, tag = 'smem constant byte address 0x4 - core index']
  #allocation1 [shape = 'u32[144,128]{1,0:T(1,128)}', space=vmem, size = 0x12000, scoped, tag = 'internal scratch']
  %s0 = inlined_call_operand.vmem [shape: f32[16,32], index: 0, kind: input, shape index: {}]
  %s1 = inlined_call_operand.vmem [shape: f32[32,96], index: 1, kind: input, shape index: {}]
  %s2 = inlined_call_operand.vmem [shape: f32[1,96], index: 2, kind: input, shape index: {}]
  %s3 = inlined_call_operand.vmem [shape: f32[16,96], index: 3, kind: output, shape index: {}]
  %s4 = sld [smem:[#allocation0]]
  $region22: #{patch_mixer_forward.10} parent=0
    _
  %s6 = ssub.s32 1, %s4
  %s7 = scalar_select 0, %s6, %s4
  // Predicated region
  $region2: #{patch_mixer_forward.10} parent=0 // pred_check
    _
  $region3: #{patch_mixer_forward.10} parent=0 // pred_check_branch
    %9 = sbr.rel (0) target = $region5
  $region4: #{patch_mixer_forward.10} parent=0 // pred_region
    _
  $region5: #{patch_mixer_forward.10} parent=0 // pred_fallthru
    _
  // Predicated region
  $region6: #{patch_mixer_forward.10} parent=0 // pred_check
    _
  $region7: #{patch_mixer_forward.10} parent=0 // pred_check_branch
    %11 = sbr.rel (0) target = $region9
  $region8: #{patch_mixer_forward.10} parent=0 // pred_region
    _
  $region9: #{patch_mixer_forward.10} parent=0 // pred_fallthru
    _
  // Predicated region
  $region10: #{patch_mixer_forward.10} parent=0 // pred_check
    _
  $region11: #{patch_mixer_forward.10} parent=0 // pred_check_branch
    %13 = sbr.rel (0) target = $region13
  $region12: #{patch_mixer_forward.10} parent=0 // pred_region
    _
  $region13: #{patch_mixer_forward.10} parent=0 // pred_fallthru
    _
  %v15 = vld [vmem:[%s0] sm:$0xff]
  %v16 = vld [vmem:[%s0 + $0x8] sm:$0xff]
  %v17 = vpack.c.bf16 %v16, %v15
  %v18 = vld [vmem:[%s1] sm:$0xff]
  %v19 = vld [vmem:[%s1 + $0x8] sm:$0xff]
  %v20 = vld [vmem:[%s1 + $0x10] sm:$0xff]
  %v21 = vld [vmem:[%s1 + $0x18] sm:$0xff]
  %v22 = vpack.c.bf16 %v19, %v18
  %v23 = vpack.c.bf16 %v21, %v20
  %v24 = vld [vmem:[%s2] sm:$0x1]
  %v26 = vlaneseq
  %v27 = vshrl.u32 %v26, 7
  %v28 = vsub.s32 0, %v27
  %v29 = vrot.slane %v24, %v28
  %vm31 = vcmask 261120
  %v33 = vsel %vm31, %v17, 0
  %35 = vmatprep.subr.bf16.mxu0 0
  %36 = vmatpush1.bf16.msra.mxu0 0
  %37 = vmatprep.subr.bf16.mxu0 0
  %38 = vmatpush1.bf16.msra.mxu0 0
  %39 = vmatprep.subr.bf16.mxu0 0
  %40 = vmatpush1.bf16.msra.mxu0 0
  %41 = vmatprep.subr.bf16.mxu0 0
  %42 = vmatpush1.bf16.msra.mxu0 0
  %43 = vmatprep.subr.bf16.mxu0 0
  %44 = vmatpush1.bf16.msra.mxu0 0
  %45 = vmatprep.subr.bf16.mxu0 0
  %46 = vmatpush1.bf16.msra.mxu0 0
  %47 = vmatprep.subr.bf16.mxu0 0
  %48 = vmatpush1.bf16.msra.mxu0 %v23
  %49 = vmatprep.subr.bf16.mxu0 0
  %50 = vmatpush1.bf16.msra.mxu0 %v22
  %51 = vmatprep.subr.bf16.mxu0 0
  %52 = vmatpush2.bf16.msra.mxu0 0
  %53 = vmatprep.subr.bf16.mxu0 0
  %54 = vmatpush2.bf16.msra.mxu0 0
  %55 = vmatprep.subr.bf16.mxu0 0
  %56 = vmatpush2.bf16.msra.mxu0 0
  %57 = vmatprep.subr.bf16.mxu0 0
  %58 = vmatpush2.bf16.msra.mxu0 0
  %59 = vmatprep.subr.bf16.mxu0 0
  %60 = vmatpush2.bf16.msra.mxu0 0
  %61 = vmatprep.subr.bf16.mxu0 0
  %62 = vmatpush2.bf16.msra.mxu0 0
  %63 = vmatprep.subr.bf16.mxu0 0
  %64 = vmatpush2.bf16.msra.mxu0 0
  %65 = vmatprep.subr.bf16.mxu0 0
  %66 = vmatpush2.bf16.msra.mxu0 0
  %67 = vmatprep.mubr.bf16.mxu0 0
  %68 = vmatmul.mubr.bf16.gmra.mxu0 %v33
  %v69 = vpop.f32.mrf.mxu0
  %v70 = vadd.f32 %v29, %v69
  %v71 = vpop.f32.mrf.mxu0
  %v72 = vpop.f32.mrf.mxu0
  %v73 = vadd.f32 %v29, %v72
  %v74 = vpop.f32.mrf.mxu0
  %75 = vdwg.mxu0
  %vm76 = vcmask 785408
  %77 = vst.msk [vmem:[%s3] sm:$0xff] %vm76, %v70
  %78 = vst.msk [vmem:[%s3 + $0x8] sm:$0xff] %vm76, %v73
  // Predicated region
  $region14: #{patch_mixer_forward.10} parent=0 // pred_check
    _
  $region15: #{patch_mixer_forward.10} parent=0 // pred_check_branch
    %80 = sbr.rel (0) target = $region17
  $region16: #{patch_mixer_forward.10} parent=0 // pred_region
    _
  $region17: #{patch_mixer_forward.10} parent=0 // pred_fallthru
    _
  // Predicated region
  $region18: #{patch_mixer_forward.10} parent=0 // pred_check
    _
  $region19: #{patch_mixer_forward.10} parent=0 // pred_check_branch
    %82 = sbr.rel (0) target = $region21
  $region20: #{patch_mixer_forward.10} parent=0 // pred_region
    _
  $region21: #{patch_mixer_forward.10} parent=0 // pred_fallthru
    _

// kernel: patch_mixer_forward.12
$region0: #{patch_mixer_forward.12}
  #allocation0 [shape = 'u32[]', space=smem, size = 0x4, offset = 0x4, fixed_abs, tag = 'smem constant byte address 0x4 - core index']
  #allocation1 [shape = 'u32[144,128]{1,0:T(1,128)}', space=vmem, size = 0x12000, scoped, tag = 'internal scratch']
  %s0 = inlined_call_operand.vmem [shape: f32[16,32], index: 0, kind: input, shape index: {}]
  %s1 = inlined_call_operand.vmem [shape: f32[32,32], index: 1, kind: input, shape index: {}]
  %s2 = inlined_call_operand.vmem [shape: f32[1,32], index: 2, kind: input, shape index: {}]
  %s3 = inlined_call_operand.vmem [shape: f32[16,32], index: 3, kind: input, shape index: {}]
  %s4 = inlined_call_operand.vmem [shape: f32[1,32], index: 4, kind: input, shape index: {}]
  %s5 = inlined_call_operand.vmem [shape: f32[1,32], index: 5, kind: input, shape index: {}]
  %s6 = inlined_call_operand.vmem [shape: f32[16,32], index: 6, kind: output, shape index: {}]
  %s7 = sld [smem:[#allocation0]]
  $region34: #{patch_mixer_forward.12} parent=0
    _
  %s9 = ssub.s32 1, %s7
  %s10 = scalar_select 0, %s9, %s7
  // Predicated region
  $region2: #{patch_mixer_forward.12} parent=0 // pred_check
    _
  $region3: #{patch_mixer_forward.12} parent=0 // pred_check_branch
    %12 = sbr.rel (0) target = $region5
  $region4: #{patch_mixer_forward.12} parent=0 // pred_region
    _
  $region5: #{patch_mixer_forward.12} parent=0 // pred_fallthru
    _
  // Predicated region
  $region6: #{patch_mixer_forward.12} parent=0 // pred_check
    _
  $region7: #{patch_mixer_forward.12} parent=0 // pred_check_branch
    %14 = sbr.rel (0) target = $region9
  $region8: #{patch_mixer_forward.12} parent=0 // pred_region
    _
  $region9: #{patch_mixer_forward.12} parent=0 // pred_fallthru
    _
  // Predicated region
  $region10: #{patch_mixer_forward.12} parent=0 // pred_check
    _
  $region11: #{patch_mixer_forward.12} parent=0 // pred_check_branch
    %16 = sbr.rel (0) target = $region13
  $region12: #{patch_mixer_forward.12} parent=0 // pred_region
    _
  $region13: #{patch_mixer_forward.12} parent=0 // pred_fallthru
    _
  // Predicated region
  $region14: #{patch_mixer_forward.12} parent=0 // pred_check
    _
  $region15: #{patch_mixer_forward.12} parent=0 // pred_check_branch
    %18 = sbr.rel (0) target = $region17
  $region16: #{patch_mixer_forward.12} parent=0 // pred_region
    _
  $region17: #{patch_mixer_forward.12} parent=0 // pred_fallthru
    _
  // Predicated region
  $region18: #{patch_mixer_forward.12} parent=0 // pred_check
    _
  $region19: #{patch_mixer_forward.12} parent=0 // pred_check_branch
    %20 = sbr.rel (0) target = $region21
  $region20: #{patch_mixer_forward.12} parent=0 // pred_region
    _
  $region21: #{patch_mixer_forward.12} parent=0 // pred_fallthru
    _
  // Predicated region
  $region22: #{patch_mixer_forward.12} parent=0 // pred_check
    _
  $region23: #{patch_mixer_forward.12} parent=0 // pred_check_branch
    %22 = sbr.rel (0) target = $region25
  $region24: #{patch_mixer_forward.12} parent=0 // pred_region
    _
  $region25: #{patch_mixer_forward.12} parent=0 // pred_fallthru
    _
  %v24 = vld [vmem:[%s0] sm:$0xff]
  %v25 = vld [vmem:[%s0 + $0x8] sm:$0xff]
  %v26 = vpack.c.bf16 %v25, %v24
  %v27 = vld [vmem:[%s1] sm:$0xff]
  %v28 = vld [vmem:[%s1 + $0x8] sm:$0xff]
  %v29 = vld [vmem:[%s1 + $0x10] sm:$0xff]
  %v30 = vld [vmem:[%s1 + $0x18] sm:$0xff]
  %v31 = vpack.c.bf16 %v28, %v27
  %v32 = vpack.c.bf16 %v30, %v29
  %v33 = vld [vmem:[%s2] sm:$0x1]
  %v35 = vlaneseq
  %v36 = vshrl.u32 %v35, 7
  %v37 = vsub.s32 0, %v36
  %v38 = vrot.slane %v33, %v37
  %vm40 = vcmask 261120
  %v42 = vsel %vm40, %v26, 0
  %44 = vmatprep.subr.bf16.mxu0 0
  %45 = vmatpush1.bf16.msra.mxu0 0
  %46 = vmatprep.subr.bf16.mxu0 0
  %47 = vmatpush1.bf16.msra.mxu0 0
  %48 = vmatprep.subr.bf16.mxu0 0
  %49 = vmatpush1.bf16.msra.mxu0 0
  %50 = vmatprep.subr.bf16.mxu0 0
  %51 = vmatpush1.bf16.msra.mxu0 0
  %52 = vmatprep.subr.bf16.mxu0 0
  %53 = vmatpush1.bf16.msra.mxu0 0
  %54 = vmatprep.subr.bf16.mxu0 0
  %55 = vmatpush1.bf16.msra.mxu0 0
  %56 = vmatprep.subr.bf16.mxu0 0
  %57 = vmatpush1.bf16.msra.mxu0 %v32
  %58 = vmatprep.subr.bf16.mxu0 0
  %59 = vmatpush1.bf16.msra.mxu0 %v31
  %60 = vmatprep.subr.bf16.mxu0 0
  %61 = vmatpush2.bf16.msra.mxu0 0
  %62 = vmatprep.subr.bf16.mxu0 0
  %63 = vmatpush2.bf16.msra.mxu0 0
  %64 = vmatprep.subr.bf16.mxu0 0
  %65 = vmatpush2.bf16.msra.mxu0 0
  %66 = vmatprep.subr.bf16.mxu0 0
  %67 = vmatpush2.bf16.msra.mxu0 0
  %68 = vmatprep.subr.bf16.mxu0 0
  %69 = vmatpush2.bf16.msra.mxu0 0
  %70 = vmatprep.subr.bf16.mxu0 0
  %71 = vmatpush2.bf16.msra.mxu0 0
  %72 = vmatprep.subr.bf16.mxu0 0
  %73 = vmatpush2.bf16.msra.mxu0 0
  %74 = vmatprep.subr.bf16.mxu0 0
  %75 = vmatpush2.bf16.msra.mxu0 0
  %76 = vmatprep.mubr.bf16.mxu0 0
  %77 = vmatmul.mubr.bf16.gmra.mxu0 %v42
  %v78 = vpop.f32.mrf.mxu0
  %v79 = vadd.f32 %v38, %v78
  %v80 = vpop.f32.mrf.mxu0
  %v81 = vpop.f32.mrf.mxu0
  %v82 = vadd.f32 %v38, %v81
  %v83 = vpop.f32.mrf.mxu0
  %84 = vdwg.mxu0
  %v85 = vld [vmem:[%s3] sm:$0xff]
  %v86 = vld [vmem:[%s3 + $0x8] sm:$0xff]
  %v87 = vadd.f32 %v79, %v85
  %v88 = vadd.f32 %v82, %v86
  %v89 = vsel %vm40, %v87, 0.0
  %90 = vadd.xlane.f32.xlu0 %v89
  %v91 = vpop.xlane.xlu0 %90
  %v92 = vsel %vm40, %v88, 0.0
  %93 = vadd.xlane.f32.xlu0 %v92
  %v94 = vpop.xlane.xlu0 %93
  %v95 = vrcp.pop 32.0
  %v96 = vmul.f32 %v91, %v95
  %v97 = vmul.f32 %v94, %v95
  %v98 = vsub.f32 %v87, %v96
  %v99 = vsub.f32 %v88, %v97
  %v100 = vmul.f32 %v98, %v98
  %v101 = vmul.f32 %v99, %v99
  %v102 = vsel %vm40, %v100, 0.0
  %103 = vadd.xlane.f32.xlu0 %v102
  %v104 = vpop.xlane.xlu0 %103
  %v105 = vsel %vm40, %v101, 0.0
  %106 = vadd.xlane.f32.xlu0 %v105
  %v107 = vpop.xlane.xlu0 %106
  %v108 = vmul.f32 %v104, %v95
  %v109 = vmul.f32 %v107, %v95
  %v110 = vadd.f32 %v108, 1e-05
  %v111 = vadd.f32 %v109, 1e-05
  %v112 = vrsqrt.pop %v110
  %v113 = vrsqrt.pop %v111
  %v114 = vmul.f32 %v98, %v112
  %v115 = vmul.f32 %v99, %v113
  %v116 = vld [vmem:[%s4] sm:$0x1]
  %v118 = vlaneseq
  %v119 = vshrl.u32 %v118, 7
  %v120 = vsub.s32 0, %v119
  %v121 = vrot.slane %v116, %v120
  %v123 = vmul.f32 %v114, %v121
  %v124 = vmul.f32 %v115, %v121
  %v125 = vld [vmem:[%s5] sm:$0x1]
  %v127 = vlaneseq
  %v128 = vshrl.u32 %v127, 7
  %v129 = vsub.s32 0, %v128
  %v130 = vrot.slane %v125, %v129
  %v132 = vadd.f32 %v123, %v130
  %v133 = vadd.f32 %v124, %v130
  %134 = vst.msk [vmem:[%s6] sm:$0xff] %vm40, %v132
  %135 = vst.msk [vmem:[%s6 + $0x8] sm:$0xff] %vm40, %v133
  // Predicated region
  $region26: #{patch_mixer_forward.12} parent=0 // pred_check
    _
  $region27: #{patch_mixer_forward.12} parent=0 // pred_check_branch
    %137 = sbr.rel (0) target = $region29
  $region28: #{patch_mixer_forward.12} parent=0 // pred_region
    _
  $region29: #{patch_mixer_forward.12} parent=0 // pred_fallthru
    _
  // Predicated region
  $region30: #{patch_mixer_forward.12} parent=0 // pred_check
    _
  $region31: #{patch_mixer_forward.12} parent=0 // pred_check_branch
    %139 = sbr.rel (0) target = $region33
  $region32: #{patch_mixer_forward.12} parent=0 // pred_region
    _
  $region33: #{patch_mixer_forward.12} parent=0 // pred_fallthru
    _

// kernel: patch_mixer_forward.11
$region0: #{patch_mixer_forward.11}
  #allocation0 [shape = 'u32[]', space=smem, size = 0x4, offset = 0x4, fixed_abs, tag = 'smem constant byte address 0x4 - core index']
  #allocation1 [shape = 'u32[144,128]{1,0:T(1,128)}', space=vmem, size = 0x12000, scoped, tag = 'internal scratch']
  #allocation2 [shape = 'f32[8,8,1]{2,1,0:T(8,128)}', space=vmem, size = 0x8000, scoped, tag = 'scratch operand']
  #allocation3 [shape = 'f32[8,8,1]{2,1,0:T(8,128)}', space=vmem, size = 0x8000, scoped, tag = 'scratch operand']
  #allocation4 [shape = 'f32[8,8,8]{2,1,0:T(8,128)}', space=vmem, size = 0x8000, scoped, tag = 'scratch operand']
  %s0 = inlined_call_operand.vmem [shape: f32[8,8,8], index: 0, kind: input, shape index: {}]
  %s1 = inlined_call_operand.vmem [shape: f32[8,8,8], index: 1, kind: input, shape index: {}]
  %s2 = inlined_call_operand.vmem [shape: f32[8,8,8], index: 2, kind: input, shape index: {}]
  %s3 = inlined_call_operand.vmem [shape: f32[8,8,8], index: 3, kind: output, shape index: {}]
  %s4 = sld [smem:[#allocation0]]
  $region30: #{patch_mixer_forward.11} parent=0
    _
  %s6 = ssub.s32 1, %s4
  %s7 = scalar_select 0, %s6, %s4
  // Predicated region
  $region2: #{patch_mixer_forward.11} parent=0 // pred_check
    _
  $region3: #{patch_mixer_forward.11} parent=0 // pred_check_branch
    %9 = sbr.rel (0) target = $region5
  $region4: #{patch_mixer_forward.11} parent=0 // pred_region
    _
  $region5: #{patch_mixer_forward.11} parent=0 // pred_fallthru
    _
  // Predicated region
  $region6: #{patch_mixer_forward.11} parent=0 // pred_check
    _
  $region7: #{patch_mixer_forward.11} parent=0 // pred_check_branch
    %11 = sbr.rel (0) target = $region9
  $region8: #{patch_mixer_forward.11} parent=0 // pred_region
    _
  $region9: #{patch_mixer_forward.11} parent=0 // pred_fallthru
    _
  // Predicated region
  $region10: #{patch_mixer_forward.11} parent=0 // pred_check
    _
  $region11: #{patch_mixer_forward.11} parent=0 // pred_check_branch
    %13 = sbr.rel (0) target = $region13
  $region12: #{patch_mixer_forward.11} parent=0 // pred_region
    _
  $region13: #{patch_mixer_forward.11} parent=0 // pred_fallthru
    _
  %p15 = scmp.eq.s32.totalorder 0, 0
  // Predicated region
  $region14: #{patch_mixer_forward.11} parent=0 // pred_check
    %p16 = pneg %p15
  $region15: #{patch_mixer_forward.11} parent=0 // pred_check_branch
    %18 = sbr.rel (%p16) target = $region17
  $region16: #{patch_mixer_forward.11} parent=0 // pred_region
    %vm19 = vcmask 7168
    %20 = vst.msk [vmem:[#allocation2] sm:$0xff] %vm19, -1e+30
    %21 = vst.msk [vmem:[#allocation2 + $0x8] sm:$0xff] %vm19, -1e+30
    %22 = vst.msk [vmem:[#allocation2 + $0x10] sm:$0xff] %vm19, -1e+30
    %23 = vst.msk [vmem:[#allocation2 + $0x18] sm:$0xff] %vm19, -1e+30
    %24 = vst.msk [vmem:[#allocation2 + $0x20] sm:$0xff] %vm19, -1e+30
    %25 = vst.msk [vmem:[#allocation2 + $0x28] sm:$0xff] %vm19, -1e+30
    %26 = vst.msk [vmem:[#allocation2 + $0x30] sm:$0xff] %vm19, -1e+30
    %27 = vst.msk [vmem:[#allocation2 + $0x38] sm:$0xff] %vm19, -1e+30
    %28 = vst.msk [vmem:[#allocation3] sm:$0xff] %vm19, 0.0
    %29 = vst.msk [vmem:[#allocation3 + $0x8] sm:$0xff] %vm19, 0.0
    %30 = vst.msk [vmem:[#allocation3 + $0x10] sm:$0xff] %vm19, 0.0
    %31 = vst.msk [vmem:[#allocation3 + $0x18] sm:$0xff] %vm19, 0.0
    %32 = vst.msk [vmem:[#allocation3 + $0x20] sm:$0xff] %vm19, 0.0
    %33 = vst.msk [vmem:[#allocation3 + $0x28] sm:$0xff] %vm19, 0.0
    %34 = vst.msk [vmem:[#allocation3 + $0x30] sm:$0xff] %vm19, 0.0
    %35 = vst.msk [vmem:[#allocation3 + $0x38] sm:$0xff] %vm19, 0.0
    %vm36 = vcmask 64512
    %37 = vst.msk [vmem:[#allocation4] sm:$0xff] %vm36, 0.0
    %38 = vst.msk [vmem:[#allocation4 + $0x8] sm:$0xff] %vm36, 0.0
    %39 = vst.msk [vmem:[#allocation4 + $0x10] sm:$0xff] %vm36, 0.0
    %40 = vst.msk [vmem:[#allocation4 + $0x18] sm:$0xff] %vm36, 0.0
    %41 = vst.msk [vmem:[#allocation4 + $0x20] sm:$0xff] %vm36, 0.0
    %42 = vst.msk [vmem:[#allocation4 + $0x28] sm:$0xff] %vm36, 0.0
    %43 = vst.msk [vmem:[#allocation4 + $0x30] sm:$0xff] %vm36, 0.0
    %44 = vst.msk [vmem:[#allocation4 + $0x38] sm:$0xff] %vm36, 0.0
  $region17: #{patch_mixer_forward.11} parent=0 // pred_fallthru
    _
  %v45 = vld [vmem:[%s0] sm:$0xff]
  %v46 = vld [vmem:[%s0 + $0x8] sm:$0xff]
  %v47 = vld [vmem:[%s0 + $0x10] sm:$0xff]
  %v48 = vld [vmem:[%s0 + $0x18] sm:$0xff]
  %v49 = vld [vmem:[%s0 + $0x20] sm:$0xff]
  %v50 = vld [vmem:[%s0 + $0x28] sm:$0xff]
  %v51 = vld [vmem:[%s0 + $0x30] sm:$0xff]
  %v52 = vld [vmem:[%s0 + $0x38] sm:$0xff]
  %v53 = vpack.c.bf16 %v45, %v45
  %v54 = vpack.c.bf16 %v46, %v46
  %v55 = vpack.c.bf16 %v47, %v47
  %v56 = vpack.c.bf16 %v48, %v48
  %v57 = vpack.c.bf16 %v49, %v49
  %v58 = vpack.c.bf16 %v50, %v50
  %v59 = vpack.c.bf16 %v51, %v51
  %v60 = vpack.c.bf16 %v52, %v52
  %v61 = vld [vmem:[%s1] sm:$0xff]
  %v62 = vld [vmem:[%s1 + $0x8] sm:$0xff]
  %v63 = vld [vmem:[%s1 + $0x10] sm:$0xff]
  %v64 = vld [vmem:[%s1 + $0x18] sm:$0xff]
  %v65 = vld [vmem:[%s1 + $0x20] sm:$0xff]
  %v66 = vld [vmem:[%s1 + $0x28] sm:$0xff]
  %v67 = vld [vmem:[%s1 + $0x30] sm:$0xff]
  %v68 = vld [vmem:[%s1 + $0x38] sm:$0xff]
  %v69 = vpack.c.bf16 %v61, %v61
  %v70 = vpack.c.bf16 %v62, %v62
  %v71 = vpack.c.bf16 %v63, %v63
  %v72 = vpack.c.bf16 %v64, %v64
  %v73 = vpack.c.bf16 %v65, %v65
  %v74 = vpack.c.bf16 %v66, %v66
  %v75 = vpack.c.bf16 %v67, %v67
  %v76 = vpack.c.bf16 %v68, %v68
  %v77 = vld [vmem:[%s2] sm:$0xff]
  %v78 = vld [vmem:[%s2 + $0x8] sm:$0xff]
  %v79 = vld [vmem:[%s2 + $0x10] sm:$0xff]
  %v80 = vld [vmem:[%s2 + $0x18] sm:$0xff]
  %v81 = vld [vmem:[%s2 + $0x20] sm:$0xff]
  %v82 = vld [vmem:[%s2 + $0x28] sm:$0xff]
  %v83 = vld [vmem:[%s2 + $0x30] sm:$0xff]
  %v84 = vld [vmem:[%s2 + $0x38] sm:$0xff]
  %v85 = vpack.c.bf16 %v77, %v77
  %v86 = vpack.c.bf16 %v78, %v78
  %v87 = vpack.c.bf16 %v79, %v79
  %v88 = vpack.c.bf16 %v80, %v80
  %v89 = vpack.c.bf16 %v81, %v81
  %v90 = vpack.c.bf16 %v82, %v82
  %v91 = vpack.c.bf16 %v83, %v83
  %v92 = vpack.c.bf16 %v84, %v84
  %vm93 = vcmask 64512
  %v95 = vsel %vm93, %v53, 0
  %v98 = vsel %vm93, %v69, 0
  %100 = vmatprep.subr.bf16.mxu0 0
  %101 = vmatpush1.bf16.xpose.msra.mxu0 0
  %102 = vmatprep.subr.bf16.mxu0 0
  %103 = vmatpush1.bf16.xpose.msra.mxu0 0
  %104 = vmatprep.subr.bf16.mxu0 0
  %105 = vmatpush1.bf16.xpose.msra.mxu0 0
  %106 = vmatprep.subr.bf16.mxu0 0
  %107 = vmatpush1.bf16.xpose.msra.mxu0 0
  %108 = vmatprep.subr.bf16.mxu0 0
  %109 = vmatpush1.bf16.xpose.msra.mxu0 0
  %110 = vmatprep.subr.bf16.mxu0 0
  %111 = vmatpush1.bf16.xpose.msra.mxu0 0
  %112 = vmatprep.subr.bf16.mxu0 0
  %113 = vmatpush1.bf16.xpose.msra.mxu0 0
  %114 = vmatprep.subr.bf16.mxu0 0
  %115 = vmatpush1.bf16.xpose.msra.mxu0 %v98
  %116 = vmatprep.subr.bf16.mxu0 0
  %117 = vmatpush2.bf16.xpose.msra.mxu0 0
  %118 = vmatprep.subr.bf16.mxu0 0
  %119 = vmatpush2.bf16.xpose.msra.mxu0 0
  %120 = vmatprep.subr.bf16.mxu0 0
  %121 = vmatpush2.bf16.xpose.msra.mxu0 0
  %122 = vmatprep.subr.bf16.mxu0 0
  %123 = vmatpush2.bf16.xpose.msra.mxu0 0
  %124 = vmatprep.subr.bf16.mxu0 0
  %125 = vmatpush2.bf16.xpose.msra.mxu0 0
  %126 = vmatprep.subr.bf16.mxu0 0
  %127 = vmatpush2.bf16.xpose.msra.mxu0 0
  %128 = vmatprep.subr.bf16.mxu0 0
  %129 = vmatpush2.bf16.xpose.msra.mxu0 0
  %130 = vmatprep.subr.bf16.mxu0 0
  %131 = vmatpush2.bf16.xpose.msra.mxu0 0
  %132 = vmatprep.mubr.bf16.mxu0 0
  %133 = vmatmul.mubr.bf16.gmra.mxu0 %v95
  %v134 = vpop.f32.mrf.mxu0
  %v135 = vadd.f32 0.0, %v134
  %v136 = vpop.f32.mrf.mxu0
  %v137 = vpop.f32.mrf.mxu0
  %v138 = vpop.f32.mrf.mxu0
  %139 = vdwg.mxu0
  %v141 = vsel %vm93, %v54, 0
  %v144 = vsel %vm93, %v70, 0
  %146 = vmatprep.subr.bf16.mxu0 0
  %147 = vmatpush1.bf16.xpose.msra.mxu0 0
  %148 = vmatprep.subr.bf16.mxu0 0
  %149 = vmatpush1.bf16.xpose.msra.mxu0 0
  %150 = vmatprep.subr.bf16.mxu0 0
  %151 = vmatpush1.bf16.xpose.msra.mxu0 0
  %152 = vmatprep.subr.bf16.mxu0 0
  %153 = vmatpush1.bf16.xpose.msra.mxu0 0
  %154 = vmatprep.subr.bf16.mxu0 0
  %155 = vmatpush1.bf16.xpose.msra.mxu0 0
  %156 = vmatprep.subr.bf16.mxu0 0
  %157 = vmatpush1.bf16.xpose.msra.mxu0 0
  %158 = vmatprep.subr.bf16.mxu0 0
  %159 = vmatpush1.bf16.xpose.msra.mxu0 0
  %160 = vmatprep.subr.bf16.mxu0 0
  %161 = vmatpush1.bf16.xpose.msra.mxu0 %v144
  %162 = vmatprep.subr.bf16.mxu0 0
  %163 = vmatpush2.bf16.xpose.msra.mxu0 0
  %164 = vmatprep.subr.bf16.mxu0 0
  %165 = vmatpush2.bf16.xpose.msra.mxu0 0
  %166 = vmatprep.subr.bf16.mxu0 0
  %167 = vmatpush2.bf16.xpose.msra.mxu0 0
  %168 = vmatprep.subr.bf16.mxu0 0
  %169 = vmatpush2.bf16.xpose.msra.mxu0 0
  %170 = vmatprep.subr.bf16.mxu0 0
  %171 = vmatpush2.bf16.xpose.msra.mxu0 0
  %172 = vmatprep.subr.bf16.mxu0 0
  %173 = vmatpush2.bf16.xpose.msra.mxu0 0
  %174 = vmatprep.subr.bf16.mxu0 0
  %175 = vmatpush2.bf16.xpose.msra.mxu0 0
  %176 = vmatprep.subr.bf16.mxu0 0
  %177 = vmatpush2.bf16.xpose.msra.mxu0 0
  %178 = vmatprep.mubr.bf16.mxu0 0
  %179 = vmatmul.mubr.bf16.gmra.mxu0 %v141
  %v180 = vpop.f32.mrf.mxu0
  %v181 = vadd.f32 0.0, %v180
  %v182 = vpop.f32.mrf.mxu0
  %v183 = vpop.f32.mrf.mxu0
  %v184 = vpop.f32.mrf.mxu0
  %185 = vdwg.mxu0
  %v187 = vsel %vm93, %v55, 0
  %v190 = vsel %vm93, %v71, 0
  %192 = vmatprep.subr.bf16.mxu0 0
  %193 = vmatpush1.bf16.xpose.msra.mxu0 0
  %194 = vmatprep.subr.bf16.mxu0 0
  %195 = vmatpush1.bf16.xpose.msra.mxu0 0
  %196 = vmatprep.subr.bf16.mxu0 0
  %197 = vmatpush1.bf16.xpose.msra.mxu0 0
  %198 = vmatprep.subr.bf16.mxu0 0
  %199 = vmatpush1.bf16.xpose.msra.mxu0 0
  %200 = vmatprep.subr.bf16.mxu0 0
  %201 = vmatpush1.bf16.xpose.msra.mxu0 0
  %202 = vmatprep.subr.bf16.mxu0 0
  %203 = vmatpush1.bf16.xpose.msra.mxu0 0
  %204 = vmatprep.subr.bf16.mxu0 0
  %205 = vmatpush1.bf16.xpose.msra.mxu0 0
  %206 = vmatprep.subr.bf16.mxu0 0
  %207 = vmatpush1.bf16.xpose.msra.mxu0 %v190
  %208 = vmatprep.subr.bf16.mxu0 0
  %209 = vmatpush2.bf16.xpose.msra.mxu0 0
  %210 = vmatprep.subr.bf16.mxu0 0
  %211 = vmatpush2.bf16.xpose.msra.mxu0 0
  %212 = vmatprep.subr.bf16.mxu0 0
  %213 = vmatpush2.bf16.xpose.msra.mxu0 0
  %214 = vmatprep.subr.bf16.mxu0 0
  %215 = vmatpush2.bf16.xpose.msra.mxu0 0
  %216 = vmatprep.subr.bf16.mxu0 0
  %217 = vmatpush2.bf16.xpose.msra.mxu0 0
  %218 = vmatprep.subr.bf16.mxu0 0
  %219 = vmatpush2.bf16.xpose.msra.mxu0 0
  %220 = vmatprep.subr.bf16.mxu0 0
  %221 = vmatpush2.bf16.xpose.msra.mxu0 0
  %222 = vmatprep.subr.bf16.mxu0 0
  %223 = vmatpush2.bf16.xpose.msra.mxu0 0
  %224 = vmatprep.mubr.bf16.mxu0 0
  %225 = vmatmul.mubr.bf16.gmra.mxu0 %v187
  %v226 = vpop.f32.mrf.mxu0
  %v227 = vadd.f32 0.0, %v226
  %v228 = vpop.f32.mrf.mxu0
  %v229 = vpop.f32.mrf.mxu0
  %v230 = vpop.f32.mrf.mxu0
  %231 = vdwg.mxu0
  %v233 = vsel %vm93, %v56, 0
  %v236 = vsel %vm93, %v72, 0
  %238 = vmatprep.subr.bf16.mxu0 0
  %239 = vmatpush1.bf16.xpose.msra.mxu0 0
  %240 = vmatprep.subr.bf16.mxu0 0
  %241 = vmatpush1.bf16.xpose.msra.mxu0 0
  %242 = vmatprep.subr.bf16.mxu0 0
  %243 = vmatpush1.bf16.xpose.msra.mxu0 0
  %244 = vmatprep.subr.bf16.mxu0 0
  %245 = vmatpush1.bf16.xpose.msra.mxu0 0
  %246 = vmatprep.subr.bf16.mxu0 0
  %247 = vmatpush1.bf16.xpose.msra.mxu0 0
  %248 = vmatprep.subr.bf16.mxu0 0
  %249 = vmatpush1.bf16.xpose.msra.mxu0 0
  %250 = vmatprep.subr.bf16.mxu0 0
  %251 = vmatpush1.bf16.xpose.msra.mxu0 0
  %252 = vmatprep.subr.bf16.mxu0 0
  %253 = vmatpush1.bf16.xpose.msra.mxu0 %v236
  %254 = vmatprep.subr.bf16.mxu0 0
  %255 = vmatpush2.bf16.xpose.msra.mxu0 0
  %256 = vmatprep.subr.bf16.mxu0 0
  %257 = vmatpush2.bf16.xpose.msra.mxu0 0
  %258 = vmatprep.subr.bf16.mxu0 0
  %259 = vmatpush2.bf16.xpose.msra.mxu0 0
  %260 = vmatprep.subr.bf16.mxu0 0
  %261 = vmatpush2.bf16.xpose.msra.mxu0 0
  %262 = vmatprep.subr.bf16.mxu0 0
  %263 = vmatpush2.bf16.xpose.msra.mxu0 0
  %264 = vmatprep.subr.bf16.mxu0 0
  %265 = vmatpush2.bf16.xpose.msra.mxu0 0
  %266 = vmatprep.subr.bf16.mxu0 0
  %267 = vmatpush2.bf16.xpose.msra.mxu0 0
  %268 = vmatprep.subr.bf16.mxu0 0
  %269 = vmatpush2.bf16.xpose.msra.mxu0 0
  %270 = vmatprep.mubr.bf16.mxu0 0
  %271 = vmatmul.mubr.bf16.gmra.mxu0 %v233
  %v272 = vpop.f32.mrf.mxu0
  %v273 = vadd.f32 0.0, %v272
  %v274 = vpop.f32.mrf.mxu0
  %v275 = vpop.f32.mrf.mxu0
  %v276 = vpop.f32.mrf.mxu0
  %277 = vdwg.mxu0
  %v279 = vsel %vm93, %v57, 0
  %v282 = vsel %vm93, %v73, 0
  %284 = vmatprep.subr.bf16.mxu0 0
  %285 = vmatpush1.bf16.xpose.msra.mxu0 0
  %286 = vmatprep.subr.bf16.mxu0 0
  %287 = vmatpush1.bf16.xpose.msra.mxu0 0
  %288 = vmatprep.subr.bf16.mxu0 0
  %289 = vmatpush1.bf16.xpose.msra.mxu0 0
  %290 = vmatprep.subr.bf16.mxu0 0
  %291 = vmatpush1.bf16.xpose.msra.mxu0 0
  %292 = vmatprep.subr.bf16.mxu0 0
  %293 = vmatpush1.bf16.xpose.msra.mxu0 0
  %294 = vmatprep.subr.bf16.mxu0 0
  %295 = vmatpush1.bf16.xpose.msra.mxu0 0
  %296 = vmatprep.subr.bf16.mxu0 0
  %297 = vmatpush1.bf16.xpose.msra.mxu0 0
  %298 = vmatprep.subr.bf16.mxu0 0
  %299 = vmatpush1.bf16.xpose.msra.mxu0 %v282
  %300 = vmatprep.subr.bf16.mxu0 0
  %301 = vmatpush2.bf16.xpose.msra.mxu0 0
  %302 = vmatprep.subr.bf16.mxu0 0
  %303 = vmatpush2.bf16.xpose.msra.mxu0 0
  %304 = vmatprep.subr.bf16.mxu0 0
  %305 = vmatpush2.bf16.xpose.msra.mxu0 0
  %306 = vmatprep.subr.bf16.mxu0 0
  %307 = vmatpush2.bf16.xpose.msra.mxu0 0
  %308 = vmatprep.subr.bf16.mxu0 0
  %309 = vmatpush2.bf16.xpose.msra.mxu0 0
  %310 = vmatprep.subr.bf16.mxu0 0
  %311 = vmatpush2.bf16.xpose.msra.mxu0 0
  %312 = vmatprep.subr.bf16.mxu0 0
  %313 = vmatpush2.bf16.xpose.msra.mxu0 0
  %314 = vmatprep.subr.bf16.mxu0 0
  %315 = vmatpush2.bf16.xpose.msra.mxu0 0
  %316 = vmatprep.mubr.bf16.mxu0 0
  %317 = vmatmul.mubr.bf16.gmra.mxu0 %v279
  %v318 = vpop.f32.mrf.mxu0
  %v319 = vadd.f32 0.0, %v318
  %v320 = vpop.f32.mrf.mxu0
  %v321 = vpop.f32.mrf.mxu0
  %v322 = vpop.f32.mrf.mxu0
  %323 = vdwg.mxu0
  %v325 = vsel %vm93, %v58, 0
  %v328 = vsel %vm93, %v74, 0
  %330 = vmatprep.subr.bf16.mxu0 0
  %331 = vmatpush1.bf16.xpose.msra.mxu0 0
  %332 = vmatprep.subr.bf16.mxu0 0
  %333 = vmatpush1.bf16.xpose.msra.mxu0 0
  %334 = vmatprep.subr.bf16.mxu0 0
  %335 = vmatpush1.bf16.xpose.msra.mxu0 0
  %336 = vmatprep.subr.bf16.mxu0 0
  %337 = vmatpush1.bf16.xpose.msra.mxu0 0
  %338 = vmatprep.subr.bf16.mxu0 0
  %339 = vmatpush1.bf16.xpose.msra.mxu0 0
  %340 = vmatprep.subr.bf16.mxu0 0
  %341 = vmatpush1.bf16.xpose.msra.mxu0 0
  %342 = vmatprep.subr.bf16.mxu0 0
  %343 = vmatpush1.bf16.xpose.msra.mxu0 0
  %344 = vmatprep.subr.bf16.mxu0 0
  %345 = vmatpush1.bf16.xpose.msra.mxu0 %v328
  %346 = vmatprep.subr.bf16.mxu0 0
  %347 = vmatpush2.bf16.xpose.msra.mxu0 0
  %348 = vmatprep.subr.bf16.mxu0 0
  %349 = vmatpush2.bf16.xpose.msra.mxu0 0
  %350 = vmatprep.subr.bf16.mxu0 0
  %351 = vmatpush2.bf16.xpose.msra.mxu0 0
  %352 = vmatprep.subr.bf16.mxu0 0
  %353 = vmatpush2.bf16.xpose.msra.mxu0 0
  %354 = vmatprep.subr.bf16.mxu0 0
  %355 = vmatpush2.bf16.xpose.msra.mxu0 0
  %356 = vmatprep.subr.bf16.mxu0 0
  %357 = vmatpush2.bf16.xpose.msra.mxu0 0
  %358 = vmatprep.subr.bf16.mxu0 0
  %359 = vmatpush2.bf16.xpose.msra.mxu0 0
  %360 = vmatprep.subr.bf16.mxu0 0
  %361 = vmatpush2.bf16.xpose.msra.mxu0 0
  %362 = vmatprep.mubr.bf16.mxu0 0
  %363 = vmatmul.mubr.bf16.gmra.mxu0 %v325
  %v364 = vpop.f32.mrf.mxu0
  %v365 = vadd.f32 0.0, %v364
  %v366 = vpop.f32.mrf.mxu0
  %v367 = vpop.f32.mrf.mxu0
  %v368 = vpop.f32.mrf.mxu0
  %369 = vdwg.mxu0
  %v371 = vsel %vm93, %v59, 0
  %v374 = vsel %vm93, %v75, 0
  %376 = vmatprep.subr.bf16.mxu0 0
  %377 = vmatpush1.bf16.xpose.msra.mxu0 0
  %378 = vmatprep.subr.bf16.mxu0 0
  %379 = vmatpush1.bf16.xpose.msra.mxu0 0
  %380 = vmatprep.subr.bf16.mxu0 0
  %381 = vmatpush1.bf16.xpose.msra.mxu0 0
  %382 = vmatprep.subr.bf16.mxu0 0
  %383 = vmatpush1.bf16.xpose.msra.mxu0 0
  %384 = vmatprep.subr.bf16.mxu0 0
  %385 = vmatpush1.bf16.xpose.msra.mxu0 0
  %386 = vmatprep.subr.bf16.mxu0 0
  %387 = vmatpush1.bf16.xpose.msra.mxu0 0
  %388 = vmatprep.subr.bf16.mxu0 0
  %389 = vmatpush1.bf16.xpose.msra.mxu0 0
  %390 = vmatprep.subr.bf16.mxu0 0
  %391 = vmatpush1.bf16.xpose.msra.mxu0 %v374
  %392 = vmatprep.subr.bf16.mxu0 0
  %393 = vmatpush2.bf16.xpose.msra.mxu0 0
  %394 = vmatprep.subr.bf16.mxu0 0
  %395 = vmatpush2.bf16.xpose.msra.mxu0 0
  %396 = vmatprep.subr.bf16.mxu0 0
  %397 = vmatpush2.bf16.xpose.msra.mxu0 0
  %398 = vmatprep.subr.bf16.mxu0 0
  %399 = vmatpush2.bf16.xpose.msra.mxu0 0
  %400 = vmatprep.subr.bf16.mxu0 0
  %401 = vmatpush2.bf16.xpose.msra.mxu0 0
  %402 = vmatprep.subr.bf16.mxu0 0
  %403 = vmatpush2.bf16.xpose.msra.mxu0 0
  %404 = vmatprep.subr.bf16.mxu0 0
  %405 = vmatpush2.bf16.xpose.msra.mxu0 0
  %406 = vmatprep.subr.bf16.mxu0 0
  %407 = vmatpush2.bf16.xpose.msra.mxu0 0
  %408 = vmatprep.mubr.bf16.mxu0 0
  %409 = vmatmul.mubr.bf16.gmra.mxu0 %v371
  %v410 = vpop.f32.mrf.mxu0
  %v411 = vadd.f32 0.0, %v410
  %v412 = vpop.f32.mrf.mxu0
  %v413 = vpop.f32.mrf.mxu0
  %v414 = vpop.f32.mrf.mxu0
  %415 = vdwg.mxu0
  %v417 = vsel %vm93, %v60, 0
  %v420 = vsel %vm93, %v76, 0
  %422 = vmatprep.subr.bf16.mxu0 0
  %423 = vmatpush1.bf16.xpose.msra.mxu0 0
  %424 = vmatprep.subr.bf16.mxu0 0
  %425 = vmatpush1.bf16.xpose.msra.mxu0 0
  %426 = vmatprep.subr.bf16.mxu0 0
  %427 = vmatpush1.bf16.xpose.msra.mxu0 0
  %428 = vmatprep.subr.bf16.mxu0 0
  %429 = vmatpush1.bf16.xpose.msra.mxu0 0
  %430 = vmatprep.subr.bf16.mxu0 0
  %431 = vmatpush1.bf16.xpose.msra.mxu0 0
  %432 = vmatprep.subr.bf16.mxu0 0
  %433 = vmatpush1.bf16.xpose.msra.mxu0 0
  %434 = vmatprep.subr.bf16.mxu0 0
  %435 = vmatpush1.bf16.xpose.msra.mxu0 0
  %436 = vmatprep.subr.bf16.mxu0 0
  %437 = vmatpush1.bf16.xpose.msra.mxu0 %v420
  %438 = vmatprep.subr.bf16.mxu0 0
  %439 = vmatpush2.bf16.xpose.msra.mxu0 0
  %440 = vmatprep.subr.bf16.mxu0 0
  %441 = vmatpush2.bf16.xpose.msra.mxu0 0
  %442 = vmatprep.subr.bf16.mxu0 0
  %443 = vmatpush2.bf16.xpose.msra.mxu0 0
  %444 = vmatprep.subr.bf16.mxu0 0
  %445 = vmatpush2.bf16.xpose.msra.mxu0 0
  %446 = vmatprep.subr.bf16.mxu0 0
  %447 = vmatpush2.bf16.xpose.msra.mxu0 0
  %448 = vmatprep.subr.bf16.mxu0 0
  %449 = vmatpush2.bf16.xpose.msra.mxu0 0
  %450 = vmatprep.subr.bf16.mxu0 0
  %451 = vmatpush2.bf16.xpose.msra.mxu0 0
  %452 = vmatprep.subr.bf16.mxu0 0
  %453 = vmatpush2.bf16.xpose.msra.mxu0 0
  %454 = vmatprep.mubr.bf16.mxu0 0
  %455 = vmatmul.mubr.bf16.gmra.mxu0 %v417
  %v456 = vpop.f32.mrf.mxu0
  %v457 = vadd.f32 0.0, %v456
  %v458 = vpop.f32.mrf.mxu0
  %v459 = vpop.f32.mrf.mxu0
  %v460 = vpop.f32.mrf.mxu0
  %461 = vdwg.mxu0
  %v462 = vmul.f32 %v135, 0.35355338
  %v463 = vmul.f32 %v181, 0.35355338
  %v464 = vmul.f32 %v227, 0.35355338
  %v465 = vmul.f32 %v273, 0.35355338
  %v466 = vmul.f32 %v319, 0.35355338
  %v467 = vmul.f32 %v365, 0.35355338
  %v468 = vmul.f32 %v411, 0.35355338
  %v469 = vmul.f32 %v457, 0.35355338
  %v470 = vld [vmem:[#allocation2] sm:$0xff]
  %v471 = vld [vmem:[#allocation2 + $0x8] sm:$0xff]
  %v472 = vld [vmem:[#allocation2 + $0x10] sm:$0xff]
  %v473 = vld [vmem:[#allocation2 + $0x18] sm:$0xff]
  %v474 = vld [vmem:[#allocation2 + $0x20] sm:$0xff]
  %v475 = vld [vmem:[#allocation2 + $0x28] sm:$0xff]
  %v476 = vld [vmem:[#allocation2 + $0x30] sm:$0xff]
  %v477 = vld [vmem:[#allocation2 + $0x38] sm:$0xff]
  %v478 = vsel %vm93, %v462, -inf
  %479 = vmax.xlane.f32.xlu0 %v478
  %v480 = vpop.xlane.xlu0 %479
  %v481 = vsel %vm93, %v463, -inf
  %482 = vmax.xlane.f32.xlu0 %v481
  %v483 = vpop.xlane.xlu0 %482
  %v484 = vsel %vm93, %v464, -inf
  %485 = vmax.xlane.f32.xlu0 %v484
  %v486 = vpop.xlane.xlu0 %485
  %v487 = vsel %vm93, %v465, -inf
  %488 = vmax.xlane.f32.xlu0 %v487
  %v489 = vpop.xlane.xlu0 %488
  %v490 = vsel %vm93, %v466, -inf
  %491 = vmax.xlane.f32.xlu0 %v490
  %v492 = vpop.xlane.xlu0 %491
  %v493 = vsel %vm93, %v467, -inf
  %494 = vmax.xlane.f32.xlu0 %v493
  %v495 = vpop.xlane.xlu0 %494
  %v496 = vsel %vm93, %v468, -inf
  %497 = vmax.xlane.f32.xlu0 %v496
  %v498 = vpop.xlane.xlu0 %497
  %v499 = vsel %vm93, %v469, -inf
  %500 = vmax.xlane.f32.xlu0 %v499
  %v501 = vpop.xlane.xlu0 %500
  %v502 = vmax.f32 %v470, %v480
  %v503 = vmax.f32 %v471, %v483
  %v504 = vmax.f32 %v472, %v486
  %v505 = vmax.f32 %v473, %v489
  %v506 = vmax.f32 %v474, %v492
  %v507 = vmax.f32 %v475, %v495
  %v508 = vmax.f32 %v476, %v498
  %v509 = vmax.f32 %v477, %v501
  %v510 = vsub.f32 %v470, %v502
  %v511 = vsub.f32 %v471, %v503
  %v512 = vsub.f32 %v472, %v504
  %v513 = vsub.f32 %v473, %v505
  %v514 = vsub.f32 %v474, %v506
  %v515 = vsub.f32 %v475, %v507
  %v516 = vsub.f32 %v476, %v508
  %v517 = vsub.f32 %v477, %v509
  %v518 = vmul.f32 %v510, 1.442695
  %v519 = vpow.pop %v518
  %v520 = vmul.f32 %v511, 1.442695
  %v521 = vpow.pop %v520
  %v522 = vmul.f32 %v512, 1.442695
  %v523 = vpow.pop %v522
  %v524 = vmul.f32 %v513, 1.442695
  %v525 = vpow.pop %v524
  %v526 = vmul.f32 %v514, 1.442695
  %v527 = vpow.pop %v526
  %v528 = vmul.f32 %v515, 1.442695
  %v529 = vpow.pop %v528
  %v530 = vmul.f32 %v516, 1.442695
  %v531 = vpow.pop %v530
  %v532 = vmul.f32 %v517, 1.442695
  %v533 = vpow.pop %v532
  %535 = vset.pattern.permute.xlu0 0
  %536 = vperm.xlu0 %535, %v502
  %v537 = vpop.permute.xlu0 %536
  %540 = vset.pattern.permute.xlu0 0
  %541 = vperm.xlu0 %540, %v503
  %v542 = vpop.permute.xlu0 %541
  %545 = vset.pattern.permute.xlu0 0
  %546 = vperm.xlu0 %545, %v504
  %v547 = vpop.permute.xlu0 %546
  %550 = vset.pattern.permute.xlu0 0
  %551 = vperm.xlu0 %550, %v505
  %v552 = vpop.permute.xlu0 %551
  %555 = vset.pattern.permute.xlu0 0
  %556 = vperm.xlu0 %555, %v506
  %v557 = vpop.permute.xlu0 %556
  %560 = vset.pattern.permute.xlu0 0
  %561 = vperm.xlu0 %560, %v507
  %v562 = vpop.permute.xlu0 %561
  %565 = vset.pattern.permute.xlu0 0
  %566 = vperm.xlu0 %565, %v508
  %v567 = vpop.permute.xlu0 %566
  %570 = vset.pattern.permute.xlu0 0
  %571 = vperm.xlu0 %570, %v509
  %v572 = vpop.permute.xlu0 %571
  %v574 = vsub.f32 %v462, %v537
  %v575 = vsub.f32 %v463, %v542
  %v576 = vsub.f32 %v464, %v547
  %v577 = vsub.f32 %v465, %v552
  %v578 = vsub.f32 %v466, %v557
  %v579 = vsub.f32 %v467, %v562
  %v580 = vsub.f32 %v468, %v567
  %v581 = vsub.f32 %v469, %v572
  %v582 = vmul.f32 %v574, 1.442695
  %v583 = vpow.pop %v582
  %v584 = vmul.f32 %v575, 1.442695
  %v585 = vpow.pop %v584
  %v586 = vmul.f32 %v576, 1.442695
  %v587 = vpow.pop %v586
  %v588 = vmul.f32 %v577, 1.442695
  %v589 = vpow.pop %v588
  %v590 = vmul.f32 %v578, 1.442695
  %v591 = vpow.pop %v590
  %v592 = vmul.f32 %v579, 1.442695
  %v593 = vpow.pop %v592
  %v594 = vmul.f32 %v580, 1.442695
  %v595 = vpow.pop %v594
  %v596 = vmul.f32 %v581, 1.442695
  %v597 = vpow.pop %v596
  %v598 = vld [vmem:[#allocation3] sm:$0xff]
  %v599 = vld [vmem:[#allocation3 + $0x8] sm:$0xff]
  %v600 = vld [vmem:[#allocation3 + $0x10] sm:$0xff]
  %v601 = vld [vmem:[#allocation3 + $0x18] sm:$0xff]
  %v602 = vld [vmem:[#allocation3 + $0x20] sm:$0xff]
  %v603 = vld [vmem:[#allocation3 + $0x28] sm:$0xff]
  %v604 = vld [vmem:[#allocation3 + $0x30] sm:$0xff]
  %v605 = vld [vmem:[#allocation3 + $0x38] sm:$0xff]
  %v606 = vmul.f32 %v519, %v598
  %v607 = vmul.f32 %v521, %v599
  %v608 = vmul.f32 %v523, %v600
  %v609 = vmul.f32 %v525, %v601
  %v610 = vmul.f32 %v527, %v602
  %v611 = vmul.f32 %v529, %v603
  %v612 = vmul.f32 %v531, %v604
  %v613 = vmul.f32 %v533, %v605
  %v614 = vsel %vm93, %v583, 0.0
  %615 = vadd.xlane.f32.xlu0 %v614
  %v616 = vpop.xlane.xlu0 %615
  %v617 = vsel %vm93, %v585, 0.0
  %618 = vadd.xlane.f32.xlu0 %v617
  %v619 = vpop.xlane.xlu0 %618
  %v620 = vsel %vm93, %v587, 0.0
  %621 = vadd.xlane.f32.xlu0 %v620
  %v622 = vpop.xlane.xlu0 %621
  %v623 = vsel %vm93, %v589, 0.0
  %624 = vadd.xlane.f32.xlu0 %v623
  %v625 = vpop.xlane.xlu0 %624
  %v626 = vsel %vm93, %v591, 0.0
  %627 = vadd.xlane.f32.xlu0 %v626
  %v628 = vpop.xlane.xlu0 %627
  %v629 = vsel %vm93, %v593, 0.0
  %630 = vadd.xlane.f32.xlu0 %v629
  %v631 = vpop.xlane.xlu0 %630
  %v632 = vsel %vm93, %v595, 0.0
  %633 = vadd.xlane.f32.xlu0 %v632
  %v634 = vpop.xlane.xlu0 %633
  %v635 = vsel %vm93, %v597, 0.0
  %636 = vadd.xlane.f32.xlu0 %v635
  %v637 = vpop.xlane.xlu0 %636
  %v638 = vadd.f32 %v606, %v616
  %v639 = vadd.f32 %v607, %v619
  %v640 = vadd.f32 %v608, %v622
  %v641 = vadd.f32 %v609, %v625
  %v642 = vadd.f32 %v610, %v628
  %v643 = vadd.f32 %v611, %v631
  %v644 = vadd.f32 %v612, %v634
  %v645 = vadd.f32 %v613, %v637
  %vm646 = vcmask 7168
  %647 = vst.msk [vmem:[#allocation3] sm:$0xff] %vm646, %v638
  %648 = vst.msk [vmem:[#allocation3 + $0x8] sm:$0xff] %vm646, %v639
  %649 = vst.msk [vmem:[#allocation3 + $0x10] sm:$0xff] %vm646, %v640
  %650 = vst.msk [vmem:[#allocation3 + $0x18] sm:$0xff] %vm646, %v641
  %651 = vst.msk [vmem:[#allocation3 + $0x20] sm:$0xff] %vm646, %v642
  %652 = vst.msk [vmem:[#allocation3 + $0x28] sm:$0xff] %vm646, %v643
  %653 = vst.msk [vmem:[#allocation3 + $0x30] sm:$0xff] %vm646, %v644
  %654 = vst.msk [vmem:[#allocation3 + $0x38] sm:$0xff] %vm646, %v645
  %v655 = vld [vmem:[#allocation4] sm:$0xff]
  %v656 = vld [vmem:[#allocation4 + $0x8] sm:$0xff]
  %v657 = vld [vmem:[#allocation4 + $0x10] sm:$0xff]
  %v658 = vld [vmem:[#allocation4 + $0x18] sm:$0xff]
  %v659 = vld [vmem:[#allocation4 + $0x20] sm:$0xff]
  %v660 = vld [vmem:[#allocation4 + $0x28] sm:$0xff]
  %v661 = vld [vmem:[#allocation4 + $0x30] sm:$0xff]
  %v662 = vld [vmem:[#allocation4 + $0x38] sm:$0xff]
  %664 = vset.pattern.permute.xlu0 0
  %665 = vperm.xlu0 %664, %v519
  %v666 = vpop.permute.xlu0 %665
  %669 = vset.pattern.permute.xlu0 0
  %670 = vperm.xlu0 %669, %v521
  %v671 = vpop.permute.xlu0 %670
  %674 = vset.pattern.permute.xlu0 0
  %675 = vperm.xlu0 %674, %v523
  %v676 = vpop.permute.xlu0 %675
  %679 = vset.pattern.permute.xlu0 0
  %680 = vperm.xlu0 %679, %v525
  %v681 = vpop.permute.xlu0 %680
  %684 = vset.pattern.permute.xlu0 0
  %685 = vperm.xlu0 %684, %v527
  %v686 = vpop.permute.xlu0 %685
  %689 = vset.pattern.permute.xlu0 0
  %690 = vperm.xlu0 %689, %v529
  %v691 = vpop.permute.xlu0 %690
  %694 = vset.pattern.permute.xlu0 0
  %695 = vperm.xlu0 %694, %v531
  %v696 = vpop.permute.xlu0 %695
  %699 = vset.pattern.permute.xlu0 0
  %700 = vperm.xlu0 %699, %v533
  %v701 = vpop.permute.xlu0 %700
  %v703 = vmul.f32 %v666, %v655
  %v704 = vmul.f32 %v671, %v656
  %v705 = vmul.f32 %v676, %v657
  %v706 = vmul.f32 %v681, %v658
  %v707 = vmul.f32 %v686, %v659
  %v708 = vmul.f32 %v691, %v660
  %v709 = vmul.f32 %v696, %v661
  %v710 = vmul.f32 %v701, %v662
  %v711 = vpack.c.bf16 %v583, %v583
  %v712 = vpack.c.bf16 %v585, %v585
  %v713 = vpack.c.bf16 %v587, %v587
  %v714 = vpack.c.bf16 %v589, %v589
  %v715 = vpack.c.bf16 %v591, %v591
  %v716 = vpack.c.bf16 %v593, %v593
  %v717 = vpack.c.bf16 %v595, %v595
  %v718 = vpack.c.bf16 %v597, %v597
  %v720 = vsel %vm93, %v711, 0
  %vm722 = vcmask 1043456
  %v724 = vsel %vm722, %v85, 0
  %726 = vmatprep.subr.bf16.mxu0 0
  %727 = vmatpush1.bf16.msra.mxu0 0
  %728 = vmatprep.subr.bf16.mxu0 0
  %729 = vmatpush1.bf16.msra.mxu0 0
  %730 = vmatprep.subr.bf16.mxu0 0
  %731 = vmatpush1.bf16.msra.mxu0 0
  %732 = vmatprep.subr.bf16.mxu0 0
  %733 = vmatpush1.bf16.msra.mxu0 0
  %734 = vmatprep.subr.bf16.mxu0 0
  %735 = vmatpush1.bf16.msra.mxu0 0
  %736 = vmatprep.subr.bf16.mxu0 0
  %737 = vmatpush1.bf16.msra.mxu0 0
  %738 = vmatprep.subr.bf16.mxu0 0
  %739 = vmatpush1.bf16.msra.mxu0 0
  %740 = vmatprep.subr.bf16.mxu0 0
  %741 = vmatpush1.bf16.msra.mxu0 %v724
  %742 = vmatprep.subr.bf16.mxu0 0
  %743 = vmatpush2.bf16.msra.mxu0 0
  %744 = vmatprep.subr.bf16.mxu0 0
  %745 = vmatpush2.bf16.msra.mxu0 0
  %746 = vmatprep.subr.bf16.mxu0 0
  %747 = vmatpush2.bf16.msra.mxu0 0
  %748 = vmatprep.subr.bf16.mxu0 0
  %749 = vmatpush2.bf16.msra.mxu0 0
  %750 = vmatprep.subr.bf16.mxu0 0
  %751 = vmatpush2.bf16.msra.mxu0 0
  %752 = vmatprep.subr.bf16.mxu0 0
  %753 = vmatpush2.bf16.msra.mxu0 0
  %754 = vmatprep.subr.bf16.mxu0 0
  %755 = vmatpush2.bf16.msra.mxu0 0
  %756 = vmatprep.subr.bf16.mxu0 0
  %757 = vmatpush2.bf16.msra.mxu0 0
  %758 = vmatprep.mubr.bf16.mxu0 0
  %759 = vmatmul.mubr.bf16.gmra.mxu0 %v720
  %v760 = vpop.f32.mrf.mxu0
  %v761 = vadd.f32 0.0, %v760
  %v762 = vpop.f32.mrf.mxu0
  %v763 = vpop.f32.mrf.mxu0
  %v764 = vpop.f32.mrf.mxu0
  %765 = vdwg.mxu0
  %v767 = vsel %vm93, %v712, 0
  %v770 = vsel %vm722, %v86, 0
  %772 = vmatprep.subr.bf16.mxu0 0
  %773 = vmatpush1.bf16.msra.mxu0 0
  %774 = vmatprep.subr.bf16.mxu0 0
  %775 = vmatpush1.bf16.msra.mxu0 0
  %776 = vmatprep.subr.bf16.mxu0 0
  %777 = vmatpush1.bf16.msra.mxu0 0
  %778 = vmatprep.subr.bf16.mxu0 0
  %779 = vmatpush1.bf16.msra.mxu0 0
  %780 = vmatprep.subr.bf16.mxu0 0
  %781 = vmatpush1.bf16.msra.mxu0 0
  %782 = vmatprep.subr.bf16.mxu0 0
  %783 = vmatpush1.bf16.msra.mxu0 0
  %784 = vmatprep.subr.bf16.mxu0 0
  %785 = vmatpush1.bf16.msra.mxu0 0
  %786 = vmatprep.subr.bf16.mxu0 0
  %787 = vmatpush1.bf16.msra.mxu0 %v770
  %788 = vmatprep.subr.bf16.mxu0 0
  %789 = vmatpush2.bf16.msra.mxu0 0
  %790 = vmatprep.subr.bf16.mxu0 0
  %791 = vmatpush2.bf16.msra.mxu0 0
  %792 = vmatprep.subr.bf16.mxu0 0
  %793 = vmatpush2.bf16.msra.mxu0 0
  %794 = vmatprep.subr.bf16.mxu0 0
  %795 = vmatpush2.bf16.msra.mxu0 0
  %796 = vmatprep.subr.bf16.mxu0 0
  %797 = vmatpush2.bf16.msra.mxu0 0
  %798 = vmatprep.subr.bf16.mxu0 0
  %799 = vmatpush2.bf16.msra.mxu0 0
  %800 = vmatprep.subr.bf16.mxu0 0
  %801 = vmatpush2.bf16.msra.mxu0 0
  %802 = vmatprep.subr.bf16.mxu0 0
  %803 = vmatpush2.bf16.msra.mxu0 0
  %804 = vmatprep.mubr.bf16.mxu0 0
  %805 = vmatmul.mubr.bf16.gmra.mxu0 %v767
  %v806 = vpop.f32.mrf.mxu0
  %v807 = vadd.f32 0.0, %v806
  %v808 = vpop.f32.mrf.mxu0
  %v809 = vpop.f32.mrf.mxu0
  %v810 = vpop.f32.mrf.mxu0
  %811 = vdwg.mxu0
  %v813 = vsel %vm93, %v713, 0
  %v816 = vsel %vm722, %v87, 0
  %818 = vmatprep.subr.bf16.mxu0 0
  %819 = vmatpush1.bf16.msra.mxu0 0
  %820 = vmatprep.subr.bf16.mxu0 0
  %821 = vmatpush1.bf16.msra.mxu0 0
  %822 = vmatprep.subr.bf16.mxu0 0
  %823 = vmatpush1.bf16.msra.mxu0 0
  %824 = vmatprep.subr.bf16.mxu0 0
  %825 = vmatpush1.bf16.msra.mxu0 0
  %826 = vmatprep.subr.bf16.mxu0 0
  %827 = vmatpush1.bf16.msra.mxu0 0
  %828 = vmatprep.subr.bf16.mxu0 0
  %829 = vmatpush1.bf16.msra.mxu0 0
  %830 = vmatprep.subr.bf16.mxu0 0
  %831 = vmatpush1.bf16.msra.mxu0 0
  %832 = vmatprep.subr.bf16.mxu0 0
  %833 = vmatpush1.bf16.msra.mxu0 %v816
  %834 = vmatprep.subr.bf16.mxu0 0
  %835 = vmatpush2.bf16.msra.mxu0 0
  %836 = vmatprep.subr.bf16.mxu0 0
  %837 = vmatpush2.bf16.msra.mxu0 0
  %838 = vmatprep.subr.bf16.mxu0 0
  %839 = vmatpush2.bf16.msra.mxu0 0
  %840 = vmatprep.subr.bf16.mxu0 0
  %841 = vmatpush2.bf16.msra.mxu0 0
  %842 = vmatprep.subr.bf16.mxu0 0
  %843 = vmatpush2.bf16.msra.mxu0 0
  %844 = vmatprep.subr.bf16.mxu0 0
  %845 = vmatpush2.bf16.msra.mxu0 0
  %846 = vmatprep.subr.bf16.mxu0 0
  %847 = vmatpush2.bf16.msra.mxu0 0
  %848 = vmatprep.subr.bf16.mxu0 0
  %849 = vmatpush2.bf16.msra.mxu0 0
  %850 = vmatprep.mubr.bf16.mxu0 0
  %851 = vmatmul.mubr.bf16.gmra.mxu0 %v813
  %v852 = vpop.f32.mrf.mxu0
  %v853 = vadd.f32 0.0, %v852
  %v854 = vpop.f32.mrf.mxu0
  %v855 = vpop.f32.mrf.mxu0
  %v856 = vpop.f32.mrf.mxu0
  %857 = vdwg.mxu0
  %v859 = vsel %vm93, %v714, 0
  %v862 = vsel %vm722, %v88, 0
  %864 = vmatprep.subr.bf16.mxu0 0
  %865 = vmatpush1.bf16.msra.mxu0 0
  %866 = vmatprep.subr.bf16.mxu0 0
  %867 = vmatpush1.bf16.msra.mxu0 0
  %868 = vmatprep.subr.bf16.mxu0 0
  %869 = vmatpush1.bf16.msra.mxu0 0
  %870 = vmatprep.subr.bf16.mxu0 0
  %871 = vmatpush1.bf16.msra.mxu0 0
  %872 = vmatprep.subr.bf16.mxu0 0
  %873 = vmatpush1.bf16.msra.mxu0 0
  %874 = vmatprep.subr.bf16.mxu0 0
  %875 = vmatpush1.bf16.msra.mxu0 0
  %876 = vmatprep.subr.bf16.mxu0 0
  %877 = vmatpush1.bf16.msra.mxu0 0
  %878 = vmatprep.subr.bf16.mxu0 0
  %879 = vmatpush1.bf16.msra.mxu0 %v862
  %880 = vmatprep.subr.bf16.mxu0 0
  %881 = vmatpush2.bf16.msra.mxu0 0
  %882 = vmatprep.subr.bf16.mxu0 0
  %883 = vmatpush2.bf16.msra.mxu0 0
  %884 = vmatprep.subr.bf16.mxu0 0
  %885 = vmatpush2.bf16.msra.mxu0 0
  %886 = vmatprep.subr.bf16.mxu0 0
  %887 = vmatpush2.bf16.msra.mxu0 0
  %888 = vmatprep.subr.bf16.mxu0 0
  %889 = vmatpush2.bf16.msra.mxu0 0
  %890 = vmatprep.subr.bf16.mxu0 0
  %891 = vmatpush2.bf16.msra.mxu0 0
  %892 = vmatprep.subr.bf16.mxu0 0
  %893 = vmatpush2.bf16.msra.mxu0 0
  %894 = vmatprep.subr.bf16.mxu0 0
  %895 = vmatpush2.bf16.msra.mxu0 0
  %896 = vmatprep.mubr.bf16.mxu0 0
  %897 = vmatmul.mubr.bf16.gmra.mxu0 %v859
  %v898 = vpop.f32.mrf.mxu0
  %v899 = vadd.f32 0.0, %v898
  %v900 = vpop.f32.mrf.mxu0
  %v901 = vpop.f32.mrf.mxu0
  %v902 = vpop.f32.mrf.mxu0
  %903 = vdwg.mxu0
  %v905 = vsel %vm93, %v715, 0
  %v908 = vsel %vm722, %v89, 0
  %910 = vmatprep.subr.bf16.mxu0 0
  %911 = vmatpush1.bf16.msra.mxu0 0
  %912 = vmatprep.subr.bf16.mxu0 0
  %913 = vmatpush1.bf16.msra.mxu0 0
  %914 = vmatprep.subr.bf16.mxu0 0
  %915 = vmatpush1.bf16.msra.mxu0 0
  %916 = vmatprep.subr.bf16.mxu0 0
  %917 = vmatpush1.bf16.msra.mxu0 0
  %918 = vmatprep.subr.bf16.mxu0 0
  %919 = vmatpush1.bf16.msra.mxu0 0
  %920 = vmatprep.subr.bf16.mxu0 0
  %921 = vmatpush1.bf16.msra.mxu0 0
  %922 = vmatprep.subr.bf16.mxu0 0
  %923 = vmatpush1.bf16.msra.mxu0 0
  %924 = vmatprep.subr.bf16.mxu0 0
  %925 = vmatpush1.bf16.msra.mxu0 %v908
  %926 = vmatprep.subr.bf16.mxu0 0
  %927 = vmatpush2.bf16.msra.mxu0 0
  %928 = vmatprep.subr.bf16.mxu0 0
  %929 = vmatpush2.bf16.msra.mxu0 0
  %930 = vmatprep.subr.bf16.mxu0 0
  %931 = vmatpush2.bf16.msra.mxu0 0
  %932 = vmatprep.subr.bf16.mxu0 0
  %933 = vmatpush2.bf16.msra.mxu0 0
  %934 = vmatprep.subr.bf16.mxu0 0
  %935 = vmatpush2.bf16.msra.mxu0 0
  %936 = vmatprep.subr.bf16.mxu0 0
  %937 = vmatpush2.bf16.msra.mxu0 0
  %938 = vmatprep.subr.bf16.mxu0 0
  %939 = vmatpush2.bf16.msra.mxu0 0
  %940 = vmatprep.subr.bf16.mxu0 0
  %941 = vmatpush2.bf16.msra.mxu0 0
  %942 = vmatprep.mubr.bf16.mxu0 0
  %943 = vmatmul.mubr.bf16.gmra.mxu0 %v905
  %v944 = vpop.f32.mrf.mxu0
  %v945 = vadd.f32 0.0, %v944
  %v946 = vpop.f32.mrf.mxu0
  %v947 = vpop.f32.mrf.mxu0
  %v948 = vpop.f32.mrf.mxu0
  %949 = vdwg.mxu0
  %v951 = vsel %vm93, %v716, 0
  %v954 = vsel %vm722, %v90, 0
  %956 = vmatprep.subr.bf16.mxu0 0
  %957 = vmatpush1.bf16.msra.mxu0 0
  %958 = vmatprep.subr.bf16.mxu0 0
  %959 = vmatpush1.bf16.msra.mxu0 0
  %960 = vmatprep.subr.bf16.mxu0 0
  %961 = vmatpush1.bf16.msra.mxu0 0
  %962 = vmatprep.subr.bf16.mxu0 0
  %963 = vmatpush1.bf16.msra.mxu0 0
  %964 = vmatprep.subr.bf16.mxu0 0
  %965 = vmatpush1.bf16.msra.mxu0 0
  %966 = vmatprep.subr.bf16.mxu0 0
  %967 = vmatpush1.bf16.msra.mxu0 0
  %968 = vmatprep.subr.bf16.mxu0 0
  %969 = vmatpush1.bf16.msra.mxu0 0
  %970 = vmatprep.subr.bf16.mxu0 0
  %971 = vmatpush1.bf16.msra.mxu0 %v954
  %972 = vmatprep.subr.bf16.mxu0 0
  %973 = vmatpush2.bf16.msra.mxu0 0
  %974 = vmatprep.subr.bf16.mxu0 0
  %975 = vmatpush2.bf16.msra.mxu0 0
  %976 = vmatprep.subr.bf16.mxu0 0
  %977 = vmatpush2.bf16.msra.mxu0 0
  %978 = vmatprep.subr.bf16.mxu0 0
  %979 = vmatpush2.bf16.msra.mxu0 0
  %980 = vmatprep.subr.bf16.mxu0 0
  %981 = vmatpush2.bf16.msra.mxu0 0
  %982 = vmatprep.subr.bf16.mxu0 0
  %983 = vmatpush2.bf16.msra.mxu0 0
  %984 = vmatprep.subr.bf16.mxu0 0
  %985 = vmatpush2.bf16.msra.mxu0 0
  %986 = vmatprep.subr.bf16.mxu0 0
  %987 = vmatpush2.bf16.msra.mxu0 0
  %988 = vmatprep.mubr.bf16.mxu0 0
  %989 = vmatmul.mubr.bf16.gmra.mxu0 %v951
  %v990 = vpop.f32.mrf.mxu0
  %v991 = vadd.f32 0.0, %v990
  %v992 = vpop.f32.mrf.mxu0
  %v993 = vpop.f32.mrf.mxu0
  %v994 = vpop.f32.mrf.mxu0
  %995 = vdwg.mxu0
  %v997 = vsel %vm93, %v717, 0
  %v1000 = vsel %vm722, %v91, 0
  %1002 = vmatprep.subr.bf16.mxu0 0
  %1003 = vmatpush1.bf16.msra.mxu0 0
  %1004 = vmatprep.subr.bf16.mxu0 0
  %1005 = vmatpush1.bf16.msra.mxu0 0
  %1006 = vmatprep.subr.bf16.mxu0 0
  %1007 = vmatpush1.bf16.msra.mxu0 0
  %1008 = vmatprep.subr.bf16.mxu0 0
  %1009 = vmatpush1.bf16.msra.mxu0 0
  %1010 = vmatprep.subr.bf16.mxu0 0
  %1011 = vmatpush1.bf16.msra.mxu0 0
  %1012 = vmatprep.subr.bf16.mxu0 0
  %1013 = vmatpush1.bf16.msra.mxu0 0
  %1014 = vmatprep.subr.bf16.mxu0 0
  %1015 = vmatpush1.bf16.msra.mxu0 0
  %1016 = vmatprep.subr.bf16.mxu0 0
  %1017 = vmatpush1.bf16.msra.mxu0 %v1000
  %1018 = vmatprep.subr.bf16.mxu0 0
  %1019 = vmatpush2.bf16.msra.mxu0 0
  %1020 = vmatprep.subr.bf16.mxu0 0
  %1021 = vmatpush2.bf16.msra.mxu0 0
  %1022 = vmatprep.subr.bf16.mxu0 0
  %1023 = vmatpush2.bf16.msra.mxu0 0
  %1024 = vmatprep.subr.bf16.mxu0 0
  %1025 = vmatpush2.bf16.msra.mxu0 0
  %1026 = vmatprep.subr.bf16.mxu0 0
  %1027 = vmatpush2.bf16.msra.mxu0 0
  %1028 = vmatprep.subr.bf16.mxu0 0
  %1029 = vmatpush2.bf16.msra.mxu0 0
  %1030 = vmatprep.subr.bf16.mxu0 0
  %1031 = vmatpush2.bf16.msra.mxu0 0
  %1032 = vmatprep.subr.bf16.mxu0 0
  %1033 = vmatpush2.bf16.msra.mxu0 0
  %1034 = vmatprep.mubr.bf16.mxu0 0
  %1035 = vmatmul.mubr.bf16.gmra.mxu0 %v997
  %v1036 = vpop.f32.mrf.mxu0
  %v1037 = vadd.f32 0.0, %v1036
  %v1038 = vpop.f32.mrf.mxu0
  %v1039 = vpop.f32.mrf.mxu0
  %v1040 = vpop.f32.mrf.mxu0
  %1041 = vdwg.mxu0
  %v1043 = vsel %vm93, %v718, 0
  %v1046 = vsel %vm722, %v92, 0
  %1048 = vmatprep.subr.bf16.mxu0 0
  %1049 = vmatpush1.bf16.msra.mxu0 0
  %1050 = vmatprep.subr.bf16.mxu0 0
  %1051 = vmatpush1.bf16.msra.mxu0 0
  %1052 = vmatprep.subr.bf16.mxu0 0
  %1053 = vmatpush1.bf16.msra.mxu0 0
  %1054 = vmatprep.subr.bf16.mxu0 0
  %1055 = vmatpush1.bf16.msra.mxu0 0
  %1056 = vmatprep.subr.bf16.mxu0 0
  %1057 = vmatpush1.bf16.msra.mxu0 0
  %1058 = vmatprep.subr.bf16.mxu0 0
  %1059 = vmatpush1.bf16.msra.mxu0 0
  %1060 = vmatprep.subr.bf16.mxu0 0
  %1061 = vmatpush1.bf16.msra.mxu0 0
  %1062 = vmatprep.subr.bf16.mxu0 0
  %1063 = vmatpush1.bf16.msra.mxu0 %v1046
  %1064 = vmatprep.subr.bf16.mxu0 0
  %1065 = vmatpush2.bf16.msra.mxu0 0
  %1066 = vmatprep.subr.bf16.mxu0 0
  %1067 = vmatpush2.bf16.msra.mxu0 0
  %1068 = vmatprep.subr.bf16.mxu0 0
  %1069 = vmatpush2.bf16.msra.mxu0 0
  %1070 = vmatprep.subr.bf16.mxu0 0
  %1071 = vmatpush2.bf16.msra.mxu0 0
  %1072 = vmatprep.subr.bf16.mxu0 0
  %1073 = vmatpush2.bf16.msra.mxu0 0
  %1074 = vmatprep.subr.bf16.mxu0 0
  %1075 = vmatpush2.bf16.msra.mxu0 0
  %1076 = vmatprep.subr.bf16.mxu0 0
  %1077 = vmatpush2.bf16.msra.mxu0 0
  %1078 = vmatprep.subr.bf16.mxu0 0
  %1079 = vmatpush2.bf16.msra.mxu0 0
  %1080 = vmatprep.mubr.bf16.mxu0 0
  %1081 = vmatmul.mubr.bf16.gmra.mxu0 %v1043
  %v1082 = vpop.f32.mrf.mxu0
  %v1083 = vadd.f32 0.0, %v1082
  %v1084 = vpop.f32.mrf.mxu0
  %v1085 = vpop.f32.mrf.mxu0
  %v1086 = vpop.f32.mrf.mxu0
  %1087 = vdwg.mxu0
  %v1088 = vadd.f32 %v703, %v761
  %v1089 = vadd.f32 %v704, %v807
  %v1090 = vadd.f32 %v705, %v853
  %v1091 = vadd.f32 %v706, %v899
  %v1092 = vadd.f32 %v707, %v945
  %v1093 = vadd.f32 %v708, %v991
  %v1094 = vadd.f32 %v709, %v1037
  %v1095 = vadd.f32 %v710, %v1083
  %1096 = vst.msk [vmem:[#allocation4] sm:$0xff] %vm93, %v1088
  %1097 = vst.msk [vmem:[#allocation4 + $0x8] sm:$0xff] %vm93, %v1089
  %1098 = vst.msk [vmem:[#allocation4 + $0x10] sm:$0xff] %vm93, %v1090
  %1099 = vst.msk [vmem:[#allocation4 + $0x18] sm:$0xff] %vm93, %v1091
  %1100 = vst.msk [vmem:[#allocation4 + $0x20] sm:$0xff] %vm93, %v1092
  %1101 = vst.msk [vmem:[#allocation4 + $0x28] sm:$0xff] %vm93, %v1093
  %1102 = vst.msk [vmem:[#allocation4 + $0x30] sm:$0xff] %vm93, %v1094
  %1103 = vst.msk [vmem:[#allocation4 + $0x38] sm:$0xff] %vm93, %v1095
  %1104 = vst.msk [vmem:[#allocation2] sm:$0xff] %vm646, %v502
  %1105 = vst.msk [vmem:[#allocation2 + $0x8] sm:$0xff] %vm646, %v503
  %1106 = vst.msk [vmem:[#allocation2 + $0x10] sm:$0xff] %vm646, %v504
  %1107 = vst.msk [vmem:[#allocation2 + $0x18] sm:$0xff] %vm646, %v505
  %1108 = vst.msk [vmem:[#allocation2 + $0x20] sm:$0xff] %vm646, %v506
  %1109 = vst.msk [vmem:[#allocation2 + $0x28] sm:$0xff] %vm646, %v507
  %1110 = vst.msk [vmem:[#allocation2 + $0x30] sm:$0xff] %vm646, %v508
  %1111 = vst.msk [vmem:[#allocation2 + $0x38] sm:$0xff] %vm646, %v509
  // Predicated region
  $region18: #{patch_mixer_forward.11} parent=0 // pred_check
    %p1112 = pneg %p15
  $region19: #{patch_mixer_forward.11} parent=0 // pred_check_branch
    %1114 = sbr.rel (%p1112) target = $region21
  $region20: #{patch_mixer_forward.11} parent=0 // pred_region
    %v1115 = vld [vmem:[#allocation3] sm:$0xff]
    %v1116 = vld [vmem:[#allocation3 + $0x8] sm:$0xff]
    %v1117 = vld [vmem:[#allocation3 + $0x10] sm:$0xff]
    %v1118 = vld [vmem:[#allocation3 + $0x18] sm:$0xff]
    %v1119 = vld [vmem:[#allocation3 + $0x20] sm:$0xff]
    %v1120 = vld [vmem:[#allocation3 + $0x28] sm:$0xff]
    %v1121 = vld [vmem:[#allocation3 + $0x30] sm:$0xff]
    %v1122 = vld [vmem:[#allocation3 + $0x38] sm:$0xff]
    %v1123 = vrcp.pop %v1115
    %v1124 = vrcp.pop %v1116
    %v1125 = vrcp.pop %v1117
    %v1126 = vrcp.pop %v1118
    %v1127 = vrcp.pop %v1119
    %v1128 = vrcp.pop %v1120
    %v1129 = vrcp.pop %v1121
    %v1130 = vrcp.pop %v1122
    %v1131 = vld [vmem:[#allocation4] sm:$0xff]
    %v1132 = vld [vmem:[#allocation4 + $0x8] sm:$0xff]
    %v1133 = vld [vmem:[#allocation4 + $0x10] sm:$0xff]
    %v1134 = vld [vmem:[#allocation4 + $0x18] sm:$0xff]
    %v1135 = vld [vmem:[#allocation4 + $0x20] sm:$0xff]
    %v1136 = vld [vmem:[#allocation4 + $0x28] sm:$0xff]
    %v1137 = vld [vmem:[#allocation4 + $0x30] sm:$0xff]
    %v1138 = vld [vmem:[#allocation4 + $0x38] sm:$0xff]
    %1140 = vset.pattern.permute.xlu0 0
    %1141 = vperm.xlu0 %1140, %v1123
    %v1142 = vpop.permute.xlu0 %1141
    %1145 = vset.pattern.permute.xlu0 0
    %1146 = vperm.xlu0 %1145, %v1124
    %v1147 = vpop.permute.xlu0 %1146
    %1150 = vset.pattern.permute.xlu0 0
    %1151 = vperm.xlu0 %1150, %v1125
    %v1152 = vpop.permute.xlu0 %1151
    %1155 = vset.pattern.permute.xlu0 0
    %1156 = vperm.xlu0 %1155, %v1126
    %v1157 = vpop.permute.xlu0 %1156
    %1160 = vset.pattern.permute.xlu0 0
    %1161 = vperm.xlu0 %1160, %v1127
    %v1162 = vpop.permute.xlu0 %1161
    %1165 = vset.pattern.permute.xlu0 0
    %1166 = vperm.xlu0 %1165, %v1128
    %v1167 = vpop.permute.xlu0 %1166
    %1170 = vset.pattern.permute.xlu0 0
    %1171 = vperm.xlu0 %1170, %v1129
    %v1172 = vpop.permute.xlu0 %1171
    %1175 = vset.pattern.permute.xlu0 0
    %1176 = vperm.xlu0 %1175, %v1130
    %v1177 = vpop.permute.xlu0 %1176
    %v1179 = vmul.f32 %v1131, %v1142
    %v1180 = vmul.f32 %v1132, %v1147
    %v1181 = vmul.f32 %v1133, %v1152
    %v1182 = vmul.f32 %v1134, %v1157
    %v1183 = vmul.f32 %v1135, %v1162
    %v1184 = vmul.f32 %v1136, %v1167
    %v1185 = vmul.f32 %v1137, %v1172
    %v1186 = vmul.f32 %v1138, %v1177
    %1187 = vst.msk [vmem:[%s3] sm:$0xff] %vm93, %v1179
    %1188 = vst.msk [vmem:[%s3 + $0x8] sm:$0xff] %vm93, %v1180
    %1189 = vst.msk [vmem:[%s3 + $0x10] sm:$0xff] %vm93, %v1181
    %1190 = vst.msk [vmem:[%s3 + $0x18] sm:$0xff] %vm93, %v1182
    %1191 = vst.msk [vmem:[%s3 + $0x20] sm:$0xff] %vm93, %v1183
    %1192 = vst.msk [vmem:[%s3 + $0x28] sm:$0xff] %vm93, %v1184
    %1193 = vst.msk [vmem:[%s3 + $0x30] sm:$0xff] %vm93, %v1185
    %1194 = vst.msk [vmem:[%s3 + $0x38] sm:$0xff] %vm93, %v1186
  $region21: #{patch_mixer_forward.11} parent=0 // pred_fallthru
    _
  // Predicated region
  $region22: #{patch_mixer_forward.11} parent=0 // pred_check
    _
  $region23: #{patch_mixer_forward.11} parent=0 // pred_check_branch
    %1196 = sbr.rel (0) target = $region25
  $region24: #{patch_mixer_forward.11} parent=0 // pred_region
    _
  $region25: #{patch_mixer_forward.11} parent=0 // pred_fallthru
    _
  // Predicated region
  $region26: #{patch_mixer_forward.11} parent=0 // pred_check
    _
  $region27: #{patch_mixer_forward.11} parent=0 // pred_check_branch
    %1198 = sbr.rel (0) target = $region29
  $region28: #{patch_mixer_forward.11} parent=0 // pred_region
    _
  $region29: #{patch_mixer_forward.11} parent=0 // pred_fallthru
    _

// kernel: patch_mixer_forward.14
$region0: #{patch_mixer_forward.14}
  #allocation0 [shape = 'u32[]', space=smem, size = 0x4, offset = 0x4, fixed_abs, tag = 'smem constant byte address 0x4 - core index']
  #allocation1 [shape = 'u32[144,128]{1,0:T(1,128)}', space=vmem, size = 0x12000, scoped, tag = 'internal scratch']
  %s0 = inlined_call_operand.vmem [shape: f32[16,2048], index: 0, kind: input, shape index: {}]
  %s1 = inlined_call_operand.vmem [shape: f32[2048,32], index: 1, kind: input, shape index: {}]
  %s2 = inlined_call_operand.vmem [shape: f32[1,32], index: 2, kind: input, shape index: {}]
  %s3 = inlined_call_operand.vmem [shape: f32[16,32], index: 3, kind: input, shape index: {}]
  %s4 = inlined_call_operand.vmem [shape: f32[1,32], index: 4, kind: input, shape index: {}]
  %s5 = inlined_call_operand.vmem [shape: f32[1,32], index: 5, kind: input, shape index: {}]
  %s6 = inlined_call_operand.vmem [shape: f32[16,32], index: 6, kind: output, shape index: {}]
  %s7 = sld [smem:[#allocation0]]
  $region34: #{patch_mixer_forward.14} parent=0
    _
  %s9 = ssub.s32 1, %s7
  %s10 = scalar_select 0, %s9, %s7
  // Predicated region
  $region2: #{patch_mixer_forward.14} parent=0 // pred_check
    _
  $region3: #{patch_mixer_forward.14} parent=0 // pred_check_branch
    %12 = sbr.rel (0) target = $region5
  $region4: #{patch_mixer_forward.14} parent=0 // pred_region
    _
  $region5: #{patch_mixer_forward.14} parent=0 // pred_fallthru
    _
  // Predicated region
  $region6: #{patch_mixer_forward.14} parent=0 // pred_check
    _
  $region7: #{patch_mixer_forward.14} parent=0 // pred_check_branch
    %14 = sbr.rel (0) target = $region9
  $region8: #{patch_mixer_forward.14} parent=0 // pred_region
    _
  $region9: #{patch_mixer_forward.14} parent=0 // pred_fallthru
    _
  // Predicated region
  $region10: #{patch_mixer_forward.14} parent=0 // pred_check
    _
  $region11: #{patch_mixer_forward.14} parent=0 // pred_check_branch
    %16 = sbr.rel (0) target = $region13
  $region12: #{patch_mixer_forward.14} parent=0 // pred_region
    _
  $region13: #{patch_mixer_forward.14} parent=0 // pred_fallthru
    _
  // Predicated region
  $region14: #{patch_mixer_forward.14} parent=0 // pred_check
    _
  $region15: #{patch_mixer_forward.14} parent=0 // pred_check_branch
    %18 = sbr.rel (0) target = $region17
  $region16: #{patch_mixer_forward.14} parent=0 // pred_region
    _
  $region17: #{patch_mixer_forward.14} parent=0 // pred_fallthru
    _
  // Predicated region
  $region18: #{patch_mixer_forward.14} parent=0 // pred_check
    _
  $region19: #{patch_mixer_forward.14} parent=0 // pred_check_branch
    %20 = sbr.rel (0) target = $region21
  $region20: #{patch_mixer_forward.14} parent=0 // pred_region
    _
  $region21: #{patch_mixer_forward.14} parent=0 // pred_fallthru
    _
  // Predicated region
  $region22: #{patch_mixer_forward.14} parent=0 // pred_check
    _
  $region23: #{patch_mixer_forward.14} parent=0 // pred_check_branch
    %22 = sbr.rel (0) target = $region25
  $region24: #{patch_mixer_forward.14} parent=0 // pred_region
    _
  $region25: #{patch_mixer_forward.14} parent=0 // pred_fallthru
    _
  %v24 = vld [vmem:[%s0] sm:$0xff]
  %v25 = vld [vmem:[%s0 + $0x8] sm:$0xff]
  %v26 = vld [vmem:[%s0 + $0x10] sm:$0xff]
  %v27 = vld [vmem:[%s0 + $0x18] sm:$0xff]
  %v28 = vld [vmem:[%s0 + $0x20] sm:$0xff]
  %v29 = vld [vmem:[%s0 + $0x28] sm:$0xff]
  %v30 = vld [vmem:[%s0 + $0x30] sm:$0xff]
  %v31 = vld [vmem:[%s0 + $0x38] sm:$0xff]
  %v32 = vld [vmem:[%s0 + $0x40] sm:$0xff]
  %v33 = vld [vmem:[%s0 + $0x48] sm:$0xff]
  %v34 = vld [vmem:[%s0 + $0x50] sm:$0xff]
  %v35 = vld [vmem:[%s0 + $0x58] sm:$0xff]
  %v36 = vld [vmem:[%s0 + $0x60] sm:$0xff]
  %v37 = vld [vmem:[%s0 + $0x68] sm:$0xff]
  %v38 = vld [vmem:[%s0 + $0x70] sm:$0xff]
  %v39 = vld [vmem:[%s0 + $0x78] sm:$0xff]
  %v40 = vld [vmem:[%s0 + $0x80] sm:$0xff]
  %v41 = vld [vmem:[%s0 + $0x88] sm:$0xff]
  %v42 = vld [vmem:[%s0 + $0x90] sm:$0xff]
  %v43 = vld [vmem:[%s0 + $0x98] sm:$0xff]
  %v44 = vld [vmem:[%s0 + $0xa0] sm:$0xff]
  %v45 = vld [vmem:[%s0 + $0xa8] sm:$0xff]
  %v46 = vld [vmem:[%s0 + $0xb0] sm:$0xff]
  %v47 = vld [vmem:[%s0 + $0xb8] sm:$0xff]
  %v48 = vld [vmem:[%s0 + $0xc0] sm:$0xff]
  %v49 = vld [vmem:[%s0 + $0xc8] sm:$0xff]
  %v50 = vld [vmem:[%s0 + $0xd0] sm:$0xff]
  %v51 = vld [vmem:[%s0 + $0xd8] sm:$0xff]
  %v52 = vld [vmem:[%s0 + $0xe0] sm:$0xff]
  %v53 = vld [vmem:[%s0 + $0xe8] sm:$0xff]
  %v54 = vld [vmem:[%s0 + $0xf0] sm:$0xff]
  %v55 = vld [vmem:[%s0 + $0xf8] sm:$0xff]
  %v56 = vpack.c.bf16 %v40, %v24
  %v57 = vpack.c.bf16 %v41, %v25
  %v58 = vpack.c.bf16 %v42, %v26
  %v59 = vpack.c.bf16 %v43, %v27
  %v60 = vpack.c.bf16 %v44, %v28
  %v61 = vpack.c.bf16 %v45, %v29
  %v62 = vpack.c.bf16 %v46, %v30
  %v63 = vpack.c.bf16 %v47, %v31
  %v64 = vpack.c.bf16 %v48, %v32
  %v65 = vpack.c.bf16 %v49, %v33
  %v66 = vpack.c.bf16 %v50, %v34
  %v67 = vpack.c.bf16 %v51, %v35
  %v68 = vpack.c.bf16 %v52, %v36
  %v69 = vpack.c.bf16 %v53, %v37
  %v70 = vpack.c.bf16 %v54, %v38
  %v71 = vpack.c.bf16 %v55, %v39
  %v72 = vld [vmem:[%s1] sm:$0xff]
  %v73 = vld [vmem:[%s1 + $0x8] sm:$0xff]
  %v74 = vld [vmem:[%s1 + $0x10] sm:$0xff]
  %v75 = vld [vmem:[%s1 + $0x18] sm:$0xff]
  %v76 = vld [vmem:[%s1 + $0x20] sm:$0xff]
  %v77 = vld [vmem:[%s1 + $0x28] sm:$0xff]
  %v78 = vld [vmem:[%s1 + $0x30] sm:$0xff]
  %v79 = vld [vmem:[%s1 + $0x38] sm:$0xff]
  %v80 = vld [vmem:[%s1 + $0x40] sm:$0xff]
  %v81 = vld [vmem:[%s1 + $0x48] sm:$0xff]
  %v82 = vld [vmem:[%s1 + $0x50] sm:$0xff]
  %v83 = vld [vmem:[%s1 + $0x58] sm:$0xff]
  %v84 = vld [vmem:[%s1 + $0x60] sm:$0xff]
  %v85 = vld [vmem:[%s1 + $0x68] sm:$0xff]
  %v86 = vld [vmem:[%s1 + $0x70] sm:$0xff]
  %v87 = vld [vmem:[%s1 + $0x78] sm:$0xff]
  %v88 = vld [vmem:[%s1 + $0x80] sm:$0xff]
  %v89 = vld [vmem:[%s1 + $0x88] sm:$0xff]
  %v90 = vld [vmem:[%s1 + $0x90] sm:$0xff]
  %v91 = vld [vmem:[%s1 + $0x98] sm:$0xff]
  %v92 = vld [vmem:[%s1 + $0xa0] sm:$0xff]
  %v93 = vld [vmem:[%s1 + $0xa8] sm:$0xff]
  %v94 = vld [vmem:[%s1 + $0xb0] sm:$0xff]
  %v95 = vld [vmem:[%s1 + $0xb8] sm:$0xff]
  %v96 = vld [vmem:[%s1 + $0xc0] sm:$0xff]
  %v97 = vld [vmem:[%s1 + $0xc8] sm:$0xff]
  %v98 = vld [vmem:[%s1 + $0xd0] sm:$0xff]
  %v99 = vld [vmem:[%s1 + $0xd8] sm:$0xff]
  %v100 = vld [vmem:[%s1 + $0xe0] sm:$0xff]
  %v101 = vld [vmem:[%s1 + $0xe8] sm:$0xff]
  %v102 = vld [vmem:[%s1 + $0xf0] sm:$0xff]
  %v103 = vld [vmem:[%s1 + $0xf8] sm:$0xff]
  %v104 = vld [vmem:[%s1 + $0x100] sm:$0xff]
  %v105 = vld [vmem:[%s1 + $0x108] sm:$0xff]
  %v106 = vld [vmem:[%s1 + $0x110] sm:$0xff]
  %v107 = vld [vmem:[%s1 + $0x118] sm:$0xff]
  %v108 = vld [vmem:[%s1 + $0x120] sm:$0xff]
  %v109 = vld [vmem:[%s1 + $0x128] sm:$0xff]
  %v110 = vld [vmem:[%s1 + $0x130] sm:$0xff]
  %v111 = vld [vmem:[%s1 + $0x138] sm:$0xff]
  %v112 = vld [vmem:[%s1 + $0x140] sm:$0xff]
  %v113 = vld [vmem:[%s1 + $0x148] sm:$0xff]
  %v114 = vld [vmem:[%s1 + $0x150] sm:$0xff]
  %v115 = vld [vmem:[%s1 + $0x158] sm:$0xff]
  %v116 = vld [vmem:[%s1 + $0x160] sm:$0xff]
  %v117 = vld [vmem:[%s1 + $0x168] sm:$0xff]
  %v118 = vld [vmem:[%s1 + $0x170] sm:$0xff]
  %v119 = vld [vmem:[%s1 + $0x178] sm:$0xff]
  %v120 = vld [vmem:[%s1 + $0x180] sm:$0xff]
  %v121 = vld [vmem:[%s1 + $0x188] sm:$0xff]
  %v122 = vld [vmem:[%s1 + $0x190] sm:$0xff]
  %v123 = vld [vmem:[%s1 + $0x198] sm:$0xff]
  %v124 = vld [vmem:[%s1 + $0x1a0] sm:$0xff]
  %v125 = vld [vmem:[%s1 + $0x1a8] sm:$0xff]
  %v126 = vld [vmem:[%s1 + $0x1b0] sm:$0xff]
  %v127 = vld [vmem:[%s1 + $0x1b8] sm:$0xff]
  %v128 = vld [vmem:[%s1 + $0x1c0] sm:$0xff]
  %v129 = vld [vmem:[%s1 + $0x1c8] sm:$0xff]
  %v130 = vld [vmem:[%s1 + $0x1d0] sm:$0xff]
  %v131 = vld [vmem:[%s1 + $0x1d8] sm:$0xff]
  %v132 = vld [vmem:[%s1 + $0x1e0] sm:$0xff]
  %v133 = vld [vmem:[%s1 + $0x1e8] sm:$0xff]
  %v134 = vld [vmem:[%s1 + $0x1f0] sm:$0xff]
  %v135 = vld [vmem:[%s1 + $0x1f8] sm:$0xff]
  %v136 = vld [vmem:[%s1 + $0x200] sm:$0xff]
  %v137 = vld [vmem:[%s1 + $0x208] sm:$0xff]
  %v138 = vld [vmem:[%s1 + $0x210] sm:$0xff]
  %v139 = vld [vmem:[%s1 + $0x218] sm:$0xff]
  %v140 = vld [vmem:[%s1 + $0x220] sm:$0xff]
  %v141 = vld [vmem:[%s1 + $0x228] sm:$0xff]
  %v142 = vld [vmem:[%s1 + $0x230] sm:$0xff]
  %v143 = vld [vmem:[%s1 + $0x238] sm:$0xff]
  %v144 = vld [vmem:[%s1 + $0x240] sm:$0xff]
  %v145 = vld [vmem:[%s1 + $0x248] sm:$0xff]
  %v146 = vld [vmem:[%s1 + $0x250] sm:$0xff]
  %v147 = vld [vmem:[%s1 + $0x258] sm:$0xff]
  %v148 = vld [vmem:[%s1 + $0x260] sm:$0xff]
  %v149 = vld [vmem:[%s1 + $0x268] sm:$0xff]
  %v150 = vld [vmem:[%s1 + $0x270] sm:$0xff]
  %v151 = vld [vmem:[%s1 + $0x278] sm:$0xff]
  %v152 = vld [vmem:[%s1 + $0x280] sm:$0xff]
  %v153 = vld [vmem:[%s1 + $0x288] sm:$0xff]
  %v154 = vld [vmem:[%s1 + $0x290] sm:$0xff]
  %v155 = vld [vmem:[%s1 + $0x298] sm:$0xff]
  %v156 = vld [vmem:[%s1 + $0x2a0] sm:$0xff]
  %v157 = vld [vmem:[%s1 + $0x2a8] sm:$0xff]
  %v158 = vld [vmem:[%s1 + $0x2b0] sm:$0xff]
  %v159 = vld [vmem:[%s1 + $0x2b8] sm:$0xff]
  %v160 = vld [vmem:[%s1 + $0x2c0] sm:$0xff]
  %v161 = vld [vmem:[%s1 + $0x2c8] sm:$0xff]
  %v162 = vld [vmem:[%s1 + $0x2d0] sm:$0xff]
  %v163 = vld [vmem:[%s1 + $0x2d8] sm:$0xff]
  %v164 = vld [vmem:[%s1 + $0x2e0] sm:$0xff]
  %v165 = vld [vmem:[%s1 + $0x2e8] sm:$0xff]
  %v166 = vld [vmem:[%s1 + $0x2f0] sm:$0xff]
  %v167 = vld [vmem:[%s1 + $0x2f8] sm:$0xff]
  %v168 = vld [vmem:[%s1 + $0x300] sm:$0xff]
  %v169 = vld [vmem:[%s1 + $0x308] sm:$0xff]
  %v170 = vld [vmem:[%s1 + $0x310] sm:$0xff]
  %v171 = vld [vmem:[%s1 + $0x318] sm:$0xff]
  %v172 = vld [vmem:[%s1 + $0x320] sm:$0xff]
  %v173 = vld [vmem:[%s1 + $0x328] sm:$0xff]
  %v174 = vld [vmem:[%s1 + $0x330] sm:$0xff]
  %v175 = vld [vmem:[%s1 + $0x338] sm:$0xff]
  %v176 = vld [vmem:[%s1 + $0x340] sm:$0xff]
  %v177 = vld [vmem:[%s1 + $0x348] sm:$0xff]
  %v178 = vld [vmem:[%s1 + $0x350] sm:$0xff]
  %v179 = vld [vmem:[%s1 + $0x358] sm:$0xff]
  %v180 = vld [vmem:[%s1 + $0x360] sm:$0xff]
  %v181 = vld [vmem:[%s1 + $0x368] sm:$0xff]
  %v182 = vld [vmem:[%s1 + $0x370] sm:$0xff]
  %v183 = vld [vmem:[%s1 + $0x378] sm:$0xff]
  %v184 = vld [vmem:[%s1 + $0x380] sm:$0xff]
  %v185 = vld [vmem:[%s1 + $0x388] sm:$0xff]
  %v186 = vld [vmem:[%s1 + $0x390] sm:$0xff]
  %v187 = vld [vmem:[%s1 + $0x398] sm:$0xff]
  %v188 = vld [vmem:[%s1 + $0x3a0] sm:$0xff]
  %v189 = vld [vmem:[%s1 + $0x3a8] sm:$0xff]
  %v190 = vld [vmem:[%s1 + $0x3b0] sm:$0xff]
  %v191 = vld [vmem:[%s1 + $0x3b8] sm:$0xff]
  %v192 = vld [vmem:[%s1 + $0x3c0] sm:$0xff]
  %v193 = vld [vmem:[%s1 + $0x3c8] sm:$0xff]
  %v194 = vld [vmem:[%s1 + $0x3d0] sm:$0xff]
  %v195 = vld [vmem:[%s1 + $0x3d8] sm:$0xff]
  %v196 = vld [vmem:[%s1 + $0x3e0] sm:$0xff]
  %v197 = vld [vmem:[%s1 + $0x3e8] sm:$0xff]
  %v198 = vld [vmem:[%s1 + $0x3f0] sm:$0xff]
  %v199 = vld [vmem:[%s1 + $0x3f8] sm:$0xff]
  %v200 = vld [vmem:[%s1 + $0x400] sm:$0xff]
  %v201 = vld [vmem:[%s1 + $0x408] sm:$0xff]
  %v202 = vld [vmem:[%s1 + $0x410] sm:$0xff]
  %v203 = vld [vmem:[%s1 + $0x418] sm:$0xff]
  %v204 = vld [vmem:[%s1 + $0x420] sm:$0xff]
  %v205 = vld [vmem:[%s1 + $0x428] sm:$0xff]
  %v206 = vld [vmem:[%s1 + $0x430] sm:$0xff]
  %v207 = vld [vmem:[%s1 + $0x438] sm:$0xff]
  %v208 = vld [vmem:[%s1 + $0x440] sm:$0xff]
  %v209 = vld [vmem:[%s1 + $0x448] sm:$0xff]
  %v210 = vld [vmem:[%s1 + $0x450] sm:$0xff]
  %v211 = vld [vmem:[%s1 + $0x458] sm:$0xff]
  %v212 = vld [vmem:[%s1 + $0x460] sm:$0xff]
  %v213 = vld [vmem:[%s1 + $0x468] sm:$0xff]
  %v214 = vld [vmem:[%s1 + $0x470] sm:$0xff]
  %v215 = vld [vmem:[%s1 + $0x478] sm:$0xff]
  %v216 = vld [vmem:[%s1 + $0x480] sm:$0xff]
  %v217 = vld [vmem:[%s1 + $0x488] sm:$0xff]
  %v218 = vld [vmem:[%s1 + $0x490] sm:$0xff]
  %v219 = vld [vmem:[%s1 + $0x498] sm:$0xff]
  %v220 = vld [vmem:[%s1 + $0x4a0] sm:$0xff]
  %v221 = vld [vmem:[%s1 + $0x4a8] sm:$0xff]
  %v222 = vld [vmem:[%s1 + $0x4b0] sm:$0xff]
  %v223 = vld [vmem:[%s1 + $0x4b8] sm:$0xff]
  %v224 = vld [vmem:[%s1 + $0x4c0] sm:$0xff]
  %v225 = vld [vmem:[%s1 + $0x4c8] sm:$0xff]
  %v226 = vld [vmem:[%s1 + $0x4d0] sm:$0xff]
  %v227 = vld [vmem:[%s1 + $0x4d8] sm:$0xff]
  %v228 = vld [vmem:[%s1 + $0x4e0] sm:$0xff]
  %v229 = vld [vmem:[%s1 + $0x4e8] sm:$0xff]
  %v230 = vld [vmem:[%s1 + $0x4f0] sm:$0xff]
  %v231 = vld [vmem:[%s1 + $0x4f8] sm:$0xff]
  %v232 = vld [vmem:[%s1 + $0x500] sm:$0xff]
  %v233 = vld [vmem:[%s1 + $0x508] sm:$0xff]
  %v234 = vld [vmem:[%s1 + $0x510] sm:$0xff]
  %v235 = vld [vmem:[%s1 + $0x518] sm:$0xff]
  %v236 = vld [vmem:[%s1 + $0x520] sm:$0xff]
  %v237 = vld [vmem:[%s1 + $0x528] sm:$0xff]
  %v238 = vld [vmem:[%s1 + $0x530] sm:$0xff]
  %v239 = vld [vmem:[%s1 + $0x538] sm:$0xff]
  %v240 = vld [vmem:[%s1 + $0x540] sm:$0xff]
  %v241 = vld [vmem:[%s1 + $0x548] sm:$0xff]
  %v242 = vld [vmem:[%s1 + $0x550] sm:$0xff]
  %v243 = vld [vmem:[%s1 + $0x558] sm:$0xff]
  %v244 = vld [vmem:[%s1 + $0x560] sm:$0xff]
  %v245 = vld [vmem:[%s1 + $0x568] sm:$0xff]
  %v246 = vld [vmem:[%s1 + $0x570] sm:$0xff]
  %v247 = vld [vmem:[%s1 + $0x578] sm:$0xff]
  %v248 = vld [vmem:[%s1 + $0x580] sm:$0xff]
  %v249 = vld [vmem:[%s1 + $0x588] sm:$0xff]
  %v250 = vld [vmem:[%s1 + $0x590] sm:$0xff]
  %v251 = vld [vmem:[%s1 + $0x598] sm:$0xff]
  %v252 = vld [vmem:[%s1 + $0x5a0] sm:$0xff]
  %v253 = vld [vmem:[%s1 + $0x5a8] sm:$0xff]
  %v254 = vld [vmem:[%s1 + $0x5b0] sm:$0xff]
  %v255 = vld [vmem:[%s1 + $0x5b8] sm:$0xff]
  %v256 = vld [vmem:[%s1 + $0x5c0] sm:$0xff]
  %v257 = vld [vmem:[%s1 + $0x5c8] sm:$0xff]
  %v258 = vld [vmem:[%s1 + $0x5d0] sm:$0xff]
  %v259 = vld [vmem:[%s1 + $0x5d8] sm:$0xff]
  %v260 = vld [vmem:[%s1 + $0x5e0] sm:$0xff]
  %v261 = vld [vmem:[%s1 + $0x5e8] sm:$0xff]
  %v262 = vld [vmem:[%s1 + $0x5f0] sm:$0xff]
  %v263 = vld [vmem:[%s1 + $0x5f8] sm:$0xff]
  %v264 = vld [vmem:[%s1 + $0x600] sm:$0xff]
  %v265 = vld [vmem:[%s1 + $0x608] sm:$0xff]
  %v266 = vld [vmem:[%s1 + $0x610] sm:$0xff]
  %v267 = vld [vmem:[%s1 + $0x618] sm:$0xff]
  %v268 = vld [vmem:[%s1 + $0x620] sm:$0xff]
  %v269 = vld [vmem:[%s1 + $0x628] sm:$0xff]
  %v270 = vld [vmem:[%s1 + $0x630] sm:$0xff]
  %v271 = vld [vmem:[%s1 + $0x638] sm:$0xff]
  %v272 = vld [vmem:[%s1 + $0x640] sm:$0xff]
  %v273 = vld [vmem:[%s1 + $0x648] sm:$0xff]
  %v274 = vld [vmem:[%s1 + $0x650] sm:$0xff]
  %v275 = vld [vmem:[%s1 + $0x658] sm:$0xff]
  %v276 = vld [vmem:[%s1 + $0x660] sm:$0xff]
  %v277 = vld [vmem:[%s1 + $0x668] sm:$0xff]
  %v278 = vld [vmem:[%s1 + $0x670] sm:$0xff]
  %v279 = vld [vmem:[%s1 + $0x678] sm:$0xff]
  %v280 = vld [vmem:[%s1 + $0x680] sm:$0xff]
  %v281 = vld [vmem:[%s1 + $0x688] sm:$0xff]
  %v282 = vld [vmem:[%s1 + $0x690] sm:$0xff]
  %v283 = vld [vmem:[%s1 + $0x698] sm:$0xff]
  %v284 = vld [vmem:[%s1 + $0x6a0] sm:$0xff]
  %v285 = vld [vmem:[%s1 + $0x6a8] sm:$0xff]
  %v286 = vld [vmem:[%s1 + $0x6b0] sm:$0xff]
  %v287 = vld [vmem:[%s1 + $0x6b8] sm:$0xff]
  %v288 = vld [vmem:[%s1 + $0x6c0] sm:$0xff]
  %v289 = vld [vmem:[%s1 + $0x6c8] sm:$0xff]
  %v290 = vld [vmem:[%s1 + $0x6d0] sm:$0xff]
  %v291 = vld [vmem:[%s1 + $0x6d8] sm:$0xff]
  %v292 = vld [vmem:[%s1 + $0x6e0] sm:$0xff]
  %v293 = vld [vmem:[%s1 + $0x6e8] sm:$0xff]
  %v294 = vld [vmem:[%s1 + $0x6f0] sm:$0xff]
  %v295 = vld [vmem:[%s1 + $0x6f8] sm:$0xff]
  %v296 = vld [vmem:[%s1 + $0x700] sm:$0xff]
  %v297 = vld [vmem:[%s1 + $0x708] sm:$0xff]
  %v298 = vld [vmem:[%s1 + $0x710] sm:$0xff]
  %v299 = vld [vmem:[%s1 + $0x718] sm:$0xff]
  %v300 = vld [vmem:[%s1 + $0x720] sm:$0xff]
  %v301 = vld [vmem:[%s1 + $0x728] sm:$0xff]
  %v302 = vld [vmem:[%s1 + $0x730] sm:$0xff]
  %v303 = vld [vmem:[%s1 + $0x738] sm:$0xff]
  %v304 = vld [vmem:[%s1 + $0x740] sm:$0xff]
  %v305 = vld [vmem:[%s1 + $0x748] sm:$0xff]
  %v306 = vld [vmem:[%s1 + $0x750] sm:$0xff]
  %v307 = vld [vmem:[%s1 + $0x758] sm:$0xff]
  %v308 = vld [vmem:[%s1 + $0x760] sm:$0xff]
  %v309 = vld [vmem:[%s1 + $0x768] sm:$0xff]
  %v310 = vld [vmem:[%s1 + $0x770] sm:$0xff]
  %v311 = vld [vmem:[%s1 + $0x778] sm:$0xff]
  %v312 = vld [vmem:[%s1 + $0x780] sm:$0xff]
  %v313 = vld [vmem:[%s1 + $0x788] sm:$0xff]
  %v314 = vld [vmem:[%s1 + $0x790] sm:$0xff]
  %v315 = vld [vmem:[%s1 + $0x798] sm:$0xff]
  %v316 = vld [vmem:[%s1 + $0x7a0] sm:$0xff]
  %v317 = vld [vmem:[%s1 + $0x7a8] sm:$0xff]
  %v318 = vld [vmem:[%s1 + $0x7b0] sm:$0xff]
  %v319 = vld [vmem:[%s1 + $0x7b8] sm:$0xff]
  %v320 = vld [vmem:[%s1 + $0x7c0] sm:$0xff]
  %v321 = vld [vmem:[%s1 + $0x7c8] sm:$0xff]
  %v322 = vld [vmem:[%s1 + $0x7d0] sm:$0xff]
  %v323 = vld [vmem:[%s1 + $0x7d8] sm:$0xff]
  %v324 = vld [vmem:[%s1 + $0x7e0] sm:$0xff]
  %v325 = vld [vmem:[%s1 + $0x7e8] sm:$0xff]
  %v326 = vld [vmem:[%s1 + $0x7f0] sm:$0xff]
  %v327 = vld [vmem:[%s1 + $0x7f8] sm:$0xff]
  %v328 = vpack.c.bf16 %v73, %v72
  %v329 = vpack.c.bf16 %v75, %v74
  %v330 = vpack.c.bf16 %v77, %v76
  %v331 = vpack.c.bf16 %v79, %v78
  %v332 = vpack.c.bf16 %v81, %v80
  %v333 = vpack.c.bf16 %v83, %v82
  %v334 = vpack.c.bf16 %v85, %v84
  %v335 = vpack.c.bf16 %v87, %v86
  %v336 = vpack.c.bf16 %v89, %v88
  %v337 = vpack.c.bf16 %v91, %v90
  %v338 = vpack.c.bf16 %v93, %v92
  %v339 = vpack.c.bf16 %v95, %v94
  %v340 = vpack.c.bf16 %v97, %v96
  %v341 = vpack.c.bf16 %v99, %v98
  %v342 = vpack.c.bf16 %v101, %v100
  %v343 = vpack.c.bf16 %v103, %v102
  %v344 = vpack.c.bf16 %v105, %v104
  %v345 = vpack.c.bf16 %v107, %v106
  %v346 = vpack.c.bf16 %v109, %v108
  %v347 = vpack.c.bf16 %v111, %v110
  %v348 = vpack.c.bf16 %v113, %v112
  %v349 = vpack.c.bf16 %v115, %v114
  %v350 = vpack.c.bf16 %v117, %v116
  %v351 = vpack.c.bf16 %v119, %v118
  %v352 = vpack.c.bf16 %v121, %v120
  %v353 = vpack.c.bf16 %v123, %v122
  %v354 = vpack.c.bf16 %v125, %v124
  %v355 = vpack.c.bf16 %v127, %v126
  %v356 = vpack.c.bf16 %v129, %v128
  %v357 = vpack.c.bf16 %v131, %v130
  %v358 = vpack.c.bf16 %v133, %v132
  %v359 = vpack.c.bf16 %v135, %v134
  %v360 = vpack.c.bf16 %v137, %v136
  %v361 = vpack.c.bf16 %v139, %v138
  %v362 = vpack.c.bf16 %v141, %v140
  %v363 = vpack.c.bf16 %v143, %v142
  %v364 = vpack.c.bf16 %v145, %v144
  %v365 = vpack.c.bf16 %v147, %v146
  %v366 = vpack.c.bf16 %v149, %v148
  %v367 = vpack.c.bf16 %v151, %v150
  %v368 = vpack.c.bf16 %v153, %v152
  %v369 = vpack.c.bf16 %v155, %v154
  %v370 = vpack.c.bf16 %v157, %v156
  %v371 = vpack.c.bf16 %v159, %v158
  %v372 = vpack.c.bf16 %v161, %v160
  %v373 = vpack.c.bf16 %v163, %v162
  %v374 = vpack.c.bf16 %v165, %v164
  %v375 = vpack.c.bf16 %v167, %v166
  %v376 = vpack.c.bf16 %v169, %v168
  %v377 = vpack.c.bf16 %v171, %v170
  %v378 = vpack.c.bf16 %v173, %v172
  %v379 = vpack.c.bf16 %v175, %v174
  %v380 = vpack.c.bf16 %v177, %v176
  %v381 = vpack.c.bf16 %v179, %v178
  %v382 = vpack.c.bf16 %v181, %v180
  %v383 = vpack.c.bf16 %v183, %v182
  %v384 = vpack.c.bf16 %v185, %v184
  %v385 = vpack.c.bf16 %v187, %v186
  %v386 = vpack.c.bf16 %v189, %v188
  %v387 = vpack.c.bf16 %v191, %v190
  %v388 = vpack.c.bf16 %v193, %v192
  %v389 = vpack.c.bf16 %v195, %v194
  %v390 = vpack.c.bf16 %v197, %v196
  %v391 = vpack.c.bf16 %v199, %v198
  %v392 = vpack.c.bf16 %v201, %v200
  %v393 = vpack.c.bf16 %v203, %v202
  %v394 = vpack.c.bf16 %v205, %v204
  %v395 = vpack.c.bf16 %v207, %v206
  %v396 = vpack.c.bf16 %v209, %v208
  %v397 = vpack.c.bf16 %v211, %v210
  %v398 = vpack.c.bf16 %v213, %v212
  %v399 = vpack.c.bf16 %v215, %v214
  %v400 = vpack.c.bf16 %v217, %v216
  %v401 = vpack.c.bf16 %v219, %v218
  %v402 = vpack.c.bf16 %v221, %v220
  %v403 = vpack.c.bf16 %v223, %v222
  %v404 = vpack.c.bf16 %v225, %v224
  %v405 = vpack.c.bf16 %v227, %v226
  %v406 = vpack.c.bf16 %v229, %v228
  %v407 = vpack.c.bf16 %v231, %v230
  %v408 = vpack.c.bf16 %v233, %v232
  %v409 = vpack.c.bf16 %v235, %v234
  %v410 = vpack.c.bf16 %v237, %v236
  %v411 = vpack.c.bf16 %v239, %v238
  %v412 = vpack.c.bf16 %v241, %v240
  %v413 = vpack.c.bf16 %v243, %v242
  %v414 = vpack.c.bf16 %v245, %v244
  %v415 = vpack.c.bf16 %v247, %v246
  %v416 = vpack.c.bf16 %v249, %v248
  %v417 = vpack.c.bf16 %v251, %v250
  %v418 = vpack.c.bf16 %v253, %v252
  %v419 = vpack.c.bf16 %v255, %v254
  %v420 = vpack.c.bf16 %v257, %v256
  %v421 = vpack.c.bf16 %v259, %v258
  %v422 = vpack.c.bf16 %v261, %v260
  %v423 = vpack.c.bf16 %v263, %v262
  %v424 = vpack.c.bf16 %v265, %v264
  %v425 = vpack.c.bf16 %v267, %v266
  %v426 = vpack.c.bf16 %v269, %v268
  %v427 = vpack.c.bf16 %v271, %v270
  %v428 = vpack.c.bf16 %v273, %v272
  %v429 = vpack.c.bf16 %v275, %v274
  %v430 = vpack.c.bf16 %v277, %v276
  %v431 = vpack.c.bf16 %v279, %v278
  %v432 = vpack.c.bf16 %v281, %v280
  %v433 = vpack.c.bf16 %v283, %v282
  %v434 = vpack.c.bf16 %v285, %v284
  %v435 = vpack.c.bf16 %v287, %v286
  %v436 = vpack.c.bf16 %v289, %v288
  %v437 = vpack.c.bf16 %v291, %v290
  %v438 = vpack.c.bf16 %v293, %v292
  %v439 = vpack.c.bf16 %v295, %v294
  %v440 = vpack.c.bf16 %v297, %v296
  %v441 = vpack.c.bf16 %v299, %v298
  %v442 = vpack.c.bf16 %v301, %v300
  %v443 = vpack.c.bf16 %v303, %v302
  %v444 = vpack.c.bf16 %v305, %v304
  %v445 = vpack.c.bf16 %v307, %v306
  %v446 = vpack.c.bf16 %v309, %v308
  %v447 = vpack.c.bf16 %v311, %v310
  %v448 = vpack.c.bf16 %v313, %v312
  %v449 = vpack.c.bf16 %v315, %v314
  %v450 = vpack.c.bf16 %v317, %v316
  %v451 = vpack.c.bf16 %v319, %v318
  %v452 = vpack.c.bf16 %v321, %v320
  %v453 = vpack.c.bf16 %v323, %v322
  %v454 = vpack.c.bf16 %v325, %v324
  %v455 = vpack.c.bf16 %v327, %v326
  %v456 = vld [vmem:[%s2] sm:$0x1]
  %v458 = vlaneseq
  %v459 = vshrl.u32 %v458, 7
  %v460 = vsub.s32 0, %v459
  %v461 = vrot.slane %v456, %v460
  %463 = vmatprep.subr.bf16.mxu0 0
  %464 = vmatpush1.bf16.msra.mxu0 %v335
  %465 = vmatprep.subr.bf16.mxu0 0
  %466 = vmatpush1.bf16.msra.mxu0 %v334
  %467 = vmatprep.subr.bf16.mxu0 0
  %468 = vmatpush1.bf16.msra.mxu0 %v333
  %469 = vmatprep.subr.bf16.mxu0 0
  %470 = vmatpush1.bf16.msra.mxu0 %v332
  %471 = vmatprep.subr.bf16.mxu0 0
  %472 = vmatpush1.bf16.msra.mxu0 %v331
  %473 = vmatprep.subr.bf16.mxu0 0
  %474 = vmatpush1.bf16.msra.mxu0 %v330
  %475 = vmatprep.subr.bf16.mxu0 0
  %476 = vmatpush1.bf16.msra.mxu0 %v329
  %477 = vmatprep.subr.bf16.mxu0 0
  %478 = vmatpush1.bf16.msra.mxu0 %v328
  %479 = vmatprep.subr.bf16.mxu0 0
  %480 = vmatpush2.bf16.msra.mxu0 %v343
  %481 = vmatprep.subr.bf16.mxu0 0
  %482 = vmatpush2.bf16.msra.mxu0 %v342
  %483 = vmatprep.subr.bf16.mxu0 0
  %484 = vmatpush2.bf16.msra.mxu0 %v341
  %485 = vmatprep.subr.bf16.mxu0 0
  %486 = vmatpush2.bf16.msra.mxu0 %v340
  %487 = vmatprep.subr.bf16.mxu0 0
  %488 = vmatpush2.bf16.msra.mxu0 %v339
  %489 = vmatprep.subr.bf16.mxu0 0
  %490 = vmatpush2.bf16.msra.mxu0 %v338
  %491 = vmatprep.subr.bf16.mxu0 0
  %492 = vmatpush2.bf16.msra.mxu0 %v337
  %493 = vmatprep.subr.bf16.mxu0 0
  %494 = vmatpush2.bf16.msra.mxu0 %v336
  %495 = vmatprep.mubr.bf16.mxu0 %v57
  %496 = vmatmul.mubr.bf16.gmra.mxu0 %v56
  %v497 = vpop.f32.mrf.mxu0
  %v498 = vadd.f32 %v461, %v497
  %v499 = vpop.f32.mrf.mxu0
  %v500 = vpop.f32.mrf.mxu0
  %v501 = vadd.f32 %v461, %v500
  %v502 = vpop.f32.mrf.mxu0
  %503 = vdwg.mxu0
  %504 = vmatprep.subr.bf16.mxu0 0
  %505 = vmatpush1.bf16.msra.mxu0 %v351
  %506 = vmatprep.subr.bf16.mxu0 0
  %507 = vmatpush1.bf16.msra.mxu0 %v350
  %508 = vmatprep.subr.bf16.mxu0 0
  %509 = vmatpush1.bf16.msra.mxu0 %v349
  %510 = vmatprep.subr.bf16.mxu0 0
  %511 = vmatpush1.bf16.msra.mxu0 %v348
  %512 = vmatprep.subr.bf16.mxu0 0
  %513 = vmatpush1.bf16.msra.mxu0 %v347
  %514 = vmatprep.subr.bf16.mxu0 0
  %515 = vmatpush1.bf16.msra.mxu0 %v346
  %516 = vmatprep.subr.bf16.mxu0 0
  %517 = vmatpush1.bf16.msra.mxu0 %v345
  %518 = vmatprep.subr.bf16.mxu0 0
  %519 = vmatpush1.bf16.msra.mxu0 %v344
  %520 = vmatprep.subr.bf16.mxu0 0
  %521 = vmatpush2.bf16.msra.mxu0 %v359
  %522 = vmatprep.subr.bf16.mxu0 0
  %523 = vmatpush2.bf16.msra.mxu0 %v358
  %524 = vmatprep.subr.bf16.mxu0 0
  %525 = vmatpush2.bf16.msra.mxu0 %v357
  %526 = vmatprep.subr.bf16.mxu0 0
  %527 = vmatpush2.bf16.msra.mxu0 %v356
  %528 = vmatprep.subr.bf16.mxu0 0
  %529 = vmatpush2.bf16.msra.mxu0 %v355
  %530 = vmatprep.subr.bf16.mxu0 0
  %531 = vmatpush2.bf16.msra.mxu0 %v354
  %532 = vmatprep.subr.bf16.mxu0 0
  %533 = vmatpush2.bf16.msra.mxu0 %v353
  %534 = vmatprep.subr.bf16.mxu0 0
  %535 = vmatpush2.bf16.msra.mxu0 %v352
  %536 = vmatprep.mubr.bf16.mxu0 %v59
  %537 = vmatmul.mubr.bf16.gmra.mxu0 %v58
  %v538 = vpop.f32.mrf.mxu0
  %v539 = vadd.f32 %v498, %v538
  %v540 = vpop.f32.mrf.mxu0
  %v541 = vpop.f32.mrf.mxu0
  %v542 = vadd.f32 %v501, %v541
  %v543 = vpop.f32.mrf.mxu0
  %544 = vdwg.mxu0
  %545 = vmatprep.subr.bf16.mxu0 0
  %546 = vmatpush1.bf16.msra.mxu0 %v367
  %547 = vmatprep.subr.bf16.mxu0 0
  %548 = vmatpush1.bf16.msra.mxu0 %v366
  %549 = vmatprep.subr.bf16.mxu0 0
  %550 = vmatpush1.bf16.msra.mxu0 %v365
  %551 = vmatprep.subr.bf16.mxu0 0
  %552 = vmatpush1.bf16.msra.mxu0 %v364
  %553 = vmatprep.subr.bf16.mxu0 0
  %554 = vmatpush1.bf16.msra.mxu0 %v363
  %555 = vmatprep.subr.bf16.mxu0 0
  %556 = vmatpush1.bf16.msra.mxu0 %v362
  %557 = vmatprep.subr.bf16.mxu0 0
  %558 = vmatpush1.bf16.msra.mxu0 %v361
  %559 = vmatprep.subr.bf16.mxu0 0
  %560 = vmatpush1.bf16.msra.mxu0 %v360
  %561 = vmatprep.subr.bf16.mxu0 0
  %562 = vmatpush2.bf16.msra.mxu0 %v375
  %563 = vmatprep.subr.bf16.mxu0 0
  %564 = vmatpush2.bf16.msra.mxu0 %v374
  %565 = vmatprep.subr.bf16.mxu0 0
  %566 = vmatpush2.bf16.msra.mxu0 %v373
  %567 = vmatprep.subr.bf16.mxu0 0
  %568 = vmatpush2.bf16.msra.mxu0 %v372
  %569 = vmatprep.subr.bf16.mxu0 0
  %570 = vmatpush2.bf16.msra.mxu0 %v371
  %571 = vmatprep.subr.bf16.mxu0 0
  %572 = vmatpush2.bf16.msra.mxu0 %v370
  %573 = vmatprep.subr.bf16.mxu0 0
  %574 = vmatpush2.bf16.msra.mxu0 %v369
  %575 = vmatprep.subr.bf16.mxu0 0
  %576 = vmatpush2.bf16.msra.mxu0 %v368
  %577 = vmatprep.mubr.bf16.mxu0 %v61
  %578 = vmatmul.mubr.bf16.gmra.mxu0 %v60
  %v579 = vpop.f32.mrf.mxu0
  %v580 = vadd.f32 %v539, %v579
  %v581 = vpop.f32.mrf.mxu0
  %v582 = vpop.f32.mrf.mxu0
  %v583 = vadd.f32 %v542, %v582
  %v584 = vpop.f32.mrf.mxu0
  %585 = vdwg.mxu0
  %586 = vmatprep.subr.bf16.mxu0 0
  %587 = vmatpush1.bf16.msra.mxu0 %v383
  %588 = vmatprep.subr.bf16.mxu0 0
  %589 = vmatpush1.bf16.msra.mxu0 %v382
  %590 = vmatprep.subr.bf16.mxu0 0
  %591 = vmatpush1.bf16.msra.mxu0 %v381
  %592 = vmatprep.subr.bf16.mxu0 0
  %593 = vmatpush1.bf16.msra.mxu0 %v380
  %594 = vmatprep.subr.bf16.mxu0 0
  %595 = vmatpush1.bf16.msra.mxu0 %v379
  %596 = vmatprep.subr.bf16.mxu0 0
  %597 = vmatpush1.bf16.msra.mxu0 %v378
  %598 = vmatprep.subr.bf16.mxu0 0
  %599 = vmatpush1.bf16.msra.mxu0 %v377
  %600 = vmatprep.subr.bf16.mxu0 0
  %601 = vmatpush1.bf16.msra.mxu0 %v376
  %602 = vmatprep.subr.bf16.mxu0 0
  %603 = vmatpush2.bf16.msra.mxu0 %v391
  %604 = vmatprep.subr.bf16.mxu0 0
  %605 = vmatpush2.bf16.msra.mxu0 %v390
  %606 = vmatprep.subr.bf16.mxu0 0
  %607 = vmatpush2.bf16.msra.mxu0 %v389
  %608 = vmatprep.subr.bf16.mxu0 0
  %609 = vmatpush2.bf16.msra.mxu0 %v388
  %610 = vmatprep.subr.bf16.mxu0 0
  %611 = vmatpush2.bf16.msra.mxu0 %v387
  %612 = vmatprep.subr.bf16.mxu0 0
  %613 = vmatpush2.bf16.msra.mxu0 %v386
  %614 = vmatprep.subr.bf16.mxu0 0
  %615 = vmatpush2.bf16.msra.mxu0 %v385
  %616 = vmatprep.subr.bf16.mxu0 0
  %617 = vmatpush2.bf16.msra.mxu0 %v384
  %618 = vmatprep.mubr.bf16.mxu0 %v63
  %619 = vmatmul.mubr.bf16.gmra.mxu0 %v62
  %v620 = vpop.f32.mrf.mxu0
  %v621 = vadd.f32 %v580, %v620
  %v622 = vpop.f32.mrf.mxu0
  %v623 = vpop.f32.mrf.mxu0
  %v624 = vadd.f32 %v583, %v623
  %v625 = vpop.f32.mrf.mxu0
  %626 = vdwg.mxu0
  %627 = vmatprep.subr.bf16.mxu0 0
  %628 = vmatpush1.bf16.msra.mxu0 %v399
  %629 = vmatprep.subr.bf16.mxu0 0
  %630 = vmatpush1.bf16.msra.mxu0 %v398
  %631 = vmatprep.subr.bf16.mxu0 0
  %632 = vmatpush1.bf16.msra.mxu0 %v397
  %633 = vmatprep.subr.bf16.mxu0 0
  %634 = vmatpush1.bf16.msra.mxu0 %v396
  %635 = vmatprep.subr.bf16.mxu0 0
  %636 = vmatpush1.bf16.msra.mxu0 %v395
  %637 = vmatprep.subr.bf16.mxu0 0
  %638 = vmatpush1.bf16.msra.mxu0 %v394
  %639 = vmatprep.subr.bf16.mxu0 0
  %640 = vmatpush1.bf16.msra.mxu0 %v393
  %641 = vmatprep.subr.bf16.mxu0 0
  %642 = vmatpush1.bf16.msra.mxu0 %v392
  %643 = vmatprep.subr.bf16.mxu0 0
  %644 = vmatpush2.bf16.msra.mxu0 %v407
  %645 = vmatprep.subr.bf16.mxu0 0
  %646 = vmatpush2.bf16.msra.mxu0 %v406
  %647 = vmatprep.subr.bf16.mxu0 0
  %648 = vmatpush2.bf16.msra.mxu0 %v405
  %649 = vmatprep.subr.bf16.mxu0 0
  %650 = vmatpush2.bf16.msra.mxu0 %v404
  %651 = vmatprep.subr.bf16.mxu0 0
  %652 = vmatpush2.bf16.msra.mxu0 %v403
  %653 = vmatprep.subr.bf16.mxu0 0
  %654 = vmatpush2.bf16.msra.mxu0 %v402
  %655 = vmatprep.subr.bf16.mxu0 0
  %656 = vmatpush2.bf16.msra.mxu0 %v401
  %657 = vmatprep.subr.bf16.mxu0 0
  %658 = vmatpush2.bf16.msra.mxu0 %v400
  %659 = vmatprep.mubr.bf16.mxu0 %v65
  %660 = vmatmul.mubr.bf16.gmra.mxu0 %v64
  %v661 = vpop.f32.mrf.mxu0
  %v662 = vadd.f32 %v621, %v661
  %v663 = vpop.f32.mrf.mxu0
  %v664 = vpop.f32.mrf.mxu0
  %v665 = vadd.f32 %v624, %v664
  %v666 = vpop.f32.mrf.mxu0
  %667 = vdwg.mxu0
  %668 = vmatprep.subr.bf16.mxu0 0
  %669 = vmatpush1.bf16.msra.mxu0 %v415
  %670 = vmatprep.subr.bf16.mxu0 0
  %671 = vmatpush1.bf16.msra.mxu0 %v414
  %672 = vmatprep.subr.bf16.mxu0 0
  %673 = vmatpush1.bf16.msra.mxu0 %v413
  %674 = vmatprep.subr.bf16.mxu0 0
  %675 = vmatpush1.bf16.msra.mxu0 %v412
  %676 = vmatprep.subr.bf16.mxu0 0
  %677 = vmatpush1.bf16.msra.mxu0 %v411
  %678 = vmatprep.subr.bf16.mxu0 0
  %679 = vmatpush1.bf16.msra.mxu0 %v410
  %680 = vmatprep.subr.bf16.mxu0 0
  %681 = vmatpush1.bf16.msra.mxu0 %v409
  %682 = vmatprep.subr.bf16.mxu0 0
  %683 = vmatpush1.bf16.msra.mxu0 %v408
  %684 = vmatprep.subr.bf16.mxu0 0
  %685 = vmatpush2.bf16.msra.mxu0 %v423
  %686 = vmatprep.subr.bf16.mxu0 0
  %687 = vmatpush2.bf16.msra.mxu0 %v422
  %688 = vmatprep.subr.bf16.mxu0 0
  %689 = vmatpush2.bf16.msra.mxu0 %v421
  %690 = vmatprep.subr.bf16.mxu0 0
  %691 = vmatpush2.bf16.msra.mxu0 %v420
  %692 = vmatprep.subr.bf16.mxu0 0
  %693 = vmatpush2.bf16.msra.mxu0 %v419
  %694 = vmatprep.subr.bf16.mxu0 0
  %695 = vmatpush2.bf16.msra.mxu0 %v418
  %696 = vmatprep.subr.bf16.mxu0 0
  %697 = vmatpush2.bf16.msra.mxu0 %v417
  %698 = vmatprep.subr.bf16.mxu0 0
  %699 = vmatpush2.bf16.msra.mxu0 %v416
  %700 = vmatprep.mubr.bf16.mxu0 %v67
  %701 = vmatmul.mubr.bf16.gmra.mxu0 %v66
  %v702 = vpop.f32.mrf.mxu0
  %v703 = vadd.f32 %v662, %v702
  %v704 = vpop.f32.mrf.mxu0
  %v705 = vpop.f32.mrf.mxu0
  %v706 = vadd.f32 %v665, %v705
  %v707 = vpop.f32.mrf.mxu0
  %708 = vdwg.mxu0
  %709 = vmatprep.subr.bf16.mxu0 0
  %710 = vmatpush1.bf16.msra.mxu0 %v431
  %711 = vmatprep.subr.bf16.mxu0 0
  %712 = vmatpush1.bf16.msra.mxu0 %v430
  %713 = vmatprep.subr.bf16.mxu0 0
  %714 = vmatpush1.bf16.msra.mxu0 %v429
  %715 = vmatprep.subr.bf16.mxu0 0
  %716 = vmatpush1.bf16.msra.mxu0 %v428
  %717 = vmatprep.subr.bf16.mxu0 0
  %718 = vmatpush1.bf16.msra.mxu0 %v427
  %719 = vmatprep.subr.bf16.mxu0 0
  %720 = vmatpush1.bf16.msra.mxu0 %v426
  %721 = vmatprep.subr.bf16.mxu0 0
  %722 = vmatpush1.bf16.msra.mxu0 %v425
  %723 = vmatprep.subr.bf16.mxu0 0
  %724 = vmatpush1.bf16.msra.mxu0 %v424
  %725 = vmatprep.subr.bf16.mxu0 0
  %726 = vmatpush2.bf16.msra.mxu0 %v439
  %727 = vmatprep.subr.bf16.mxu0 0
  %728 = vmatpush2.bf16.msra.mxu0 %v438
  %729 = vmatprep.subr.bf16.mxu0 0
  %730 = vmatpush2.bf16.msra.mxu0 %v437
  %731 = vmatprep.subr.bf16.mxu0 0
  %732 = vmatpush2.bf16.msra.mxu0 %v436
  %733 = vmatprep.subr.bf16.mxu0 0
  %734 = vmatpush2.bf16.msra.mxu0 %v435
  %735 = vmatprep.subr.bf16.mxu0 0
  %736 = vmatpush2.bf16.msra.mxu0 %v434
  %737 = vmatprep.subr.bf16.mxu0 0
  %738 = vmatpush2.bf16.msra.mxu0 %v433
  %739 = vmatprep.subr.bf16.mxu0 0
  %740 = vmatpush2.bf16.msra.mxu0 %v432
  %741 = vmatprep.mubr.bf16.mxu0 %v69
  %742 = vmatmul.mubr.bf16.gmra.mxu0 %v68
  %v743 = vpop.f32.mrf.mxu0
  %v744 = vadd.f32 %v703, %v743
  %v745 = vpop.f32.mrf.mxu0
  %v746 = vpop.f32.mrf.mxu0
  %v747 = vadd.f32 %v706, %v746
  %v748 = vpop.f32.mrf.mxu0
  %749 = vdwg.mxu0
  %750 = vmatprep.subr.bf16.mxu0 0
  %751 = vmatpush1.bf16.msra.mxu0 %v447
  %752 = vmatprep.subr.bf16.mxu0 0
  %753 = vmatpush1.bf16.msra.mxu0 %v446
  %754 = vmatprep.subr.bf16.mxu0 0
  %755 = vmatpush1.bf16.msra.mxu0 %v445
  %756 = vmatprep.subr.bf16.mxu0 0
  %757 = vmatpush1.bf16.msra.mxu0 %v444
  %758 = vmatprep.subr.bf16.mxu0 0
  %759 = vmatpush1.bf16.msra.mxu0 %v443
  %760 = vmatprep.subr.bf16.mxu0 0
  %761 = vmatpush1.bf16.msra.mxu0 %v442
  %762 = vmatprep.subr.bf16.mxu0 0
  %763 = vmatpush1.bf16.msra.mxu0 %v441
  %764 = vmatprep.subr.bf16.mxu0 0
  %765 = vmatpush1.bf16.msra.mxu0 %v440
  %766 = vmatprep.subr.bf16.mxu0 0
  %767 = vmatpush2.bf16.msra.mxu0 %v455
  %768 = vmatprep.subr.bf16.mxu0 0
  %769 = vmatpush2.bf16.msra.mxu0 %v454
  %770 = vmatprep.subr.bf16.mxu0 0
  %771 = vmatpush2.bf16.msra.mxu0 %v453
  %772 = vmatprep.subr.bf16.mxu0 0
  %773 = vmatpush2.bf16.msra.mxu0 %v452
  %774 = vmatprep.subr.bf16.mxu0 0
  %775 = vmatpush2.bf16.msra.mxu0 %v451
  %776 = vmatprep.subr.bf16.mxu0 0
  %777 = vmatpush2.bf16.msra.mxu0 %v450
  %778 = vmatprep.subr.bf16.mxu0 0
  %779 = vmatpush2.bf16.msra.mxu0 %v449
  %780 = vmatprep.subr.bf16.mxu0 0
  %781 = vmatpush2.bf16.msra.mxu0 %v448
  %782 = vmatprep.mubr.bf16.mxu0 %v71
  %783 = vmatmul.mubr.bf16.gmra.mxu0 %v70
  %v784 = vpop.f32.mrf.mxu0
  %v785 = vadd.f32 %v744, %v784
  %v786 = vpop.f32.mrf.mxu0
  %v787 = vpop.f32.mrf.mxu0
  %v788 = vadd.f32 %v747, %v787
  %v789 = vpop.f32.mrf.mxu0
  %790 = vdwg.mxu0
  %v791 = vld [vmem:[%s3] sm:$0xff]
  %v792 = vld [vmem:[%s3 + $0x8] sm:$0xff]
  %v793 = vadd.f32 %v785, %v791
  %v794 = vadd.f32 %v788, %v792
  %vm795 = vcmask 261120
  %v796 = vsel %vm795, %v793, 0.0
  %797 = vadd.xlane.f32.xlu0 %v796
  %v798 = vpop.xlane.xlu0 %797
  %v799 = vsel %vm795, %v794, 0.0
  %800 = vadd.xlane.f32.xlu0 %v799
  %v801 = vpop.xlane.xlu0 %800
  %v802 = vrcp.pop 32.0
  %v803 = vmul.f32 %v798, %v802
  %v804 = vmul.f32 %v801, %v802
  %v805 = vsub.f32 %v793, %v803
  %v806 = vsub.f32 %v794, %v804
  %v807 = vmul.f32 %v805, %v805
  %v808 = vmul.f32 %v806, %v806
  %v809 = vsel %vm795, %v807, 0.0
  %810 = vadd.xlane.f32.xlu0 %v809
  %v811 = vpop.xlane.xlu0 %810
  %v812 = vsel %vm795, %v808, 0.0
  %813 = vadd.xlane.f32.xlu0 %v812
  %v814 = vpop.xlane.xlu0 %813
  %v815 = vmul.f32 %v811, %v802
  %v816 = vmul.f32 %v814, %v802
  %v817 = vadd.f32 %v815, 1e-05
  %v818 = vadd.f32 %v816, 1e-05
  %v819 = vrsqrt.pop %v817
  %v820 = vrsqrt.pop %v818
  %v821 = vmul.f32 %v805, %v819
  %v822 = vmul.f32 %v806, %v820
  %v823 = vld [vmem:[%s4] sm:$0x1]
  %v825 = vlaneseq
  %v826 = vshrl.u32 %v825, 7
  %v827 = vsub.s32 0, %v826
  %v828 = vrot.slane %v823, %v827
  %v830 = vmul.f32 %v821, %v828
  %v831 = vmul.f32 %v822, %v828
  %v832 = vld [vmem:[%s5] sm:$0x1]
  %v834 = vlaneseq
  %v835 = vshrl.u32 %v834, 7
  %v836 = vsub.s32 0, %v835
  %v837 = vrot.slane %v832, %v836
  %v839 = vadd.f32 %v830, %v837
  %v840 = vadd.f32 %v831, %v837
  %841 = vst.msk [vmem:[%s6] sm:$0xff] %vm795, %v839
  %842 = vst.msk [vmem:[%s6 + $0x8] sm:$0xff] %vm795, %v840
  // Predicated region
  $region26: #{patch_mixer_forward.14} parent=0 // pred_check
    _
  $region27: #{patch_mixer_forward.14} parent=0 // pred_check_branch
    %844 = sbr.rel (0) target = $region29
  $region28: #{patch_mixer_forward.14} parent=0 // pred_region
    _
  $region29: #{patch_mixer_forward.14} parent=0 // pred_fallthru
    _
  // Predicated region
  $region30: #{patch_mixer_forward.14} parent=0 // pred_check
    _
  $region31: #{patch_mixer_forward.14} parent=0 // pred_check_branch
    %846 = sbr.rel (0) target = $region33
  $region32: #{patch_mixer_forward.14} parent=0 // pred_region
    _
  $region33: #{patch_mixer_forward.14} parent=0 // pred_fallthru
    _

// kernel: patch_mixer_forward.19
$region0: #{patch_mixer_forward.19}
  #allocation0 [shape = 'u32[]', space=smem, size = 0x4, offset = 0x4, fixed_abs, tag = 'smem constant byte address 0x4 - core index']
  #allocation1 [shape = 'u32[144,128]{1,0:T(1,128)}', space=vmem, size = 0x12000, scoped, tag = 'internal scratch']
  %s0 = inlined_call_operand.vmem [shape: f32[16,2048], index: 0, kind: input, shape index: {}]
  %s1 = inlined_call_operand.vmem [shape: f32[2048,32], index: 1, kind: input, shape index: {}]
  %s2 = inlined_call_operand.vmem [shape: f32[1,32], index: 2, kind: input, shape index: {}]
  %s3 = inlined_call_operand.vmem [shape: f32[16,32], index: 3, kind: input, shape index: {}]
  %s4 = inlined_call_operand.vmem [shape: f32[1,32], index: 4, kind: input, shape index: {}]
  %s5 = inlined_call_operand.vmem [shape: f32[1,32], index: 5, kind: input, shape index: {}]
  %s6 = inlined_call_operand.hbm [shape: f32[16,32], index: 6, kind: output, shape index: {}]
  %s7 = sld [smem:[#allocation0]]
  $region34: #{patch_mixer_forward.19} parent=0
    _
  %s9 = ssub.s32 1, %s7
  %s10 = scalar_select 0, %s9, %s7
  $region1: #{patch_mixer_forward.19} parent=0
    #allocation2 [shape = 'u8[8192]{0}', space=vmem, size = 0x2000, scoped, tag = 'output window, operand 0, single buffered']
    #allocation3 [shape = 's32[1]{0}', space=sflag, size = 0x4, scoped, tag = 'scoped memory for patch_mixer_forward.19']
    %11 = vsyncpa [#allocation3], 0
    // Predicated region
    $region2: #{patch_mixer_forward.19} parent=1 // pred_check
      _
    $region3: #{patch_mixer_forward.19} parent=1 // pred_check_branch
      %13 = sbr.rel (0) target = $region5
    $region4: #{patch_mixer_forward.19} parent=1 // pred_region
      _
    $region5: #{patch_mixer_forward.19} parent=1 // pred_fallthru
      _
    // Predicated region
    $region6: #{patch_mixer_forward.19} parent=1 // pred_check
      _
    $region7: #{patch_mixer_forward.19} parent=1 // pred_check_branch
      %15 = sbr.rel (0) target = $region9
    $region8: #{patch_mixer_forward.19} parent=1 // pred_region
      _
    $region9: #{patch_mixer_forward.19} parent=1 // pred_fallthru
      _
    // Predicated region
    $region10: #{patch_mixer_forward.19} parent=1 // pred_check
      _
    $region11: #{patch_mixer_forward.19} parent=1 // pred_check_branch
      %17 = sbr.rel (0) target = $region13
    $region12: #{patch_mixer_forward.19} parent=1 // pred_region
      _
    $region13: #{patch_mixer_forward.19} parent=1 // pred_fallthru
      _
    // Predicated region
    $region14: #{patch_mixer_forward.19} parent=1 // pred_check
      _
    $region15: #{patch_mixer_forward.19} parent=1 // pred_check_branch
      %19 = sbr.rel (0) target = $region17
    $region16: #{patch_mixer_forward.19} parent=1 // pred_region
      _
    $region17: #{patch_mixer_forward.19} parent=1 // pred_fallthru
      _
    // Predicated region
    $region18: #{patch_mixer_forward.19} parent=1 // pred_check
      _
    $region19: #{patch_mixer_forward.19} parent=1 // pred_check_branch
      %21 = sbr.rel (0) target = $region21
    $region20: #{patch_mixer_forward.19} parent=1 // pred_region
      _
    $region21: #{patch_mixer_forward.19} parent=1 // pred_fallthru
      _
    // Predicated region
    $region22: #{patch_mixer_forward.19} parent=1 // pred_check
      _
    $region23: #{patch_mixer_forward.19} parent=1 // pred_check_branch
      %23 = sbr.rel (0) target = $region25
    $region24: #{patch_mixer_forward.19} parent=1 // pred_region
      _
    $region25: #{patch_mixer_forward.19} parent=1 // pred_fallthru
      _
    %v25 = vld [vmem:[%s0] sm:$0xff]
    %v26 = vld [vmem:[%s0 + $0x8] sm:$0xff]
    %v27 = vld [vmem:[%s0 + $0x10] sm:$0xff]
    %v28 = vld [vmem:[%s0 + $0x18] sm:$0xff]
    %v29 = vld [vmem:[%s0 + $0x20] sm:$0xff]
    %v30 = vld [vmem:[%s0 + $0x28] sm:$0xff]
    %v31 = vld [vmem:[%s0 + $0x30] sm:$0xff]
    %v32 = vld [vmem:[%s0 + $0x38] sm:$0xff]
    %v33 = vld [vmem:[%s0 + $0x40] sm:$0xff]
    %v34 = vld [vmem:[%s0 + $0x48] sm:$0xff]
    %v35 = vld [vmem:[%s0 + $0x50] sm:$0xff]
    %v36 = vld [vmem:[%s0 + $0x58] sm:$0xff]
    %v37 = vld [vmem:[%s0 + $0x60] sm:$0xff]
    %v38 = vld [vmem:[%s0 + $0x68] sm:$0xff]
    %v39 = vld [vmem:[%s0 + $0x70] sm:$0xff]
    %v40 = vld [vmem:[%s0 + $0x78] sm:$0xff]
    %v41 = vld [vmem:[%s0 + $0x80] sm:$0xff]
    %v42 = vld [vmem:[%s0 + $0x88] sm:$0xff]
    %v43 = vld [vmem:[%s0 + $0x90] sm:$0xff]
    %v44 = vld [vmem:[%s0 + $0x98] sm:$0xff]
    %v45 = vld [vmem:[%s0 + $0xa0] sm:$0xff]
    %v46 = vld [vmem:[%s0 + $0xa8] sm:$0xff]
    %v47 = vld [vmem:[%s0 + $0xb0] sm:$0xff]
    %v48 = vld [vmem:[%s0 + $0xb8] sm:$0xff]
    %v49 = vld [vmem:[%s0 + $0xc0] sm:$0xff]
    %v50 = vld [vmem:[%s0 + $0xc8] sm:$0xff]
    %v51 = vld [vmem:[%s0 + $0xd0] sm:$0xff]
    %v52 = vld [vmem:[%s0 + $0xd8] sm:$0xff]
    %v53 = vld [vmem:[%s0 + $0xe0] sm:$0xff]
    %v54 = vld [vmem:[%s0 + $0xe8] sm:$0xff]
    %v55 = vld [vmem:[%s0 + $0xf0] sm:$0xff]
    %v56 = vld [vmem:[%s0 + $0xf8] sm:$0xff]
    %v57 = vpack.c.bf16 %v41, %v25
    %v58 = vpack.c.bf16 %v42, %v26
    %v59 = vpack.c.bf16 %v43, %v27
    %v60 = vpack.c.bf16 %v44, %v28
    %v61 = vpack.c.bf16 %v45, %v29
    %v62 = vpack.c.bf16 %v46, %v30
    %v63 = vpack.c.bf16 %v47, %v31
    %v64 = vpack.c.bf16 %v48, %v32
    %v65 = vpack.c.bf16 %v49, %v33
    %v66 = vpack.c.bf16 %v50, %v34
    %v67 = vpack.c.bf16 %v51, %v35
    %v68 = vpack.c.bf16 %v52, %v36
    %v69 = vpack.c.bf16 %v53, %v37
    %v70 = vpack.c.bf16 %v54, %v38
    %v71 = vpack.c.bf16 %v55, %v39
    %v72 = vpack.c.bf16 %v56, %v40
    %v73 = vld [vmem:[%s1] sm:$0xff]
    %v74 = vld [vmem:[%s1 + $0x8] sm:$0xff]
    %v75 = vld [vmem:[%s1 + $0x10] sm:$0xff]
    %v76 = vld [vmem:[%s1 + $0x18] sm:$0xff]
    %v77 = vld [vmem:[%s1 + $0x20] sm:$0xff]
    %v78 = vld [vmem:[%s1 + $0x28] sm:$0xff]
    %v79 = vld [vmem:[%s1 + $0x30] sm:$0xff]
    %v80 = vld [vmem:[%s1 + $0x38] sm:$0xff]
    %v81 = vld [vmem:[%s1 + $0x40] sm:$0xff]
    %v82 = vld [vmem:[%s1 + $0x48] sm:$0xff]
    %v83 = vld [vmem:[%s1 + $0x50] sm:$0xff]
    %v84 = vld [vmem:[%s1 + $0x58] sm:$0xff]
    %v85 = vld [vmem:[%s1 + $0x60] sm:$0xff]
    %v86 = vld [vmem:[%s1 + $0x68] sm:$0xff]
    %v87 = vld [vmem:[%s1 + $0x70] sm:$0xff]
    %v88 = vld [vmem:[%s1 + $0x78] sm:$0xff]
    %v89 = vld [vmem:[%s1 + $0x80] sm:$0xff]
    %v90 = vld [vmem:[%s1 + $0x88] sm:$0xff]
    %v91 = vld [vmem:[%s1 + $0x90] sm:$0xff]
    %v92 = vld [vmem:[%s1 + $0x98] sm:$0xff]
    %v93 = vld [vmem:[%s1 + $0xa0] sm:$0xff]
    %v94 = vld [vmem:[%s1 + $0xa8] sm:$0xff]
    %v95 = vld [vmem:[%s1 + $0xb0] sm:$0xff]
    %v96 = vld [vmem:[%s1 + $0xb8] sm:$0xff]
    %v97 = vld [vmem:[%s1 + $0xc0] sm:$0xff]
    %v98 = vld [vmem:[%s1 + $0xc8] sm:$0xff]
    %v99 = vld [vmem:[%s1 + $0xd0] sm:$0xff]
    %v100 = vld [vmem:[%s1 + $0xd8] sm:$0xff]
    %v101 = vld [vmem:[%s1 + $0xe0] sm:$0xff]
    %v102 = vld [vmem:[%s1 + $0xe8] sm:$0xff]
    %v103 = vld [vmem:[%s1 + $0xf0] sm:$0xff]
    %v104 = vld [vmem:[%s1 + $0xf8] sm:$0xff]
    %v105 = vld [vmem:[%s1 + $0x100] sm:$0xff]
    %v106 = vld [vmem:[%s1 + $0x108] sm:$0xff]
    %v107 = vld [vmem:[%s1 + $0x110] sm:$0xff]
    %v108 = vld [vmem:[%s1 + $0x118] sm:$0xff]
    %v109 = vld [vmem:[%s1 + $0x120] sm:$0xff]
    %v110 = vld [vmem:[%s1 + $0x128] sm:$0xff]
    %v111 = vld [vmem:[%s1 + $0x130] sm:$0xff]
    %v112 = vld [vmem:[%s1 + $0x138] sm:$0xff]
    %v113 = vld [vmem:[%s1 + $0x140] sm:$0xff]
    %v114 = vld [vmem:[%s1 + $0x148] sm:$0xff]
    %v115 = vld [vmem:[%s1 + $0x150] sm:$0xff]
    %v116 = vld [vmem:[%s1 + $0x158] sm:$0xff]
    %v117 = vld [vmem:[%s1 + $0x160] sm:$0xff]
    %v118 = vld [vmem:[%s1 + $0x168] sm:$0xff]
    %v119 = vld [vmem:[%s1 + $0x170] sm:$0xff]
    %v120 = vld [vmem:[%s1 + $0x178] sm:$0xff]
    %v121 = vld [vmem:[%s1 + $0x180] sm:$0xff]
    %v122 = vld [vmem:[%s1 + $0x188] sm:$0xff]
    %v123 = vld [vmem:[%s1 + $0x190] sm:$0xff]
    %v124 = vld [vmem:[%s1 + $0x198] sm:$0xff]
    %v125 = vld [vmem:[%s1 + $0x1a0] sm:$0xff]
    %v126 = vld [vmem:[%s1 + $0x1a8] sm:$0xff]
    %v127 = vld [vmem:[%s1 + $0x1b0] sm:$0xff]
    %v128 = vld [vmem:[%s1 + $0x1b8] sm:$0xff]
    %v129 = vld [vmem:[%s1 + $0x1c0] sm:$0xff]
    %v130 = vld [vmem:[%s1 + $0x1c8] sm:$0xff]
    %v131 = vld [vmem:[%s1 + $0x1d0] sm:$0xff]
    %v132 = vld [vmem:[%s1 + $0x1d8] sm:$0xff]
    %v133 = vld [vmem:[%s1 + $0x1e0] sm:$0xff]
    %v134 = vld [vmem:[%s1 + $0x1e8] sm:$0xff]
    %v135 = vld [vmem:[%s1 + $0x1f0] sm:$0xff]
    %v136 = vld [vmem:[%s1 + $0x1f8] sm:$0xff]
    %v137 = vld [vmem:[%s1 + $0x200] sm:$0xff]
    %v138 = vld [vmem:[%s1 + $0x208] sm:$0xff]
    %v139 = vld [vmem:[%s1 + $0x210] sm:$0xff]
    %v140 = vld [vmem:[%s1 + $0x218] sm:$0xff]
    %v141 = vld [vmem:[%s1 + $0x220] sm:$0xff]
    %v142 = vld [vmem:[%s1 + $0x228] sm:$0xff]
    %v143 = vld [vmem:[%s1 + $0x230] sm:$0xff]
    %v144 = vld [vmem:[%s1 + $0x238] sm:$0xff]
    %v145 = vld [vmem:[%s1 + $0x240] sm:$0xff]
    %v146 = vld [vmem:[%s1 + $0x248] sm:$0xff]
    %v147 = vld [vmem:[%s1 + $0x250] sm:$0xff]
    %v148 = vld [vmem:[%s1 + $0x258] sm:$0xff]
    %v149 = vld [vmem:[%s1 + $0x260] sm:$0xff]
    %v150 = vld [vmem:[%s1 + $0x268] sm:$0xff]
    %v151 = vld [vmem:[%s1 + $0x270] sm:$0xff]
    %v152 = vld [vmem:[%s1 + $0x278] sm:$0xff]
    %v153 = vld [vmem:[%s1 + $0x280] sm:$0xff]
    %v154 = vld [vmem:[%s1 + $0x288] sm:$0xff]
    %v155 = vld [vmem:[%s1 + $0x290] sm:$0xff]
    %v156 = vld [vmem:[%s1 + $0x298] sm:$0xff]
    %v157 = vld [vmem:[%s1 + $0x2a0] sm:$0xff]
    %v158 = vld [vmem:[%s1 + $0x2a8] sm:$0xff]
    %v159 = vld [vmem:[%s1 + $0x2b0] sm:$0xff]
    %v160 = vld [vmem:[%s1 + $0x2b8] sm:$0xff]
    %v161 = vld [vmem:[%s1 + $0x2c0] sm:$0xff]
    %v162 = vld [vmem:[%s1 + $0x2c8] sm:$0xff]
    %v163 = vld [vmem:[%s1 + $0x2d0] sm:$0xff]
    %v164 = vld [vmem:[%s1 + $0x2d8] sm:$0xff]
    %v165 = vld [vmem:[%s1 + $0x2e0] sm:$0xff]
    %v166 = vld [vmem:[%s1 + $0x2e8] sm:$0xff]
    %v167 = vld [vmem:[%s1 + $0x2f0] sm:$0xff]
    %v168 = vld [vmem:[%s1 + $0x2f8] sm:$0xff]
    %v169 = vld [vmem:[%s1 + $0x300] sm:$0xff]
    %v170 = vld [vmem:[%s1 + $0x308] sm:$0xff]
    %v171 = vld [vmem:[%s1 + $0x310] sm:$0xff]
    %v172 = vld [vmem:[%s1 + $0x318] sm:$0xff]
    %v173 = vld [vmem:[%s1 + $0x320] sm:$0xff]
    %v174 = vld [vmem:[%s1 + $0x328] sm:$0xff]
    %v175 = vld [vmem:[%s1 + $0x330] sm:$0xff]
    %v176 = vld [vmem:[%s1 + $0x338] sm:$0xff]
    %v177 = vld [vmem:[%s1 + $0x340] sm:$0xff]
    %v178 = vld [vmem:[%s1 + $0x348] sm:$0xff]
    %v179 = vld [vmem:[%s1 + $0x350] sm:$0xff]
    %v180 = vld [vmem:[%s1 + $0x358] sm:$0xff]
    %v181 = vld [vmem:[%s1 + $0x360] sm:$0xff]
    %v182 = vld [vmem:[%s1 + $0x368] sm:$0xff]
    %v183 = vld [vmem:[%s1 + $0x370] sm:$0xff]
    %v184 = vld [vmem:[%s1 + $0x378] sm:$0xff]
    %v185 = vld [vmem:[%s1 + $0x380] sm:$0xff]
    %v186 = vld [vmem:[%s1 + $0x388] sm:$0xff]
    %v187 = vld [vmem:[%s1 + $0x390] sm:$0xff]
    %v188 = vld [vmem:[%s1 + $0x398] sm:$0xff]
    %v189 = vld [vmem:[%s1 + $0x3a0] sm:$0xff]
    %v190 = vld [vmem:[%s1 + $0x3a8] sm:$0xff]
    %v191 = vld [vmem:[%s1 + $0x3b0] sm:$0xff]
    %v192 = vld [vmem:[%s1 + $0x3b8] sm:$0xff]
    %v193 = vld [vmem:[%s1 + $0x3c0] sm:$0xff]
    %v194 = vld [vmem:[%s1 + $0x3c8] sm:$0xff]
    %v195 = vld [vmem:[%s1 + $0x3d0] sm:$0xff]
    %v196 = vld [vmem:[%s1 + $0x3d8] sm:$0xff]
    %v197 = vld [vmem:[%s1 + $0x3e0] sm:$0xff]
    %v198 = vld [vmem:[%s1 + $0x3e8] sm:$0xff]
    %v199 = vld [vmem:[%s1 + $0x3f0] sm:$0xff]
    %v200 = vld [vmem:[%s1 + $0x3f8] sm:$0xff]
    %v201 = vld [vmem:[%s1 + $0x400] sm:$0xff]
    %v202 = vld [vmem:[%s1 + $0x408] sm:$0xff]
    %v203 = vld [vmem:[%s1 + $0x410] sm:$0xff]
    %v204 = vld [vmem:[%s1 + $0x418] sm:$0xff]
    %v205 = vld [vmem:[%s1 + $0x420] sm:$0xff]
    %v206 = vld [vmem:[%s1 + $0x428] sm:$0xff]
    %v207 = vld [vmem:[%s1 + $0x430] sm:$0xff]
    %v208 = vld [vmem:[%s1 + $0x438] sm:$0xff]
    %v209 = vld [vmem:[%s1 + $0x440] sm:$0xff]
    %v210 = vld [vmem:[%s1 + $0x448] sm:$0xff]
    %v211 = vld [vmem:[%s1 + $0x450] sm:$0xff]
    %v212 = vld [vmem:[%s1 + $0x458] sm:$0xff]
    %v213 = vld [vmem:[%s1 + $0x460] sm:$0xff]
    %v214 = vld [vmem:[%s1 + $0x468] sm:$0xff]
    %v215 = vld [vmem:[%s1 + $0x470] sm:$0xff]
    %v216 = vld [vmem:[%s1 + $0x478] sm:$0xff]
    %v217 = vld [vmem:[%s1 + $0x480] sm:$0xff]
    %v218 = vld [vmem:[%s1 + $0x488] sm:$0xff]
    %v219 = vld [vmem:[%s1 + $0x490] sm:$0xff]
    %v220 = vld [vmem:[%s1 + $0x498] sm:$0xff]
    %v221 = vld [vmem:[%s1 + $0x4a0] sm:$0xff]
    %v222 = vld [vmem:[%s1 + $0x4a8] sm:$0xff]
    %v223 = vld [vmem:[%s1 + $0x4b0] sm:$0xff]
    %v224 = vld [vmem:[%s1 + $0x4b8] sm:$0xff]
    %v225 = vld [vmem:[%s1 + $0x4c0] sm:$0xff]
    %v226 = vld [vmem:[%s1 + $0x4c8] sm:$0xff]
    %v227 = vld [vmem:[%s1 + $0x4d0] sm:$0xff]
    %v228 = vld [vmem:[%s1 + $0x4d8] sm:$0xff]
    %v229 = vld [vmem:[%s1 + $0x4e0] sm:$0xff]
    %v230 = vld [vmem:[%s1 + $0x4e8] sm:$0xff]
    %v231 = vld [vmem:[%s1 + $0x4f0] sm:$0xff]
    %v232 = vld [vmem:[%s1 + $0x4f8] sm:$0xff]
    %v233 = vld [vmem:[%s1 + $0x500] sm:$0xff]
    %v234 = vld [vmem:[%s1 + $0x508] sm:$0xff]
    %v235 = vld [vmem:[%s1 + $0x510] sm:$0xff]
    %v236 = vld [vmem:[%s1 + $0x518] sm:$0xff]
    %v237 = vld [vmem:[%s1 + $0x520] sm:$0xff]
    %v238 = vld [vmem:[%s1 + $0x528] sm:$0xff]
    %v239 = vld [vmem:[%s1 + $0x530] sm:$0xff]
    %v240 = vld [vmem:[%s1 + $0x538] sm:$0xff]
    %v241 = vld [vmem:[%s1 + $0x540] sm:$0xff]
    %v242 = vld [vmem:[%s1 + $0x548] sm:$0xff]
    %v243 = vld [vmem:[%s1 + $0x550] sm:$0xff]
    %v244 = vld [vmem:[%s1 + $0x558] sm:$0xff]
    %v245 = vld [vmem:[%s1 + $0x560] sm:$0xff]
    %v246 = vld [vmem:[%s1 + $0x568] sm:$0xff]
    %v247 = vld [vmem:[%s1 + $0x570] sm:$0xff]
    %v248 = vld [vmem:[%s1 + $0x578] sm:$0xff]
    %v249 = vld [vmem:[%s1 + $0x580] sm:$0xff]
    %v250 = vld [vmem:[%s1 + $0x588] sm:$0xff]
    %v251 = vld [vmem:[%s1 + $0x590] sm:$0xff]
    %v252 = vld [vmem:[%s1 + $0x598] sm:$0xff]
    %v253 = vld [vmem:[%s1 + $0x5a0] sm:$0xff]
    %v254 = vld [vmem:[%s1 + $0x5a8] sm:$0xff]
    %v255 = vld [vmem:[%s1 + $0x5b0] sm:$0xff]
    %v256 = vld [vmem:[%s1 + $0x5b8] sm:$0xff]
    %v257 = vld [vmem:[%s1 + $0x5c0] sm:$0xff]
    %v258 = vld [vmem:[%s1 + $0x5c8] sm:$0xff]
    %v259 = vld [vmem:[%s1 + $0x5d0] sm:$0xff]
    %v260 = vld [vmem:[%s1 + $0x5d8] sm:$0xff]
    %v261 = vld [vmem:[%s1 + $0x5e0] sm:$0xff]
    %v262 = vld [vmem:[%s1 + $0x5e8] sm:$0xff]
    %v263 = vld [vmem:[%s1 + $0x5f0] sm:$0xff]
    %v264 = vld [vmem:[%s1 + $0x5f8] sm:$0xff]
    %v265 = vld [vmem:[%s1 + $0x600] sm:$0xff]
    %v266 = vld [vmem:[%s1 + $0x608] sm:$0xff]
    %v267 = vld [vmem:[%s1 + $0x610] sm:$0xff]
    %v268 = vld [vmem:[%s1 + $0x618] sm:$0xff]
    %v269 = vld [vmem:[%s1 + $0x620] sm:$0xff]
    %v270 = vld [vmem:[%s1 + $0x628] sm:$0xff]
    %v271 = vld [vmem:[%s1 + $0x630] sm:$0xff]
    %v272 = vld [vmem:[%s1 + $0x638] sm:$0xff]
    %v273 = vld [vmem:[%s1 + $0x640] sm:$0xff]
    %v274 = vld [vmem:[%s1 + $0x648] sm:$0xff]
    %v275 = vld [vmem:[%s1 + $0x650] sm:$0xff]
    %v276 = vld [vmem:[%s1 + $0x658] sm:$0xff]
    %v277 = vld [vmem:[%s1 + $0x660] sm:$0xff]
    %v278 = vld [vmem:[%s1 + $0x668] sm:$0xff]
    %v279 = vld [vmem:[%s1 + $0x670] sm:$0xff]
    %v280 = vld [vmem:[%s1 + $0x678] sm:$0xff]
    %v281 = vld [vmem:[%s1 + $0x680] sm:$0xff]
    %v282 = vld [vmem:[%s1 + $0x688] sm:$0xff]
    %v283 = vld [vmem:[%s1 + $0x690] sm:$0xff]
    %v284 = vld [vmem:[%s1 + $0x698] sm:$0xff]
    %v285 = vld [vmem:[%s1 + $0x6a0] sm:$0xff]
    %v286 = vld [vmem:[%s1 + $0x6a8] sm:$0xff]
    %v287 = vld [vmem:[%s1 + $0x6b0] sm:$0xff]
    %v288 = vld [vmem:[%s1 + $0x6b8] sm:$0xff]
    %v289 = vld [vmem:[%s1 + $0x6c0] sm:$0xff]
    %v290 = vld [vmem:[%s1 + $0x6c8] sm:$0xff]
    %v291 = vld [vmem:[%s1 + $0x6d0] sm:$0xff]
    %v292 = vld [vmem:[%s1 + $0x6d8] sm:$0xff]
    %v293 = vld [vmem:[%s1 + $0x6e0] sm:$0xff]
    %v294 = vld [vmem:[%s1 + $0x6e8] sm:$0xff]
    %v295 = vld [vmem:[%s1 + $0x6f0] sm:$0xff]
    %v296 = vld [vmem:[%s1 + $0x6f8] sm:$0xff]
    %v297 = vld [vmem:[%s1 + $0x700] sm:$0xff]
    %v298 = vld [vmem:[%s1 + $0x708] sm:$0xff]
    %v299 = vld [vmem:[%s1 + $0x710] sm:$0xff]
    %v300 = vld [vmem:[%s1 + $0x718] sm:$0xff]
    %v301 = vld [vmem:[%s1 + $0x720] sm:$0xff]
    %v302 = vld [vmem:[%s1 + $0x728] sm:$0xff]
    %v303 = vld [vmem:[%s1 + $0x730] sm:$0xff]
    %v304 = vld [vmem:[%s1 + $0x738] sm:$0xff]
    %v305 = vld [vmem:[%s1 + $0x740] sm:$0xff]
    %v306 = vld [vmem:[%s1 + $0x748] sm:$0xff]
    %v307 = vld [vmem:[%s1 + $0x750] sm:$0xff]
    %v308 = vld [vmem:[%s1 + $0x758] sm:$0xff]
    %v309 = vld [vmem:[%s1 + $0x760] sm:$0xff]
    %v310 = vld [vmem:[%s1 + $0x768] sm:$0xff]
    %v311 = vld [vmem:[%s1 + $0x770] sm:$0xff]
    %v312 = vld [vmem:[%s1 + $0x778] sm:$0xff]
    %v313 = vld [vmem:[%s1 + $0x780] sm:$0xff]
    %v314 = vld [vmem:[%s1 + $0x788] sm:$0xff]
    %v315 = vld [vmem:[%s1 + $0x790] sm:$0xff]
    %v316 = vld [vmem:[%s1 + $0x798] sm:$0xff]
    %v317 = vld [vmem:[%s1 + $0x7a0] sm:$0xff]
    %v318 = vld [vmem:[%s1 + $0x7a8] sm:$0xff]
    %v319 = vld [vmem:[%s1 + $0x7b0] sm:$0xff]
    %v320 = vld [vmem:[%s1 + $0x7b8] sm:$0xff]
    %v321 = vld [vmem:[%s1 + $0x7c0] sm:$0xff]
    %v322 = vld [vmem:[%s1 + $0x7c8] sm:$0xff]
    %v323 = vld [vmem:[%s1 + $0x7d0] sm:$0xff]
    %v324 = vld [vmem:[%s1 + $0x7d8] sm:$0xff]
    %v325 = vld [vmem:[%s1 + $0x7e0] sm:$0xff]
    %v326 = vld [vmem:[%s1 + $0x7e8] sm:$0xff]
    %v327 = vld [vmem:[%s1 + $0x7f0] sm:$0xff]
    %v328 = vld [vmem:[%s1 + $0x7f8] sm:$0xff]
    %v329 = vpack.c.bf16 %v74, %v73
    %v330 = vpack.c.bf16 %v76, %v75
    %v331 = vpack.c.bf16 %v78, %v77
    %v332 = vpack.c.bf16 %v80, %v79
    %v333 = vpack.c.bf16 %v82, %v81
    %v334 = vpack.c.bf16 %v84, %v83
    %v335 = vpack.c.bf16 %v86, %v85
    %v336 = vpack.c.bf16 %v88, %v87
    %v337 = vpack.c.bf16 %v90, %v89
    %v338 = vpack.c.bf16 %v92, %v91
    %v339 = vpack.c.bf16 %v94, %v93
    %v340 = vpack.c.bf16 %v96, %v95
    %v341 = vpack.c.bf16 %v98, %v97
    %v342 = vpack.c.bf16 %v100, %v99
    %v343 = vpack.c.bf16 %v102, %v101
    %v344 = vpack.c.bf16 %v104, %v103
    %v345 = vpack.c.bf16 %v106, %v105
    %v346 = vpack.c.bf16 %v108, %v107
    %v347 = vpack.c.bf16 %v110, %v109
    %v348 = vpack.c.bf16 %v112, %v111
    %v349 = vpack.c.bf16 %v114, %v113
    %v350 = vpack.c.bf16 %v116, %v115
    %v351 = vpack.c.bf16 %v118, %v117
    %v352 = vpack.c.bf16 %v120, %v119
    %v353 = vpack.c.bf16 %v122, %v121
    %v354 = vpack.c.bf16 %v124, %v123
    %v355 = vpack.c.bf16 %v126, %v125
    %v356 = vpack.c.bf16 %v128, %v127
    %v357 = vpack.c.bf16 %v130, %v129
    %v358 = vpack.c.bf16 %v132, %v131
    %v359 = vpack.c.bf16 %v134, %v133
    %v360 = vpack.c.bf16 %v136, %v135
    %v361 = vpack.c.bf16 %v138, %v137
    %v362 = vpack.c.bf16 %v140, %v139
    %v363 = vpack.c.bf16 %v142, %v141
    %v364 = vpack.c.bf16 %v144, %v143
    %v365 = vpack.c.bf16 %v146, %v145
    %v366 = vpack.c.bf16 %v148, %v147
    %v367 = vpack.c.bf16 %v150, %v149
    %v368 = vpack.c.bf16 %v152, %v151
    %v369 = vpack.c.bf16 %v154, %v153
    %v370 = vpack.c.bf16 %v156, %v155
    %v371 = vpack.c.bf16 %v158, %v157
    %v372 = vpack.c.bf16 %v160, %v159
    %v373 = vpack.c.bf16 %v162, %v161
    %v374 = vpack.c.bf16 %v164, %v163
    %v375 = vpack.c.bf16 %v166, %v165
    %v376 = vpack.c.bf16 %v168, %v167
    %v377 = vpack.c.bf16 %v170, %v169
    %v378 = vpack.c.bf16 %v172, %v171
    %v379 = vpack.c.bf16 %v174, %v173
    %v380 = vpack.c.bf16 %v176, %v175
    %v381 = vpack.c.bf16 %v178, %v177
    %v382 = vpack.c.bf16 %v180, %v179
    %v383 = vpack.c.bf16 %v182, %v181
    %v384 = vpack.c.bf16 %v184, %v183
    %v385 = vpack.c.bf16 %v186, %v185
    %v386 = vpack.c.bf16 %v188, %v187
    %v387 = vpack.c.bf16 %v190, %v189
    %v388 = vpack.c.bf16 %v192, %v191
    %v389 = vpack.c.bf16 %v194, %v193
    %v390 = vpack.c.bf16 %v196, %v195
    %v391 = vpack.c.bf16 %v198, %v197
    %v392 = vpack.c.bf16 %v200, %v199
    %v393 = vpack.c.bf16 %v202, %v201
    %v394 = vpack.c.bf16 %v204, %v203
    %v395 = vpack.c.bf16 %v206, %v205
    %v396 = vpack.c.bf16 %v208, %v207
    %v397 = vpack.c.bf16 %v210, %v209
    %v398 = vpack.c.bf16 %v212, %v211
    %v399 = vpack.c.bf16 %v214, %v213
    %v400 = vpack.c.bf16 %v216, %v215
    %v401 = vpack.c.bf16 %v218, %v217
    %v402 = vpack.c.bf16 %v220, %v219
    %v403 = vpack.c.bf16 %v222, %v221
    %v404 = vpack.c.bf16 %v224, %v223
    %v405 = vpack.c.bf16 %v226, %v225
    %v406 = vpack.c.bf16 %v228, %v227
    %v407 = vpack.c.bf16 %v230, %v229
    %v408 = vpack.c.bf16 %v232, %v231
    %v409 = vpack.c.bf16 %v234, %v233
    %v410 = vpack.c.bf16 %v236, %v235
    %v411 = vpack.c.bf16 %v238, %v237
    %v412 = vpack.c.bf16 %v240, %v239
    %v413 = vpack.c.bf16 %v242, %v241
    %v414 = vpack.c.bf16 %v244, %v243
    %v415 = vpack.c.bf16 %v246, %v245
    %v416 = vpack.c.bf16 %v248, %v247
    %v417 = vpack.c.bf16 %v250, %v249
    %v418 = vpack.c.bf16 %v252, %v251
    %v419 = vpack.c.bf16 %v254, %v253
    %v420 = vpack.c.bf16 %v256, %v255
    %v421 = vpack.c.bf16 %v258, %v257
    %v422 = vpack.c.bf16 %v260, %v259
    %v423 = vpack.c.bf16 %v262, %v261
    %v424 = vpack.c.bf16 %v264, %v263
    %v425 = vpack.c.bf16 %v266, %v265
    %v426 = vpack.c.bf16 %v268, %v267
    %v427 = vpack.c.bf16 %v270, %v269
    %v428 = vpack.c.bf16 %v272, %v271
    %v429 = vpack.c.bf16 %v274, %v273
    %v430 = vpack.c.bf16 %v276, %v275
    %v431 = vpack.c.bf16 %v278, %v277
    %v432 = vpack.c.bf16 %v280, %v279
    %v433 = vpack.c.bf16 %v282, %v281
    %v434 = vpack.c.bf16 %v284, %v283
    %v435 = vpack.c.bf16 %v286, %v285
    %v436 = vpack.c.bf16 %v288, %v287
    %v437 = vpack.c.bf16 %v290, %v289
    %v438 = vpack.c.bf16 %v292, %v291
    %v439 = vpack.c.bf16 %v294, %v293
    %v440 = vpack.c.bf16 %v296, %v295
    %v441 = vpack.c.bf16 %v298, %v297
    %v442 = vpack.c.bf16 %v300, %v299
    %v443 = vpack.c.bf16 %v302, %v301
    %v444 = vpack.c.bf16 %v304, %v303
    %v445 = vpack.c.bf16 %v306, %v305
    %v446 = vpack.c.bf16 %v308, %v307
    %v447 = vpack.c.bf16 %v310, %v309
    %v448 = vpack.c.bf16 %v312, %v311
    %v449 = vpack.c.bf16 %v314, %v313
    %v450 = vpack.c.bf16 %v316, %v315
    %v451 = vpack.c.bf16 %v318, %v317
    %v452 = vpack.c.bf16 %v320, %v319
    %v453 = vpack.c.bf16 %v322, %v321
    %v454 = vpack.c.bf16 %v324, %v323
    %v455 = vpack.c.bf16 %v326, %v325
    %v456 = vpack.c.bf16 %v328, %v327
    %v457 = vld [vmem:[%s2] sm:$0x1]
    %v459 = vlaneseq
    %v460 = vshrl.u32 %v459, 7
    %v461 = vsub.s32 0, %v460
    %v462 = vrot.slane %v457, %v461
    %464 = vmatprep.subr.bf16.mxu0 0
    %465 = vmatpush1.bf16.msra.mxu0 %v336
    %466 = vmatprep.subr.bf16.mxu0 0
    %467 = vmatpush1.bf16.msra.mxu0 %v335
    %468 = vmatprep.subr.bf16.mxu0 0
    %469 = vmatpush1.bf16.msra.mxu0 %v334
    %470 = vmatprep.subr.bf16.mxu0 0
    %471 = vmatpush1.bf16.msra.mxu0 %v333
    %472 = vmatprep.subr.bf16.mxu0 0
    %473 = vmatpush1.bf16.msra.mxu0 %v332
    %474 = vmatprep.subr.bf16.mxu0 0
    %475 = vmatpush1.bf16.msra.mxu0 %v331
    %476 = vmatprep.subr.bf16.mxu0 0
    %477 = vmatpush1.bf16.msra.mxu0 %v330
    %478 = vmatprep.subr.bf16.mxu0 0
    %479 = vmatpush1.bf16.msra.mxu0 %v329
    %480 = vmatprep.subr.bf16.mxu0 0
    %481 = vmatpush2.bf16.msra.mxu0 %v344
    %482 = vmatprep.subr.bf16.mxu0 0
    %483 = vmatpush2.bf16.msra.mxu0 %v343
    %484 = vmatprep.subr.bf16.mxu0 0
    %485 = vmatpush2.bf16.msra.mxu0 %v342
    %486 = vmatprep.subr.bf16.mxu0 0
    %487 = vmatpush2.bf16.msra.mxu0 %v341
    %488 = vmatprep.subr.bf16.mxu0 0
    %489 = vmatpush2.bf16.msra.mxu0 %v340
    %490 = vmatprep.subr.bf16.mxu0 0
    %491 = vmatpush2.bf16.msra.mxu0 %v339
    %492 = vmatprep.subr.bf16.mxu0 0
    %493 = vmatpush2.bf16.msra.mxu0 %v338
    %494 = vmatprep.subr.bf16.mxu0 0
    %495 = vmatpush2.bf16.msra.mxu0 %v337
    %496 = vmatprep.mubr.bf16.mxu0 %v58
    %497 = vmatmul.mubr.bf16.gmra.mxu0 %v57
    %v498 = vpop.f32.mrf.mxu0
    %v499 = vadd.f32 %v462, %v498
    %v500 = vpop.f32.mrf.mxu0
    %v501 = vpop.f32.mrf.mxu0
    %v502 = vadd.f32 %v462, %v501
    %v503 = vpop.f32.mrf.mxu0
    %504 = vdwg.mxu0
    %505 = vmatprep.subr.bf16.mxu0 0
    %506 = vmatpush1.bf16.msra.mxu0 %v352
    %507 = vmatprep.subr.bf16.mxu0 0
    %508 = vmatpush1.bf16.msra.mxu0 %v351
    %509 = vmatprep.subr.bf16.mxu0 0
    %510 = vmatpush1.bf16.msra.mxu0 %v350
    %511 = vmatprep.subr.bf16.mxu0 0
    %512 = vmatpush1.bf16.msra.mxu0 %v349
    %513 = vmatprep.subr.bf16.mxu0 0
    %514 = vmatpush1.bf16.msra.mxu0 %v348
    %515 = vmatprep.subr.bf16.mxu0 0
    %516 = vmatpush1.bf16.msra.mxu0 %v347
    %517 = vmatprep.subr.bf16.mxu0 0
    %518 = vmatpush1.bf16.msra.mxu0 %v346
    %519 = vmatprep.subr.bf16.mxu0 0
    %520 = vmatpush1.bf16.msra.mxu0 %v345
    %521 = vmatprep.subr.bf16.mxu0 0
    %522 = vmatpush2.bf16.msra.mxu0 %v360
    %523 = vmatprep.subr.bf16.mxu0 0
    %524 = vmatpush2.bf16.msra.mxu0 %v359
    %525 = vmatprep.subr.bf16.mxu0 0
    %526 = vmatpush2.bf16.msra.mxu0 %v358
    %527 = vmatprep.subr.bf16.mxu0 0
    %528 = vmatpush2.bf16.msra.mxu0 %v357
    %529 = vmatprep.subr.bf16.mxu0 0
    %530 = vmatpush2.bf16.msra.mxu0 %v356
    %531 = vmatprep.subr.bf16.mxu0 0
    %532 = vmatpush2.bf16.msra.mxu0 %v355
    %533 = vmatprep.subr.bf16.mxu0 0
    %534 = vmatpush2.bf16.msra.mxu0 %v354
    %535 = vmatprep.subr.bf16.mxu0 0
    %536 = vmatpush2.bf16.msra.mxu0 %v353
    %537 = vmatprep.mubr.bf16.mxu0 %v60
    %538 = vmatmul.mubr.bf16.gmra.mxu0 %v59
    %v539 = vpop.f32.mrf.mxu0
    %v540 = vadd.f32 %v499, %v539
    %v541 = vpop.f32.mrf.mxu0
    %v542 = vpop.f32.mrf.mxu0
    %v543 = vadd.f32 %v502, %v542
    %v544 = vpop.f32.mrf.mxu0
    %545 = vdwg.mxu0
    %546 = vmatprep.subr.bf16.mxu0 0
    %547 = vmatpush1.bf16.msra.mxu0 %v368
    %548 = vmatprep.subr.bf16.mxu0 0
    %549 = vmatpush1.bf16.msra.mxu0 %v367
    %550 = vmatprep.subr.bf16.mxu0 0
    %551 = vmatpush1.bf16.msra.mxu0 %v366
    %552 = vmatprep.subr.bf16.mxu0 0
    %553 = vmatpush1.bf16.msra.mxu0 %v365
    %554 = vmatprep.subr.bf16.mxu0 0
    %555 = vmatpush1.bf16.msra.mxu0 %v364
    %556 = vmatprep.subr.bf16.mxu0 0
    %557 = vmatpush1.bf16.msra.mxu0 %v363
    %558 = vmatprep.subr.bf16.mxu0 0
    %559 = vmatpush1.bf16.msra.mxu0 %v362
    %560 = vmatprep.subr.bf16.mxu0 0
    %561 = vmatpush1.bf16.msra.mxu0 %v361
    %562 = vmatprep.subr.bf16.mxu0 0
    %563 = vmatpush2.bf16.msra.mxu0 %v376
    %564 = vmatprep.subr.bf16.mxu0 0
    %565 = vmatpush2.bf16.msra.mxu0 %v375
    %566 = vmatprep.subr.bf16.mxu0 0
    %567 = vmatpush2.bf16.msra.mxu0 %v374
    %568 = vmatprep.subr.bf16.mxu0 0
    %569 = vmatpush2.bf16.msra.mxu0 %v373
    %570 = vmatprep.subr.bf16.mxu0 0
    %571 = vmatpush2.bf16.msra.mxu0 %v372
    %572 = vmatprep.subr.bf16.mxu0 0
    %573 = vmatpush2.bf16.msra.mxu0 %v371
    %574 = vmatprep.subr.bf16.mxu0 0
    %575 = vmatpush2.bf16.msra.mxu0 %v370
    %576 = vmatprep.subr.bf16.mxu0 0
    %577 = vmatpush2.bf16.msra.mxu0 %v369
    %578 = vmatprep.mubr.bf16.mxu0 %v62
    %579 = vmatmul.mubr.bf16.gmra.mxu0 %v61
    %v580 = vpop.f32.mrf.mxu0
    %v581 = vadd.f32 %v540, %v580
    %v582 = vpop.f32.mrf.mxu0
    %v583 = vpop.f32.mrf.mxu0
    %v584 = vadd.f32 %v543, %v583
    %v585 = vpop.f32.mrf.mxu0
    %586 = vdwg.mxu0
    %587 = vmatprep.subr.bf16.mxu0 0
    %588 = vmatpush1.bf16.msra.mxu0 %v384
    %589 = vmatprep.subr.bf16.mxu0 0
    %590 = vmatpush1.bf16.msra.mxu0 %v383
    %591 = vmatprep.subr.bf16.mxu0 0
    %592 = vmatpush1.bf16.msra.mxu0 %v382
    %593 = vmatprep.subr.bf16.mxu0 0
    %594 = vmatpush1.bf16.msra.mxu0 %v381
    %595 = vmatprep.subr.bf16.mxu0 0
    %596 = vmatpush1.bf16.msra.mxu0 %v380
    %597 = vmatprep.subr.bf16.mxu0 0
    %598 = vmatpush1.bf16.msra.mxu0 %v379
    %599 = vmatprep.subr.bf16.mxu0 0
    %600 = vmatpush1.bf16.msra.mxu0 %v378
    %601 = vmatprep.subr.bf16.mxu0 0
    %602 = vmatpush1.bf16.msra.mxu0 %v377
    %603 = vmatprep.subr.bf16.mxu0 0
    %604 = vmatpush2.bf16.msra.mxu0 %v392
    %605 = vmatprep.subr.bf16.mxu0 0
    %606 = vmatpush2.bf16.msra.mxu0 %v391
    %607 = vmatprep.subr.bf16.mxu0 0
    %608 = vmatpush2.bf16.msra.mxu0 %v390
    %609 = vmatprep.subr.bf16.mxu0 0
    %610 = vmatpush2.bf16.msra.mxu0 %v389
    %611 = vmatprep.subr.bf16.mxu0 0
    %612 = vmatpush2.bf16.msra.mxu0 %v388
    %613 = vmatprep.subr.bf16.mxu0 0
    %614 = vmatpush2.bf16.msra.mxu0 %v387
    %615 = vmatprep.subr.bf16.mxu0 0
    %616 = vmatpush2.bf16.msra.mxu0 %v386
    %617 = vmatprep.subr.bf16.mxu0 0
    %618 = vmatpush2.bf16.msra.mxu0 %v385
    %619 = vmatprep.mubr.bf16.mxu0 %v64
    %620 = vmatmul.mubr.bf16.gmra.mxu0 %v63
    %v621 = vpop.f32.mrf.mxu0
    %v622 = vadd.f32 %v581, %v621
    %v623 = vpop.f32.mrf.mxu0
    %v624 = vpop.f32.mrf.mxu0
    %v625 = vadd.f32 %v584, %v624
    %v626 = vpop.f32.mrf.mxu0
    %627 = vdwg.mxu0
    %628 = vmatprep.subr.bf16.mxu0 0
    %629 = vmatpush1.bf16.msra.mxu0 %v400
    %630 = vmatprep.subr.bf16.mxu0 0
    %631 = vmatpush1.bf16.msra.mxu0 %v399
    %632 = vmatprep.subr.bf16.mxu0 0
    %633 = vmatpush1.bf16.msra.mxu0 %v398
    %634 = vmatprep.subr.bf16.mxu0 0
    %635 = vmatpush1.bf16.msra.mxu0 %v397
    %636 = vmatprep.subr.bf16.mxu0 0
    %637 = vmatpush1.bf16.msra.mxu0 %v396
    %638 = vmatprep.subr.bf16.mxu0 0
    %639 = vmatpush1.bf16.msra.mxu0 %v395
    %640 = vmatprep.subr.bf16.mxu0 0
    %641 = vmatpush1.bf16.msra.mxu0 %v394
    %642 = vmatprep.subr.bf16.mxu0 0
    %643 = vmatpush1.bf16.msra.mxu0 %v393
    %644 = vmatprep.subr.bf16.mxu0 0
    %645 = vmatpush2.bf16.msra.mxu0 %v408
    %646 = vmatprep.subr.bf16.mxu0 0
    %647 = vmatpush2.bf16.msra.mxu0 %v407
    %648 = vmatprep.subr.bf16.mxu0 0
    %649 = vmatpush2.bf16.msra.mxu0 %v406
    %650 = vmatprep.subr.bf16.mxu0 0
    %651 = vmatpush2.bf16.msra.mxu0 %v405
    %652 = vmatprep.subr.bf16.mxu0 0
    %653 = vmatpush2.bf16.msra.mxu0 %v404
    %654 = vmatprep.subr.bf16.mxu0 0
    %655 = vmatpush2.bf16.msra.mxu0 %v403
    %656 = vmatprep.subr.bf16.mxu0 0
    %657 = vmatpush2.bf16.msra.mxu0 %v402
    %658 = vmatprep.subr.bf16.mxu0 0
    %659 = vmatpush2.bf16.msra.mxu0 %v401
    %660 = vmatprep.mubr.bf16.mxu0 %v66
    %661 = vmatmul.mubr.bf16.gmra.mxu0 %v65
    %v662 = vpop.f32.mrf.mxu0
    %v663 = vadd.f32 %v622, %v662
    %v664 = vpop.f32.mrf.mxu0
    %v665 = vpop.f32.mrf.mxu0
    %v666 = vadd.f32 %v625, %v665
    %v667 = vpop.f32.mrf.mxu0
    %668 = vdwg.mxu0
    %669 = vmatprep.subr.bf16.mxu0 0
    %670 = vmatpush1.bf16.msra.mxu0 %v416
    %671 = vmatprep.subr.bf16.mxu0 0
    %672 = vmatpush1.bf16.msra.mxu0 %v415
    %673 = vmatprep.subr.bf16.mxu0 0
    %674 = vmatpush1.bf16.msra.mxu0 %v414
    %675 = vmatprep.subr.bf16.mxu0 0
    %676 = vmatpush1.bf16.msra.mxu0 %v413
    %677 = vmatprep.subr.bf16.mxu0 0
    %678 = vmatpush1.bf16.msra.mxu0 %v412
    %679 = vmatprep.subr.bf16.mxu0 0
    %680 = vmatpush1.bf16.msra.mxu0 %v411
    %681 = vmatprep.subr.bf16.mxu0 0
    %682 = vmatpush1.bf16.msra.mxu0 %v410
    %683 = vmatprep.subr.bf16.mxu0 0
    %684 = vmatpush1.bf16.msra.mxu0 %v409
    %685 = vmatprep.subr.bf16.mxu0 0
    %686 = vmatpush2.bf16.msra.mxu0 %v424
    %687 = vmatprep.subr.bf16.mxu0 0
    %688 = vmatpush2.bf16.msra.mxu0 %v423
    %689 = vmatprep.subr.bf16.mxu0 0
    %690 = vmatpush2.bf16.msra.mxu0 %v422
    %691 = vmatprep.subr.bf16.mxu0 0
    %692 = vmatpush2.bf16.msra.mxu0 %v421
    %693 = vmatprep.subr.bf16.mxu0 0
    %694 = vmatpush2.bf16.msra.mxu0 %v420
    %695 = vmatprep.subr.bf16.mxu0 0
    %696 = vmatpush2.bf16.msra.mxu0 %v419
    %697 = vmatprep.subr.bf16.mxu0 0
    %698 = vmatpush2.bf16.msra.mxu0 %v418
    %699 = vmatprep.subr.bf16.mxu0 0
    %700 = vmatpush2.bf16.msra.mxu0 %v417
    %701 = vmatprep.mubr.bf16.mxu0 %v68
    %702 = vmatmul.mubr.bf16.gmra.mxu0 %v67
    %v703 = vpop.f32.mrf.mxu0
    %v704 = vadd.f32 %v663, %v703
    %v705 = vpop.f32.mrf.mxu0
    %v706 = vpop.f32.mrf.mxu0
    %v707 = vadd.f32 %v666, %v706
    %v708 = vpop.f32.mrf.mxu0
    %709 = vdwg.mxu0
    %710 = vmatprep.subr.bf16.mxu0 0
    %711 = vmatpush1.bf16.msra.mxu0 %v432
    %712 = vmatprep.subr.bf16.mxu0 0
    %713 = vmatpush1.bf16.msra.mxu0 %v431
    %714 = vmatprep.subr.bf16.mxu0 0
    %715 = vmatpush1.bf16.msra.mxu0 %v430
    %716 = vmatprep.subr.bf16.mxu0 0
    %717 = vmatpush1.bf16.msra.mxu0 %v429
    %718 = vmatprep.subr.bf16.mxu0 0
    %719 = vmatpush1.bf16.msra.mxu0 %v428
    %720 = vmatprep.subr.bf16.mxu0 0
    %721 = vmatpush1.bf16.msra.mxu0 %v427
    %722 = vmatprep.subr.bf16.mxu0 0
    %723 = vmatpush1.bf16.msra.mxu0 %v426
    %724 = vmatprep.subr.bf16.mxu0 0
    %725 = vmatpush1.bf16.msra.mxu0 %v425
    %726 = vmatprep.subr.bf16.mxu0 0
    %727 = vmatpush2.bf16.msra.mxu0 %v440
    %728 = vmatprep.subr.bf16.mxu0 0
    %729 = vmatpush2.bf16.msra.mxu0 %v439
    %730 = vmatprep.subr.bf16.mxu0 0
    %731 = vmatpush2.bf16.msra.mxu0 %v438
    %732 = vmatprep.subr.bf16.mxu0 0
    %733 = vmatpush2.bf16.msra.mxu0 %v437
    %734 = vmatprep.subr.bf16.mxu0 0
    %735 = vmatpush2.bf16.msra.mxu0 %v436
    %736 = vmatprep.subr.bf16.mxu0 0
    %737 = vmatpush2.bf16.msra.mxu0 %v435
    %738 = vmatprep.subr.bf16.mxu0 0
    %739 = vmatpush2.bf16.msra.mxu0 %v434
    %740 = vmatprep.subr.bf16.mxu0 0
    %741 = vmatpush2.bf16.msra.mxu0 %v433
    %742 = vmatprep.mubr.bf16.mxu0 %v70
    %743 = vmatmul.mubr.bf16.gmra.mxu0 %v69
    %v744 = vpop.f32.mrf.mxu0
    %v745 = vadd.f32 %v704, %v744
    %v746 = vpop.f32.mrf.mxu0
    %v747 = vpop.f32.mrf.mxu0
    %v748 = vadd.f32 %v707, %v747
    %v749 = vpop.f32.mrf.mxu0
    %750 = vdwg.mxu0
    %751 = vmatprep.subr.bf16.mxu0 0
    %752 = vmatpush1.bf16.msra.mxu0 %v448
    %753 = vmatprep.subr.bf16.mxu0 0
    %754 = vmatpush1.bf16.msra.mxu0 %v447
    %755 = vmatprep.subr.bf16.mxu0 0
    %756 = vmatpush1.bf16.msra.mxu0 %v446
    %757 = vmatprep.subr.bf16.mxu0 0
    %758 = vmatpush1.bf16.msra.mxu0 %v445
    %759 = vmatprep.subr.bf16.mxu0 0
    %760 = vmatpush1.bf16.msra.mxu0 %v444
    %761 = vmatprep.subr.bf16.mxu0 0
    %762 = vmatpush1.bf16.msra.mxu0 %v443
    %763 = vmatprep.subr.bf16.mxu0 0
    %764 = vmatpush1.bf16.msra.mxu0 %v442
    %765 = vmatprep.subr.bf16.mxu0 0
    %766 = vmatpush1.bf16.msra.mxu0 %v441
    %767 = vmatprep.subr.bf16.mxu0 0
    %768 = vmatpush2.bf16.msra.mxu0 %v456
    %769 = vmatprep.subr.bf16.mxu0 0
    %770 = vmatpush2.bf16.msra.mxu0 %v455
    %771 = vmatprep.subr.bf16.mxu0 0
    %772 = vmatpush2.bf16.msra.mxu0 %v454
    %773 = vmatprep.subr.bf16.mxu0 0
    %774 = vmatpush2.bf16.msra.mxu0 %v453
    %775 = vmatprep.subr.bf16.mxu0 0
    %776 = vmatpush2.bf16.msra.mxu0 %v452
    %777 = vmatprep.subr.bf16.mxu0 0
    %778 = vmatpush2.bf16.msra.mxu0 %v451
    %779 = vmatprep.subr.bf16.mxu0 0
    %780 = vmatpush2.bf16.msra.mxu0 %v450
    %781 = vmatprep.subr.bf16.mxu0 0
    %782 = vmatpush2.bf16.msra.mxu0 %v449
    %783 = vmatprep.mubr.bf16.mxu0 %v72
    %784 = vmatmul.mubr.bf16.gmra.mxu0 %v71
    %v785 = vpop.f32.mrf.mxu0
    %v786 = vadd.f32 %v745, %v785
    %v787 = vpop.f32.mrf.mxu0
    %v788 = vpop.f32.mrf.mxu0
    %v789 = vadd.f32 %v748, %v788
    %v790 = vpop.f32.mrf.mxu0
    %791 = vdwg.mxu0
    %v792 = vld [vmem:[%s3] sm:$0xff]
    %v793 = vld [vmem:[%s3 + $0x8] sm:$0xff]
    %v794 = vadd.f32 %v786, %v792
    %v795 = vadd.f32 %v789, %v793
    %vm796 = vcmask 261120
    %v797 = vsel %vm796, %v794, 0.0
    %798 = vadd.xlane.f32.xlu0 %v797
    %v799 = vpop.xlane.xlu0 %798
    %v800 = vsel %vm796, %v795, 0.0
    %801 = vadd.xlane.f32.xlu0 %v800
    %v802 = vpop.xlane.xlu0 %801
    %v803 = vrcp.pop 32.0
    %v804 = vmul.f32 %v799, %v803
    %v805 = vmul.f32 %v802, %v803
    %v806 = vsub.f32 %v794, %v804
    %v807 = vsub.f32 %v795, %v805
    %v808 = vmul.f32 %v806, %v806
    %v809 = vmul.f32 %v807, %v807
    %v810 = vsel %vm796, %v808, 0.0
    %811 = vadd.xlane.f32.xlu0 %v810
    %v812 = vpop.xlane.xlu0 %811
    %v813 = vsel %vm796, %v809, 0.0
    %814 = vadd.xlane.f32.xlu0 %v813
    %v815 = vpop.xlane.xlu0 %814
    %v816 = vmul.f32 %v812, %v803
    %v817 = vmul.f32 %v815, %v803
    %v818 = vadd.f32 %v816, 1e-05
    %v819 = vadd.f32 %v817, 1e-05
    %v820 = vrsqrt.pop %v818
    %v821 = vrsqrt.pop %v819
    %v822 = vmul.f32 %v806, %v820
    %v823 = vmul.f32 %v807, %v821
    %v824 = vld [vmem:[%s4] sm:$0x1]
    %v826 = vlaneseq
    %v827 = vshrl.u32 %v826, 7
    %v828 = vsub.s32 0, %v827
    %v829 = vrot.slane %v824, %v828
    %v831 = vmul.f32 %v822, %v829
    %v832 = vmul.f32 %v823, %v829
    %v833 = vld [vmem:[%s5] sm:$0x1]
    %v835 = vlaneseq
    %v836 = vshrl.u32 %v835, 7
    %v837 = vsub.s32 0, %v836
    %v838 = vrot.slane %v833, %v837
    %v840 = vadd.f32 %v831, %v838
    %v841 = vadd.f32 %v832, %v838
    %842 = vst.msk [vmem:[#allocation2] sm:$0xff] %vm796, %v840
    %843 = vst.msk [vmem:[#allocation2 + $0x8] sm:$0xff] %vm796, %v841
    // Predicated region
    $region26: #{patch_mixer_forward.19} parent=1 // pred_check
      _
    $region27: #{patch_mixer_forward.19} parent=1 // pred_check_branch
      %845 = sbr.rel (0) target = $region29
    $region28: #{patch_mixer_forward.19} parent=1 // pred_region
      %s847 = ssub.s32 256, 256
      %848 = vsyncadd [#allocation3], %s847
      %s849 = sshll.u32 [#allocation2], 4
      %s850 = int_to_ptr.vmem [resolvable:$true] %s849
      %855 = dma.vmem_to_hbm [thread:$0]  %s850, 256, %s6, [#allocation3], 128, 128, 8
    $region29: #{patch_mixer_forward.19} parent=1 // pred_fallthru
      _
    // Predicated region
    $region30: #{patch_mixer_forward.19} parent=1 // pred_check
      _
    $region31: #{patch_mixer_forward.19} parent=1 // pred_check_branch
      %857 = sbr.rel (0) target = $region33
    $region32: #{patch_mixer_forward.19} parent=1 // pred_region
      %858 = dma.done [#allocation3], 256
    $region33: #{patch_mixer_forward.19} parent=1 // pred_fallthru
      _
    %859 = vsyncpa [#allocation3], 1

</llo_original>
